<compile_context>
chip_gen: v5e
topology: v5e:2x2
jax: 0.10.0
libtpu: 0.0.40
codegen_flags: <defaults>
</compile_context>

<pallas_src>
from functools import partial

import jax
import jax.numpy as jnp
from jax import lax
from jax.experimental import pallas as pl
from jax.experimental.pallas import tpu as pltpu

BN_EPS = 1e-5
LANE = 128


def _round_up(x, m):
    return ((x + m - 1) // m) * m


def _vmem_limit_bytes():
    # ~5/8 of per-core VMEM: ~40 MiB on v7x (64 MiB/TC), ~80 MiB on v5e/v6e
    # (128 MiB).  Conservative fallback if the query is unavailable.  The
    # kernel's actual working set at CIFAR sizes is < 2 MiB, so this is pure
    # headroom for larger layers.
    try:
        cap = int(pltpu.get_tpu_info().vmem_capacity_bytes)
        if cap <= 0:
            raise ValueError
    except Exception:
        cap = 64 << 20
    return min(cap * 5 // 8, 100 << 20)


# ------------------------------ Pallas kernel --------------------------------

def _resnet_block_kernel(planes_ref, w1_ref, b1_ref, w2_ref, b2_ref,
                         wr_ref, br_ref, out_ref, hid_ref, *,
                         tap_plan, res_tap, ho, wo):
    """Fused conv1->BN1->ReLU->conv2->BN2 (+residual) ->ReLU for one image.

    planes_ref : (Hs, Wq, Cin)    bf16  stride-parity planes of padded input
    w1_ref     : (9, Cin, Cp)     bf16  BN1-folded conv1 weights, one per tap
    b1_ref     : (1, Cp)          f32   BN1-folded bias
    w2_ref     : (9, Cp, Cp)      bf16  BN2-folded conv2 weights (K zero-padded)
    b2_ref     : (1, Cp)          f32   BN2-folded bias
    wr_ref     : (Cin, Cp)        bf16  residual 1x1 weight (eye if identity)
    br_ref     : (1, Cp)          f32   residual bias (0 if identity)
    out_ref    : (Ho*Wo, Cp)      bf16  lane-dense output rows
    hid_ref    : (Ho+2, Wo+2, Cp) bf16  VMEM scratch: hidden image + zero halo
    """
    m = ho * wo
    cp = out_ref.shape[-1]
    cin = planes_ref.shape[-1]

    # conv2 needs a zero halo around the hidden image; cheap full VMEM clear.
    hid_ref[...] = jnp.zeros(hid_ref.shape, hid_ref.dtype)

    # ---- conv1 (3x3, stride folded into tap_plan) + BN1 + ReLU -------------
    acc1 = jnp.zeros((m, cp), jnp.float32)
    for t, (r0, c0) in enumerate(tap_plan):
        xt = planes_ref[r0:r0 + ho, c0:c0 + wo, :].reshape(m, cin)
        acc1 = acc1 + jnp.dot(xt, w1_ref[t], preferred_element_type=jnp.float32)
    hid = jnp.maximum(acc1 + b1_ref[...], 0.0).astype(hid_ref.dtype)
    hid_ref[1:1 + ho, 1:1 + wo, :] = hid.reshape(ho, wo, cp)

    # ---- residual branch: 1x1 conv + BN (identity path -> eye weight) ------
    rr, rc = res_tap
    xr = planes_ref[rr:rr + ho, rc:rc + wo, :].reshape(m, cin)
    acc2 = jnp.dot(xr, wr_ref[...], preferred_element_type=jnp.float32) + br_ref[...]

    # ---- conv2 (3x3, stride 1) + BN2 + residual + ReLU ---------------------
    for t in range(9):
        kh, kw = t // 3, t % 3
        ht = hid_ref[kh:kh + ho, kw:kw + wo, :].reshape(m, cp)
        acc2 = acc2 + jnp.dot(ht, w2_ref[t], preferred_element_type=jnp.float32)
    out_ref[...] = jnp.maximum(acc2 + b2_ref[...], 0.0).astype(out_ref.dtype)


# --------------------------------- wrapper -----------------------------------

def _build_tap_planes(x_nhwc, stride):
    """Zero-pad spatially by 1 and (for stride 2) regroup into stride-parity
    planes stacked along the row axis (zero data expansion, contiguous taps).

    Returns (planes, tap_plan, res_tap, ho, wo) where tap_plan[t] = (row0,
    col0) is a static offset such that tap t's (Ho, Wo, Cin) window is
    planes[:, row0:row0+Ho, col0:col0+Wo, :], and res_tap is the same for the
    1x1 / identity residual sampling.
    """
    n, h, w, c = x_nhwc.shape
    assert stride in (1, 2) and h % stride == 0 and w % stride == 0, (
        "TODO(synk): only strides in {1, 2} with divisible spatial dims")
    xp = jnp.pad(x_nhwc, ((0, 0), (1, 1), (1, 1), (0, 0)))
    ho, wo = (h - 1) // stride + 1, (w - 1) // stride + 1
    if stride == 1:
        planes = xp                                              # (N, H+2, W+2, C)
        tap_plan = tuple((kh, kw) for kh in range(3) for kw in range(3))
        res_tap = (1, 1)
    else:
        hq = (h + 2) // 2
        planes = jnp.concatenate(
            [xp[:, a::2, b::2, :] for a in range(2) for b in range(2)], axis=1)
        tap_plan = tuple((((kh % 2) * 2 + (kw % 2)) * hq + kh // 2, kw // 2)
                         for kh in range(3) for kw in range(3))
        res_tap = (3 * hq, 0)
    return planes, tap_plan, res_tap, ho, wo


def _bn_fold(bn, eps=BN_EPS):
    gamma, beta, mean, var = bn
    scale = gamma / jnp.sqrt(var + eps)
    return scale, beta - mean * scale


@partial(jax.jit, static_argnames=("strides", "residual_path"))
def resnet_block_forward(x_nchw, params, *, strides=1, residual_path=False):
    cout, cin = params["c1_w"].shape[:2]
    cp = _round_up(cout, LANE)

    if not residual_path:
        assert strides == 1 and cin == cout, (
            "identity residual path requires strides == 1 and Cin == Cout")

    # bf16-first: cast before any layout-changing op so every wrapper-side
    # HBM pass (transpose / pad / parity regroup) moves half the bytes.
    x = jnp.transpose(x_nchw.astype(jnp.bfloat16), (0, 2, 3, 1))        # NHWC
    n = x.shape[0]
    planes, tap_plan, res_tap, ho, wo = _build_tap_planes(x, strides)
    m = ho * wo

    # Fold eval-mode BN into the conv weights / biases, per-tap layout,
    # lane-padded Cout -> Cp (zeros are numerically neutral and sliced off).
    s1, b1 = _bn_fold(params["b1"])
    w1 = jnp.transpose(params["c1_w"], (2, 3, 1, 0)).reshape(9, cin, cout)
    w1 = jnp.pad(w1 * s1, ((0, 0), (0, 0), (0, cp - cout))).astype(jnp.bfloat16)
    b1 = jnp.pad(b1, (0, cp - cout))[None, :].astype(jnp.float32)

    s2, b2 = _bn_fold(params["b2"])
    w2 = jnp.transpose(params["c2_w"], (2, 3, 1, 0)).reshape(9, cout, cout)
    # K dim padded too: the hidden scratch is Cp wide (its pad lanes are 0).
    w2 = jnp.pad(w2 * s2, ((0, 0), (0, cp - cout), (0, cp - cout))).astype(jnp.bfloat16)
    b2 = jnp.pad(b2, (0, cp - cout))[None, :].astype(jnp.float32)

    if residual_path:
        sr, br = _bn_fold(params["down_b1"])
        wr = params["down_c1_w"].reshape(cout, cin).T * sr               # 1x1 conv
    else:
        wr = jnp.eye(cin, dtype=jnp.float32)                             # identity
        br = jnp.zeros((cout,), jnp.float32)
    wr = jnp.pad(wr, ((0, 0), (0, cp - cout))).astype(jnp.bfloat16)
    br = jnp.pad(br, (0, cp - cout))[None, :].astype(jnp.float32)

    hs, wq = planes.shape[1], planes.shape[2]
    flops = 2 * n * m * cp * (9 * cin + 9 * cp + cin)
    bytes_accessed = ((planes.size + w1.size + w2.size + wr.size) * 2
                      + (b1.size + b2.size + br.size) * 4 + n * m * cp * 2)

    out = pl.pallas_call(
        partial(_resnet_block_kernel, tap_plan=tap_plan, res_tap=res_tap,
                ho=ho, wo=wo),
        out_shape=jax.ShapeDtypeStruct((n, m, cp), jnp.bfloat16),
        grid_spec=pltpu.PrefetchScalarGridSpec(
            num_scalar_prefetch=0,
            grid=(n,),
            in_specs=[
                pl.BlockSpec((None, hs, wq, cin), lambda i: (i, 0, 0, 0)),
                pl.BlockSpec((9, cin, cp), lambda i: (0, 0, 0)),
                pl.BlockSpec((1, cp), lambda i: (0, 0)),
                pl.BlockSpec((9, cp, cp), lambda i: (0, 0, 0)),
                pl.BlockSpec((1, cp), lambda i: (0, 0)),
                pl.BlockSpec((cin, cp), lambda i: (0, 0)),
                pl.BlockSpec((1, cp), lambda i: (0, 0)),
            ],
            out_specs=pl.BlockSpec((None, m, cp), lambda i: (i, 0, 0)),
            scratch_shapes=[pltpu.VMEM((ho + 2, wo + 2, cp), jnp.bfloat16)]),
        compiler_params=pltpu.CompilerParams(
            dimension_semantics=("parallel",),
            vmem_limit_bytes=_vmem_limit_bytes()),
        cost_estimate=pl.CostEstimate(flops=flops, transcendentals=0,
                                      bytes_accessed=bytes_accessed),
    )(planes, w1, b1, w2, b2, wr, br)

    out = out[:, :, :cout].astype(jnp.float32).reshape(n, ho, wo, cout)
    return jnp.transpose(out, (0, 3, 1, 2))                              # NCHW


# ----------------------- deterministic parameter init ------------------------

def init_params(key, cin, cout, residual_path):
    ks = jax.random.split(key, 6)

    def bn_params(k):
        k1, k2, k3, k4 = jax.random.split(k, 4)
        gamma = 1.0 + 0.1 * jax.random.normal(k1, (cout,), jnp.float32)
        beta = 0.1 * jax.random.normal(k2, (cout,), jnp.float32)
        mean = 0.1 * jax.random.normal(k3, (cout,), jnp.float32)
        var = jnp.abs(1.0 + 0.1 * jax.random.normal(k4, (cout,), jnp.float32))
        return (gamma, beta, mean, var)

    params = {
        "c1_w": 0.2 * jax.random.normal(ks[0], (cout, cin, 3, 3), jnp.float32),
        "b1": bn_params(ks[1]),
        "c2_w": 0.2 * jax.random.normal(ks[2], (cout, cout, 3, 3), jnp.float32),
        "b2": bn_params(ks[3]),
    }
    if residual_path:
        params["down_c1_w"] = 0.2 * jax.random.normal(
            ks[4], (cout, cin, 1, 1), jnp.float32)
        params["down_b1"] = bn_params(ks[5])
    return params


# ------------------------------ JAX reference ---------------------------------

def reference_forward(x, params, *, strides, residual_path):
    def conv(a, w, stride, pad):
        return lax.conv_general_dilated(
            a, w, (stride, stride), ((pad, pad), (pad, pad)),
            dimension_numbers=("NCHW", "OIHW", "NCHW"))

    def bn(a, p):
        g, b, m, v = p
        g, b, m, v = (t[None, :, None, None] for t in (g, b, m, v))
        return (a - m) / jnp.sqrt(v + BN_EPS) * g + b

    h = jax.nn.relu(bn(conv(x, params["c1_w"], strides, 1), params["b1"]))
    y = bn(conv(h, params["c2_w"], 1, 1), params["b2"])
    r = x
    if residual_path:
        r = bn(conv(x, params["down_c1_w"], strides, 0), params["down_b1"])
    return jax.nn.relu(y + r)


# ----------------------------------- main -------------------------------------

if __name__ == "__main__":
    key = jax.random.PRNGKey(0)

    configs = [
        # (n, cin, h, w, cout, strides, residual_path)
        (2, 4, 16, 16, 8, 2, True),    # down-sampling block with 1x1 shortcut
        (2, 8, 16, 16, 8, 1, False),   # identity-shortcut block
    ]
    for idx, (n, cin, h, w, cout, strides, residual_path) in enumerate(configs):
        kx, kp = jax.random.split(jax.random.fold_in(key, idx))
        x = jax.random.normal(kx, (n, cin, h, w), jnp.float32)
        params = init_params(kp, cin, cout, residual_path)

        out = resnet_block_forward(x, params, strides=strides,
                                   residual_path=residual_path)
        out = jax.block_until_ready(out)

        ref = reference_forward(x, params, strides=strides,
                                residual_path=residual_path)
        assert out.shape == ref.shape == (n, cout, h // strides, w // strides)
        assert bool(jnp.all(jnp.isfinite(out)))
        max_err = float(jnp.max(jnp.abs(out - ref)))
        # bf16 operands / stores with f32 accumulation: loosened tolerance.
        assert jnp.allclose(out, ref, rtol=5e-2, atol=7.5e-2), max_err

    print("KERNEL_OK")
</pallas_src>

<mosaic_0001>
module attributes {stable_mosaic.version = 11 : i64} {
  func.func @_resnet_block_kernel(%arg0: i32, %arg1: memref<1x36x9x4xbf16, #tpu.memory_space<vmem>>, %arg2: memref<9x4x128xbf16, #tpu.memory_space<vmem>>, %arg3: memref<1x128xf32, #tpu.memory_space<vmem>>, %arg4: memref<9x128x128xbf16, #tpu.memory_space<vmem>>, %arg5: memref<1x128xf32, #tpu.memory_space<vmem>>, %arg6: memref<4x128xbf16, #tpu.memory_space<vmem>>, %arg7: memref<1x128xf32, #tpu.memory_space<vmem>>, %arg8: memref<1x64x128xbf16, #tpu.memory_space<vmem>>, %arg9: memref<10x10x128xbf16, #tpu.memory_space<vmem>>) attributes {dimension_semantics = [#tpu.dimension_semantics<parallel>], iteration_bounds = array<i64: 2>, scalar_prefetch = 0 : i64, scratch_operands = 1 : i64, tpu.core_type = #tpu.core_type<tc>, window_params = [{transform_indices = @transform_0, window_bounds = array<i64: 1, 36, 9, 4>}, {pipeline_mode = #tpu.pipeline_mode<synchronous>, transform_indices = @transform_1, window_bounds = array<i64: 9, 4, 128>}, {pipeline_mode = #tpu.pipeline_mode<synchronous>, transform_indices = @transform_2, window_bounds = array<i64: 1, 128>}, {pipeline_mode = #tpu.pipeline_mode<synchronous>, transform_indices = @transform_3, window_bounds = array<i64: 9, 128, 128>}, {pipeline_mode = #tpu.pipeline_mode<synchronous>, transform_indices = @transform_4, window_bounds = array<i64: 1, 128>}, {pipeline_mode = #tpu.pipeline_mode<synchronous>, transform_indices = @transform_5, window_bounds = array<i64: 4, 128>}, {pipeline_mode = #tpu.pipeline_mode<synchronous>, transform_indices = @transform_6, window_bounds = array<i64: 1, 128>}, {transform_indices = @transform_7, window_bounds = array<i64: 1, 64, 128>}]} {
    %cst = arith.constant 0.000000e+00 : bf16
    %0 = vector.broadcast %cst : bf16 to vector<10x10x128xbf16>
    %c0 = arith.constant 0 : index
    %c0_0 = arith.constant 0 : index
    %c0_1 = arith.constant 0 : index
    %1 = vector.load %arg9[%c0, %c0_0, %c0_1] : memref<10x10x128xbf16, #tpu.memory_space<vmem>>, vector<10x10x128xbf16>
    tpu.vector_store %arg9[%c0, %c0_0, %c0_1], %0 {strides = array<i32>} : memref<10x10x128xbf16, #tpu.memory_space<vmem>>, vector<10x10x128xbf16>,
    %cst_2 = arith.constant 0.000000e+00 : f32
    %2 = vector.broadcast %cst_2 : f32 to vector<64x128xf32>
    %c0_3 = arith.constant 0 : index
    %c0_4 = arith.constant 0 : index
    %c0_5 = arith.constant 0 : index
    %c0_6 = arith.constant 0 : index
    %3 = vector.load %arg1[%c0_3, %c0_4, %c0_5, %c0_6] : memref<1x36x9x4xbf16, #tpu.memory_space<vmem>>, vector<1x8x8x4xbf16>
    %4 = vector.shape_cast %3 : vector<1x8x8x4xbf16> to vector<8x8x4xbf16>
    %5 = vector.shape_cast %4 : vector<8x8x4xbf16> to vector<64x4xbf16>
    %c0_7 = arith.constant 0 : index
    %c0_8 = arith.constant 0 : index
    %c0_9 = arith.constant 0 : index
    %6 = vector.load %arg2[%c0_7, %c0_8, %c0_9] : memref<9x4x128xbf16, #tpu.memory_space<vmem>>, vector<1x4x128xbf16>
    %7 = vector.shape_cast %6 : vector<1x4x128xbf16> to vector<4x128xbf16>
    %cst_10 = arith.constant dense<0.000000e+00> : vector<64x128xf32>
    %8 = tpu.matmul %5, %7, %cst_10 {dimension_numbers = #tpu.dot_dimension_numbers<[1], [0], [0], [1], [0, 0, 1, 1], [], []>} : vector<64x4xbf16>, vector<4x128xbf16>, vector<64x128xf32> -> vector<64x128xf32>
    %9 = arith.addf %2, %8 : vector<64x128xf32>
    %c0_11 = arith.constant 0 : index
    %c9 = arith.constant 9 : index
    %c0_12 = arith.constant 0 : index
    %c0_13 = arith.constant 0 : index
    %10 = vector.load %arg1[%c0_11, %c9, %c0_12, %c0_13] : memref<1x36x9x4xbf16, #tpu.memory_space<vmem>>, vector<1x8x8x4xbf16>
    %11 = vector.shape_cast %10 : vector<1x8x8x4xbf16> to vector<8x8x4xbf16>
    %12 = vector.shape_cast %11 : vector<8x8x4xbf16> to vector<64x4xbf16>
    %c1 = arith.constant 1 : index
    %c0_14 = arith.constant 0 : index
    %c0_15 = arith.constant 0 : index
    %13 = vector.load %arg2[%c1, %c0_14, %c0_15] : memref<9x4x128xbf16, #tpu.memory_space<vmem>>, vector<1x4x128xbf16>
    %14 = vector.shape_cast %13 : vector<1x4x128xbf16> to vector<4x128xbf16>
    %cst_16 = arith.constant dense<0.000000e+00> : vector<64x128xf32>
    %15 = tpu.matmul %12, %14, %cst_16 {dimension_numbers = #tpu.dot_dimension_numbers<[1], [0], [0], [1], [0, 0, 1, 1], [], []>} : vector<64x4xbf16>, vector<4x128xbf16>, vector<64x128xf32> -> vector<64x128xf32>
    %16 = arith.addf %9, %15 : vector<64x128xf32>
    %c0_17 = arith.constant 0 : index
    %c0_18 = arith.constant 0 : index
    %c1_19 = arith.constant 1 : index
    %c0_20 = arith.constant 0 : index
    %17 = vector.load %arg1[%c0_17, %c0_18, %c1_19, %c0_20] : memref<1x36x9x4xbf16, #tpu.memory_space<vmem>>, vector<1x8x8x4xbf16>
    %18 = vector.shape_cast %17 : vector<1x8x8x4xbf16> to vector<8x8x4xbf16>
    %19 = vector.shape_cast %18 : vector<8x8x4xbf16> to vector<64x4xbf16>
    %c2 = arith.constant 2 : index
    %c0_21 = arith.constant 0 : index
    %c0_22 = arith.constant 0 : index
    %20 = vector.load %arg2[%c2, %c0_21, %c0_22] : memref<9x4x128xbf16, #tpu.memory_space<vmem>>, vector<1x4x128xbf16>
    %21 = vector.shape_cast %20 : vector<1x4x128xbf16> to vector<4x128xbf16>
    %cst_23 = arith.constant dense<0.000000e+00> : vector<64x128xf32>
    %22 = tpu.matmul %19, %21, %cst_23 {dimension_numbers = #tpu.dot_dimension_numbers<[1], [0], [0], [1], [0, 0, 1, 1], [], []>} : vector<64x4xbf16>, vector<4x128xbf16>, vector<64x128xf32> -> vector<64x128xf32>
    %23 = arith.addf %16, %22 : vector<64x128xf32>
    %c0_24 = arith.constant 0 : index
    %c18 = arith.constant 18 : index
    %c0_25 = arith.constant 0 : index
    %c0_26 = arith.constant 0 : index
    %24 = vector.load %arg1[%c0_24, %c18, %c0_25, %c0_26] : memref<1x36x9x4xbf16, #tpu.memory_space<vmem>>, vector<1x8x8x4xbf16>
    %25 = vector.shape_cast %24 : vector<1x8x8x4xbf16> to vector<8x8x4xbf16>
    %26 = vector.shape_cast %25 : vector<8x8x4xbf16> to vector<64x4xbf16>
    %c3 = arith.constant 3 : index
    %c0_27 = arith.constant 0 : index
    %c0_28 = arith.constant 0 : index
    %27 = vector.load %arg2[%c3, %c0_27, %c0_28] : memref<9x4x128xbf16, #tpu.memory_space<vmem>>, vector<1x4x128xbf16>
    %28 = vector.shape_cast %27 : vector<1x4x128xbf16> to vector<4x128xbf16>
    %cst_29 = arith.constant dense<0.000000e+00> : vector<64x128xf32>
    %29 = tpu.matmul %26, %28, %cst_29 {dimension_numbers = #tpu.dot_dimension_numbers<[1], [0], [0], [1], [0, 0, 1, 1], [], []>} : vector<64x4xbf16>, vector<4x128xbf16>, vector<64x128xf32> -> vector<64x128xf32>
    %30 = arith.addf %23, %29 : vector<64x128xf32>
    %c0_30 = arith.constant 0 : index
    %c27 = arith.constant 27 : index
    %c0_31 = arith.constant 0 : index
    %c0_32 = arith.constant 0 : index
    %31 = vector.load %arg1[%c0_30, %c27, %c0_31, %c0_32] : memref<1x36x9x4xbf16, #tpu.memory_space<vmem>>, vector<1x8x8x4xbf16>
    %32 = vector.shape_cast %31 : vector<1x8x8x4xbf16> to vector<8x8x4xbf16>
    %33 = vector.shape_cast %32 : vector<8x8x4xbf16> to vector<64x4xbf16>
    %c4 = arith.constant 4 : index
    %c0_33 = arith.constant 0 : index
    %c0_34 = arith.constant 0 : index
    %34 = vector.load %arg2[%c4, %c0_33, %c0_34] : memref<9x4x128xbf16, #tpu.memory_space<vmem>>, vector<1x4x128xbf16>
    %35 = vector.shape_cast %34 : vector<1x4x128xbf16> to vector<4x128xbf16>
    %cst_35 = arith.constant dense<0.000000e+00> : vector<64x128xf32>
    %36 = tpu.matmul %33, %35, %cst_35 {dimension_numbers = #tpu.dot_dimension_numbers<[1], [0], [0], [1], [0, 0, 1, 1], [], []>} : vector<64x4xbf16>, vector<4x128xbf16>, vector<64x128xf32> -> vector<64x128xf32>
    %37 = arith.addf %30, %36 : vector<64x128xf32>
    %c0_36 = arith.constant 0 : index
    %c18_37 = arith.constant 18 : index
    %c1_38 = arith.constant 1 : index
    %c0_39 = arith.constant 0 : index
    %38 = vector.load %arg1[%c0_36, %c18_37, %c1_38, %c0_39] : memref<1x36x9x4xbf16, #tpu.memory_space<vmem>>, vector<1x8x8x4xbf16>
    %39 = vector.shape_cast %38 : vector<1x8x8x4xbf16> to vector<8x8x4xbf16>
    %40 = vector.shape_cast %39 : vector<8x8x4xbf16> to vector<64x4xbf16>
    %c5 = arith.constant 5 : index
    %c0_40 = arith.constant 0 : index
    %c0_41 = arith.constant 0 : index
    %41 = vector.load %arg2[%c5, %c0_40, %c0_41] : memref<9x4x128xbf16, #tpu.memory_space<vmem>>, vector<1x4x128xbf16>
    %42 = vector.shape_cast %41 : vector<1x4x128xbf16> to vector<4x128xbf16>
    %cst_42 = arith.constant dense<0.000000e+00> : vector<64x128xf32>
    %43 = tpu.matmul %40, %42, %cst_42 {dimension_numbers = #tpu.dot_dimension_numbers<[1], [0], [0], [1], [0, 0, 1, 1], [], []>} : vector<64x4xbf16>, vector<4x128xbf16>, vector<64x128xf32> -> vector<64x128xf32>
    %44 = arith.addf %37, %43 : vector<64x128xf32>
    %c0_43 = arith.constant 0 : index
    %c1_44 = arith.constant 1 : index
    %c0_45 = arith.constant 0 : index
    %c0_46 = arith.constant 0 : index
    %45 = vector.load %arg1[%c0_43, %c1_44, %c0_45, %c0_46] : memref<1x36x9x4xbf16, #tpu.memory_space<vmem>>, vector<1x8x8x4xbf16>
    %46 = vector.shape_cast %45 : vector<1x8x8x4xbf16> to vector<8x8x4xbf16>
    %47 = vector.shape_cast %46 : vector<8x8x4xbf16> to vector<64x4xbf16>
    %c6 = arith.constant 6 : index
    %c0_47 = arith.constant 0 : index
    %c0_48 = arith.constant 0 : index
    %48 = vector.load %arg2[%c6, %c0_47, %c0_48] : memref<9x4x128xbf16, #tpu.memory_space<vmem>>, vector<1x4x128xbf16>
    %49 = vector.shape_cast %48 : vector<1x4x128xbf16> to vector<4x128xbf16>
    %cst_49 = arith.constant dense<0.000000e+00> : vector<64x128xf32>
    %50 = tpu.matmul %47, %49, %cst_49 {dimension_numbers = #tpu.dot_dimension_numbers<[1], [0], [0], [1], [0, 0, 1, 1], [], []>} : vector<64x4xbf16>, vector<4x128xbf16>, vector<64x128xf32> -> vector<64x128xf32>
    %51 = arith.addf %44, %50 : vector<64x128xf32>
    %c0_50 = arith.constant 0 : index
    %c10 = arith.constant 10 : index
    %c0_51 = arith.constant 0 : index
    %c0_52 = arith.constant 0 : index
    %52 = vector.load %arg1[%c0_50, %c10, %c0_51, %c0_52] : memref<1x36x9x4xbf16, #tpu.memory_space<vmem>>, vector<1x8x8x4xbf16>
    %53 = vector.shape_cast %52 : vector<1x8x8x4xbf16> to vector<8x8x4xbf16>
    %54 = vector.shape_cast %53 : vector<8x8x4xbf16> to vector<64x4xbf16>
    %c7 = arith.constant 7 : index
    %c0_53 = arith.constant 0 : index
    %c0_54 = arith.constant 0 : index
    %55 = vector.load %arg2[%c7, %c0_53, %c0_54] : memref<9x4x128xbf16, #tpu.memory_space<vmem>>, vector<1x4x128xbf16>
    %56 = vector.shape_cast %55 : vector<1x4x128xbf16> to vector<4x128xbf16>
    %cst_55 = arith.constant dense<0.000000e+00> : vector<64x128xf32>
    %57 = tpu.matmul %54, %56, %cst_55 {dimension_numbers = #tpu.dot_dimension_numbers<[1], [0], [0], [1], [0, 0, 1, 1], [], []>} : vector<64x4xbf16>, vector<4x128xbf16>, vector<64x128xf32> -> vector<64x128xf32>
    %58 = arith.addf %51, %57 : vector<64x128xf32>
    %c0_56 = arith.constant 0 : index
    %c1_57 = arith.constant 1 : index
    %c1_58 = arith.constant 1 : index
    %c0_59 = arith.constant 0 : index
    %59 = vector.load %arg1[%c0_56, %c1_57, %c1_58, %c0_59] : memref<1x36x9x4xbf16, #tpu.memory_space<vmem>>, vector<1x8x8x4xbf16>
    %60 = vector.shape_cast %59 : vector<1x8x8x4xbf16> to vector<8x8x4xbf16>
    %61 = vector.shape_cast %60 : vector<8x8x4xbf16> to vector<64x4xbf16>
    %c8 = arith.constant 8 : index
    %c0_60 = arith.constant 0 : index
    %c0_61 = arith.constant 0 : index
    %62 = vector.load %arg2[%c8, %c0_60, %c0_61] : memref<9x4x128xbf16, #tpu.memory_space<vmem>>, vector<1x4x128xbf16>
    %63 = vector.shape_cast %62 : vector<1x4x128xbf16> to vector<4x128xbf16>
    %cst_62 = arith.constant dense<0.000000e+00> : vector<64x128xf32>
    %64 = tpu.matmul %61, %63, %cst_62 {dimension_numbers = #tpu.dot_dimension_numbers<[1], [0], [0], [1], [0, 0, 1, 1], [], []>} : vector<64x4xbf16>, vector<4x128xbf16>, vector<64x128xf32> -> vector<64x128xf32>
    %65 = arith.addf %58, %64 : vector<64x128xf32>
    %c0_63 = arith.constant 0 : index
    %c0_64 = arith.constant 0 : index
    %66 = vector.load %arg3[%c0_63, %c0_64] : memref<1x128xf32, #tpu.memory_space<vmem>>, vector<1x128xf32>
    %67 = vector.broadcast %66 : vector<1x128xf32> to vector<64x128xf32>
    %68 = arith.addf %65, %67 : vector<64x128xf32>
    %cst_65 = arith.constant 0.000000e+00 : f32
    %69 = vector.broadcast %cst_65 : f32 to vector<64x128xf32>
    %70 = arith.maximumf %68, %69 : vector<64x128xf32>
    %71 = arith.truncf %70 : vector<64x128xf32> to vector<64x128xbf16>
    %72 = vector.shape_cast %71 : vector<64x128xbf16> to vector<8x8x128xbf16>
    %c1_66 = arith.constant 1 : index
    %c1_67 = arith.constant 1 : index
    %c0_68 = arith.constant 0 : index
    %73 = vector.load %arg9[%c1_66, %c1_67, %c0_68] : memref<10x10x128xbf16, #tpu.memory_space<vmem>>, vector<8x8x128xbf16>
    tpu.vector_store %arg9[%c1_66, %c1_67, %c0_68], %72 {strides = array<i32>} : memref<10x10x128xbf16, #tpu.memory_space<vmem>>, vector<8x8x128xbf16>,
    %c0_69 = arith.constant 0 : index
    %c27_70 = arith.constant 27 : index
    %c0_71 = arith.constant 0 : index
    %c0_72 = arith.constant 0 : index
    %74 = vector.load %arg1[%c0_69, %c27_70, %c0_71, %c0_72] : memref<1x36x9x4xbf16, #tpu.memory_space<vmem>>, vector<1x8x8x4xbf16>
    %75 = vector.shape_cast %74 : vector<1x8x8x4xbf16> to vector<8x8x4xbf16>
    %76 = vector.shape_cast %75 : vector<8x8x4xbf16> to vector<64x4xbf16>
    %c0_73 = arith.constant 0 : index
    %c0_74 = arith.constant 0 : index
    %77 = vector.load %arg6[%c0_73, %c0_74] : memref<4x128xbf16, #tpu.memory_space<vmem>>, vector<4x128xbf16>
    %cst_75 = arith.constant dense<0.000000e+00> : vector<64x128xf32>
    %78 = tpu.matmul %76, %77, %cst_75 {dimension_numbers = #tpu.dot_dimension_numbers<[1], [0], [0], [1], [0, 0, 1, 1], [], []>} : vector<64x4xbf16>, vector<4x128xbf16>, vector<64x128xf32> -> vector<64x128xf32>
    %c0_76 = arith.constant 0 : index
    %c0_77 = arith.constant 0 : index
    %79 = vector.load %arg7[%c0_76, %c0_77] : memref<1x128xf32, #tpu.memory_space<vmem>>, vector<1x128xf32>
    %80 = vector.broadcast %79 : vector<1x128xf32> to vector<64x128xf32>
    %81 = arith.addf %78, %80 : vector<64x128xf32>
    %c0_78 = arith.constant 0 : index
    %c0_79 = arith.constant 0 : index
    %c0_80 = arith.constant 0 : index
    %82 = vector.load %arg9[%c0_78, %c0_79, %c0_80] : memref<10x10x128xbf16, #tpu.memory_space<vmem>>, vector<8x8x128xbf16>
    %83 = vector.shape_cast %82 : vector<8x8x128xbf16> to vector<64x128xbf16>
    %c0_81 = arith.constant 0 : index
    %c0_82 = arith.constant 0 : index
    %c0_83 = arith.constant 0 : index
    %84 = vector.load %arg4[%c0_81, %c0_82, %c0_83] : memref<9x128x128xbf16, #tpu.memory_space<vmem>>, vector<1x128x128xbf16>
    %85 = vector.shape_cast %84 : vector<1x128x128xbf16> to vector<128x128xbf16>
    %cst_84 = arith.constant dense<0.000000e+00> : vector<64x128xf32>
    %86 = tpu.matmul %83, %85, %cst_84 {dimension_numbers = #tpu.dot_dimension_numbers<[1], [0], [0], [1], [0, 0, 1, 1], [], []>} : vector<64x128xbf16>, vector<128x128xbf16>, vector<64x128xf32> -> vector<64x128xf32>
    %87 = arith.addf %81, %86 : vector<64x128xf32>
    %c0_85 = arith.constant 0 : index
    %c1_86 = arith.constant 1 : index
    %c0_87 = arith.constant 0 : index
    %88 = vector.load %arg9[%c0_85, %c1_86, %c0_87] : memref<10x10x128xbf16, #tpu.memory_space<vmem>>, vector<8x8x128xbf16>
    %89 = vector.shape_cast %88 : vector<8x8x128xbf16> to vector<64x128xbf16>
    %c1_88 = arith.constant 1 : index
    %c0_89 = arith.constant 0 : index
    %c0_90 = arith.constant 0 : index
    %90 = vector.load %arg4[%c1_88, %c0_89, %c0_90] : memref<9x128x128xbf16, #tpu.memory_space<vmem>>, vector<1x128x128xbf16>
    %91 = vector.shape_cast %90 : vector<1x128x128xbf16> to vector<128x128xbf16>
    %cst_91 = arith.constant dense<0.000000e+00> : vector<64x128xf32>
    %92 = tpu.matmul %89, %91, %cst_91 {dimension_numbers = #tpu.dot_dimension_numbers<[1], [0], [0], [1], [0, 0, 1, 1], [], []>} : vector<64x128xbf16>, vector<128x128xbf16>, vector<64x128xf32> -> vector<64x128xf32>
    %93 = arith.addf %87, %92 : vector<64x128xf32>
    %c0_92 = arith.constant 0 : index
    %c2_93 = arith.constant 2 : index
    %c0_94 = arith.constant 0 : index
    %94 = vector.load %arg9[%c0_92, %c2_93, %c0_94] : memref<10x10x128xbf16, #tpu.memory_space<vmem>>, vector<8x8x128xbf16>
    %95 = vector.shape_cast %94 : vector<8x8x128xbf16> to vector<64x128xbf16>
    %c2_95 = arith.constant 2 : index
    %c0_96 = arith.constant 0 : index
    %c0_97 = arith.constant 0 : index
    %96 = vector.load %arg4[%c2_95, %c0_96, %c0_97] : memref<9x128x128xbf16, #tpu.memory_space<vmem>>, vector<1x128x128xbf16>
    %97 = vector.shape_cast %96 : vector<1x128x128xbf16> to vector<128x128xbf16>
    %cst_98 = arith.constant dense<0.000000e+00> : vector<64x128xf32>
    %98 = tpu.matmul %95, %97, %cst_98 {dimension_numbers = #tpu.dot_dimension_numbers<[1], [0], [0], [1], [0, 0, 1, 1], [], []>} : vector<64x128xbf16>, vector<128x128xbf16>, vector<64x128xf32> -> vector<64x128xf32>
    %99 = arith.addf %93, %98 : vector<64x128xf32>
    %c1_99 = arith.constant 1 : index
    %c0_100 = arith.constant 0 : index
    %c0_101 = arith.constant 0 : index
    %100 = vector.load %arg9[%c1_99, %c0_100, %c0_101] : memref<10x10x128xbf16, #tpu.memory_space<vmem>>, vector<8x8x128xbf16>
    %101 = vector.shape_cast %100 : vector<8x8x128xbf16> to vector<64x128xbf16>
    %c3_102 = arith.constant 3 : index
    %c0_103 = arith.constant 0 : index
    %c0_104 = arith.constant 0 : index
    %102 = vector.load %arg4[%c3_102, %c0_103, %c0_104] : memref<9x128x128xbf16, #tpu.memory_space<vmem>>, vector<1x128x128xbf16>
    %103 = vector.shape_cast %102 : vector<1x128x128xbf16> to vector<128x128xbf16>
    %cst_105 = arith.constant dense<0.000000e+00> : vector<64x128xf32>
    %104 = tpu.matmul %101, %103, %cst_105 {dimension_numbers = #tpu.dot_dimension_numbers<[1], [0], [0], [1], [0, 0, 1, 1], [], []>} : vector<64x128xbf16>, vector<128x128xbf16>, vector<64x128xf32> -> vector<64x128xf32>
    %105 = arith.addf %99, %104 : vector<64x128xf32>
    %c1_106 = arith.constant 1 : index
    %c1_107 = arith.constant 1 : index
    %c0_108 = arith.constant 0 : index
    %106 = vector.load %arg9[%c1_106, %c1_107, %c0_108] : memref<10x10x128xbf16, #tpu.memory_space<vmem>>, vector<8x8x128xbf16>
    %107 = vector.shape_cast %106 : vector<8x8x128xbf16> to vector<64x128xbf16>
    %c4_109 = arith.constant 4 : index
    %c0_110 = arith.constant 0 : index
    %c0_111 = arith.constant 0 : index
    %108 = vector.load %arg4[%c4_109, %c0_110, %c0_111] : memref<9x128x128xbf16, #tpu.memory_space<vmem>>, vector<1x128x128xbf16>
    %109 = vector.shape_cast %108 : vector<1x128x128xbf16> to vector<128x128xbf16>
    %cst_112 = arith.constant dense<0.000000e+00> : vector<64x128xf32>
    %110 = tpu.matmul %107, %109, %cst_112 {dimension_numbers = #tpu.dot_dimension_numbers<[1], [0], [0], [1], [0, 0, 1, 1], [], []>} : vector<64x128xbf16>, vector<128x128xbf16>, vector<64x128xf32> -> vector<64x128xf32>
    %111 = arith.addf %105, %110 : vector<64x128xf32>
    %c1_113 = arith.constant 1 : index
    %c2_114 = arith.constant 2 : index
    %c0_115 = arith.constant 0 : index
    %112 = vector.load %arg9[%c1_113, %c2_114, %c0_115] : memref<10x10x128xbf16, #tpu.memory_space<vmem>>, vector<8x8x128xbf16>
    %113 = vector.shape_cast %112 : vector<8x8x128xbf16> to vector<64x128xbf16>
    %c5_116 = arith.constant 5 : index
    %c0_117 = arith.constant 0 : index
    %c0_118 = arith.constant 0 : index
    %114 = vector.load %arg4[%c5_116, %c0_117, %c0_118] : memref<9x128x128xbf16, #tpu.memory_space<vmem>>, vector<1x128x128xbf16>
    %115 = vector.shape_cast %114 : vector<1x128x128xbf16> to vector<128x128xbf16>
    %cst_119 = arith.constant dense<0.000000e+00> : vector<64x128xf32>
    %116 = tpu.matmul %113, %115, %cst_119 {dimension_numbers = #tpu.dot_dimension_numbers<[1], [0], [0], [1], [0, 0, 1, 1], [], []>} : vector<64x128xbf16>, vector<128x128xbf16>, vector<64x128xf32> -> vector<64x128xf32>
    %117 = arith.addf %111, %116 : vector<64x128xf32>
    %c2_120 = arith.constant 2 : index
    %c0_121 = arith.constant 0 : index
    %c0_122 = arith.constant 0 : index
    %118 = vector.load %arg9[%c2_120, %c0_121, %c0_122] : memref<10x10x128xbf16, #tpu.memory_space<vmem>>, vector<8x8x128xbf16>
    %119 = vector.shape_cast %118 : vector<8x8x128xbf16> to vector<64x128xbf16>
    %c6_123 = arith.constant 6 : index
    %c0_124 = arith.constant 0 : index
    %c0_125 = arith.constant 0 : index
    %120 = vector.load %arg4[%c6_123, %c0_124, %c0_125] : memref<9x128x128xbf16, #tpu.memory_space<vmem>>, vector<1x128x128xbf16>
    %121 = vector.shape_cast %120 : vector<1x128x128xbf16> to vector<128x128xbf16>
    %cst_126 = arith.constant dense<0.000000e+00> : vector<64x128xf32>
    %122 = tpu.matmul %119, %121, %cst_126 {dimension_numbers = #tpu.dot_dimension_numbers<[1], [0], [0], [1], [0, 0, 1, 1], [], []>} : vector<64x128xbf16>, vector<128x128xbf16>, vector<64x128xf32> -> vector<64x128xf32>
    %123 = arith.addf %117, %122 : vector<64x128xf32>
    %c2_127 = arith.constant 2 : index
    %c1_128 = arith.constant 1 : index
    %c0_129 = arith.constant 0 : index
    %124 = vector.load %arg9[%c2_127, %c1_128, %c0_129] : memref<10x10x128xbf16, #tpu.memory_space<vmem>>, vector<8x8x128xbf16>
    %125 = vector.shape_cast %124 : vector<8x8x128xbf16> to vector<64x128xbf16>
    %c7_130 = arith.constant 7 : index
    %c0_131 = arith.constant 0 : index
    %c0_132 = arith.constant 0 : index
    %126 = vector.load %arg4[%c7_130, %c0_131, %c0_132] : memref<9x128x128xbf16, #tpu.memory_space<vmem>>, vector<1x128x128xbf16>
    %127 = vector.shape_cast %126 : vector<1x128x128xbf16> to vector<128x128xbf16>
    %cst_133 = arith.constant dense<0.000000e+00> : vector<64x128xf32>
    %128 = tpu.matmul %125, %127, %cst_133 {dimension_numbers = #tpu.dot_dimension_numbers<[1], [0], [0], [1], [0, 0, 1, 1], [], []>} : vector<64x128xbf16>, vector<128x128xbf16>, vector<64x128xf32> -> vector<64x128xf32>
    %129 = arith.addf %123, %128 : vector<64x128xf32>
    %c2_134 = arith.constant 2 : index
    %c2_135 = arith.constant 2 : index
    %c0_136 = arith.constant 0 : index
    %130 = vector.load %arg9[%c2_134, %c2_135, %c0_136] : memref<10x10x128xbf16, #tpu.memory_space<vmem>>, vector<8x8x128xbf16>
    %131 = vector.shape_cast %130 : vector<8x8x128xbf16> to vector<64x128xbf16>
    %c8_137 = arith.constant 8 : index
    %c0_138 = arith.constant 0 : index
    %c0_139 = arith.constant 0 : index
    %132 = vector.load %arg4[%c8_137, %c0_138, %c0_139] : memref<9x128x128xbf16, #tpu.memory_space<vmem>>, vector<1x128x128xbf16>
    %133 = vector.shape_cast %132 : vector<1x128x128xbf16> to vector<128x128xbf16>
    %cst_140 = arith.constant dense<0.000000e+00> : vector<64x128xf32>
    %134 = tpu.matmul %131, %133, %cst_140 {dimension_numbers = #tpu.dot_dimension_numbers<[1], [0], [0], [1], [0, 0, 1, 1], [], []>} : vector<64x128xbf16>, vector<128x128xbf16>, vector<64x128xf32> -> vector<64x128xf32>
    %135 = arith.addf %129, %134 : vector<64x128xf32>
    %c0_141 = arith.constant 0 : index
    %c0_142 = arith.constant 0 : index
    %136 = vector.load %arg5[%c0_141, %c0_142] : memref<1x128xf32, #tpu.memory_space<vmem>>, vector<1x128xf32>
    %137 = vector.broadcast %136 : vector<1x128xf32> to vector<64x128xf32>
    %138 = arith.addf %135, %137 : vector<64x128xf32>
    %cst_143 = arith.constant 0.000000e+00 : f32
    %139 = vector.broadcast %cst_143 : f32 to vector<64x128xf32>
    %140 = arith.maximumf %138, %139 : vector<64x128xf32>
    %141 = arith.truncf %140 : vector<64x128xf32> to vector<64x128xbf16>
    %c0_144 = arith.constant 0 : index
    %c0_145 = arith.constant 0 : index
    %c0_146 = arith.constant 0 : index
    %142 = vector.load %arg8[%c0_144, %c0_145, %c0_146] : memref<1x64x128xbf16, #tpu.memory_space<vmem>>, vector<1x64x128xbf16>
    %143 = vector.shape_cast %142 : vector<1x64x128xbf16> to vector<64x128xbf16>
    %144 = vector.shape_cast %141 : vector<64x128xbf16> to vector<1x64x128xbf16>
    tpu.vector_store %arg8[%c0_144, %c0_145, %c0_146], %144 {strides = array<i32>} : memref<1x64x128xbf16, #tpu.memory_space<vmem>>, vector<1x64x128xbf16>,
    return
  }
  func.func @transform_0(%arg0: i32) -> (i32, i32, i32, i32) {
    %c0_i32 = arith.constant 0 : i32
    %c0_i32_0 = arith.constant 0 : i32
    %c0_i32_1 = arith.constant 0 : i32
    %c0_i32_2 = arith.constant 0 : i32
    return %arg0, %c0_i32, %c0_i32_0, %c0_i32_1 : i32, i32, i32, i32
  }
  func.func @transform_1(%arg0: i32) -> (i32, i32, i32) {
    %c0_i32 = arith.constant 0 : i32
    %c0_i32_0 = arith.constant 0 : i32
    %c0_i32_1 = arith.constant 0 : i32
    %c0_i32_2 = arith.constant 0 : i32
    return %c0_i32, %c0_i32_0, %c0_i32_1 : i32, i32, i32
  }
  func.func @transform_2(%arg0: i32) -> (i32, i32) {
    %c0_i32 = arith.constant 0 : i32
    %c0_i32_0 = arith.constant 0 : i32
    %c0_i32_1 = arith.constant 0 : i32
    return %c0_i32, %c0_i32_0 : i32, i32
  }
  func.func @transform_3(%arg0: i32) -> (i32, i32, i32) {
    %c0_i32 = arith.constant 0 : i32
    %c0_i32_0 = arith.constant 0 : i32
    %c0_i32_1 = arith.constant 0 : i32
    %c0_i32_2 = arith.constant 0 : i32
    return %c0_i32, %c0_i32_0, %c0_i32_1 : i32, i32, i32
  }
  func.func @transform_4(%arg0: i32) -> (i32, i32) {
    %c0_i32 = arith.constant 0 : i32
    %c0_i32_0 = arith.constant 0 : i32
    %c0_i32_1 = arith.constant 0 : i32
    return %c0_i32, %c0_i32_0 : i32, i32
  }
  func.func @transform_5(%arg0: i32) -> (i32, i32) {
    %c0_i32 = arith.constant 0 : i32
    %c0_i32_0 = arith.constant 0 : i32
    %c0_i32_1 = arith.constant 0 : i32
    return %c0_i32, %c0_i32_0 : i32, i32
  }
  func.func @transform_6(%arg0: i32) -> (i32, i32) {
    %c0_i32 = arith.constant 0 : i32
    %c0_i32_0 = arith.constant 0 : i32
    %c0_i32_1 = arith.constant 0 : i32
    return %c0_i32, %c0_i32_0 : i32, i32
  }
  func.func @transform_7(%arg0: i32) -> (i32, i32, i32) {
    %c0_i32 = arith.constant 0 : i32
    %c0_i32_0 = arith.constant 0 : i32
    %c0_i32_1 = arith.constant 0 : i32
    return %arg0, %c0_i32, %c0_i32_0 : i32, i32, i32
  }
}

</mosaic_0001>

<llo_original>
// kernel: resnet_block_forward.1
$region0: #{resnet_block_forward.1}
  #allocation0 [shape = 'u32[]', space=smem, size = 0x4, offset = 0x4, fixed_abs, tag = 'smem constant byte address 0x4 - core index']
  #allocation1 [shape = 'u32[72,128]{1,0:T(1,128)}', space=vmem, size = 0x9000, scoped, tag = 'internal scratch']
  #allocation2 [shape = 'bf16[10,10,128]{2,1,0:T(8,128)(2,1)}', space=vmem, size = 0xa000, scoped, tag = 'scratch operand']
  %s0 = inlined_call_operand.vmem [shape: bf16[2,36,9,4], index: 0, kind: input, shape index: {}]
  %s1 = inlined_call_operand.vmem [shape: bf16[9,4,128], index: 1, kind: input, shape index: {}]
  %s2 = inlined_call_operand.vmem [shape: f32[1,128], index: 2, kind: input, shape index: {}]
  %s3 = inlined_call_operand.vmem [shape: bf16[9,128,128], index: 3, kind: input, shape index: {}]
  %s4 = inlined_call_operand.vmem [shape: f32[1,128], index: 4, kind: input, shape index: {}]
  %s5 = inlined_call_operand.vmem [shape: bf16[4,128], index: 5, kind: input, shape index: {}]
  %s6 = inlined_call_operand.vmem [shape: f32[1,128], index: 6, kind: input, shape index: {}]
  %s7 = inlined_call_operand.vmem [shape: bf16[2,64,128], index: 7, kind: output, shape index: {}]
  %s8 = sld [smem:[#allocation0]]
  $region61: #{resnet_block_forward.1} parent=0
    _
  %s10 = ssub.s32 1, %s8
  %s11 = scalar_select 0, %s10, %s8
  loop: start=0, step=1, limit=4
  $region2: #{resnet_block_forward.1} parent=0 // loop_pre_header
    _
  $region3: #{resnet_block_forward.1} parent=0 // loop_header
    %s13 = sphi 0, %s17
    %p14 = scmp.ge.s32.totalorder %s13, 4
    %s23 = sphi 0, %s25
    %s26 = sphi 0, %s23
    %s27 = sphi 0, %s26
    %s43 = sphi 0, %s27
    %s47 = sphi 0, %s47
    %s49 = sphi 0, %s47
    %s50 = sphi 0, %s49
    %s64 = sphi 0, %s50
    %s68 = sphi 0, %s68
    %s70 = sphi 0, %s68
    %s71 = sphi 0, %s70
    %s85 = sphi 0, %s71
    %s89 = sphi 0, %s89
    %s91 = sphi 0, %s89
    %s92 = sphi 0, %s91
    %s106 = sphi 0, %s92
    %s110 = sphi 0, %s110
    %s112 = sphi 0, %s110
    %s113 = sphi 0, %s112
    %s127 = sphi 0, %s113
    %s131 = sphi 0, %s131
    %s133 = sphi 0, %s131
    %s134 = sphi 0, %s133
    %s148 = sphi 0, %s134
    %s152 = sphi 0, %s152
    %s154 = sphi 0, %s152
    %s155 = sphi 0, %s154
    %s169 = sphi 0, %s155
    %s175 = sphi 0, %s177
    %s178 = sphi 0, %s175
    %s179 = sphi 0, %s178
    %s195 = sphi 0, %s179
  $region4: #{resnet_block_forward.1} parent=0 // loop_header_branch
    %16 = sbr.rel (%p14) target = $region8
  $region5: #{resnet_block_forward.1} parent=0 // loop_body
    %s18 = ssub.s32 %s13, 1
    %s19 = ssub.s32 %s13, 2
    %s20 = sadd.s32 %s13, 1
    %s21 = ssub.s32 %s13, %s20
    %p22 = scmp.eq.s32.totalorder %s21, 0
    %s24 = sadd.s32 %s23, 1
    %s25 = scalar_select %p22, %s23, %s24
    %p28 = pneg %p22
    %p29 = scmp.eq.s32.totalorder %s13, 1
    %p30 = por %p28, %p29
    %p31 = scmp.ne.s32.totalorder %s23, %s26
    %p32 = scmp.eq.s32.totalorder %s13, 0
    %p33 = por %p31, %p32
    %p34 = scmp.ne.s32.totalorder %s23, %s26
    %p35 = scmp.eq.s32.totalorder %s18, 1
    %p36 = por %p34, %p35
    %p37 = scmp.ne.s32.totalorder %s26, %s27
    %p38 = scmp.eq.s32.totalorder %s18, 0
    %p39 = por %p37, %p38
    %p40 = scmp.ne.s32.totalorder %s26, %s27
    %p41 = scmp.eq.s32.totalorder %s19, 1
    %p42 = por %p40, %p41
    %p44 = scmp.ne.s32.totalorder %s27, %s43
    %p45 = scmp.eq.s32.totalorder %s19, 0
    %p46 = por %p44, %p45
    %s48 = sadd.s32 %s47, 1
    %p51 = scmp.eq.s32.totalorder %s13, 1
    %p52 = scmp.ne.s32.totalorder %s47, %s49
    %p53 = scmp.eq.s32.totalorder %s13, 0
    %p54 = por %p52, %p53
    %p55 = scmp.ne.s32.totalorder %s47, %s49
    %p56 = scmp.eq.s32.totalorder %s18, 1
    %p57 = por %p55, %p56
    %p58 = scmp.ne.s32.totalorder %s49, %s50
    %p59 = scmp.eq.s32.totalorder %s18, 0
    %p60 = por %p58, %p59
    %p61 = scmp.ne.s32.totalorder %s49, %s50
    %p62 = scmp.eq.s32.totalorder %s19, 1
    %p63 = por %p61, %p62
    %p65 = scmp.ne.s32.totalorder %s50, %s64
    %p66 = scmp.eq.s32.totalorder %s19, 0
    %p67 = por %p65, %p66
    %s69 = sadd.s32 %s68, 1
    %p72 = scmp.eq.s32.totalorder %s13, 1
    %p73 = scmp.ne.s32.totalorder %s68, %s70
    %p74 = scmp.eq.s32.totalorder %s13, 0
    %p75 = por %p73, %p74
    %p76 = scmp.ne.s32.totalorder %s68, %s70
    %p77 = scmp.eq.s32.totalorder %s18, 1
    %p78 = por %p76, %p77
    %p79 = scmp.ne.s32.totalorder %s70, %s71
    %p80 = scmp.eq.s32.totalorder %s18, 0
    %p81 = por %p79, %p80
    %p82 = scmp.ne.s32.totalorder %s70, %s71
    %p83 = scmp.eq.s32.totalorder %s19, 1
    %p84 = por %p82, %p83
    %p86 = scmp.ne.s32.totalorder %s71, %s85
    %p87 = scmp.eq.s32.totalorder %s19, 0
    %p88 = por %p86, %p87
    %s90 = sadd.s32 %s89, 1
    %p93 = scmp.eq.s32.totalorder %s13, 1
    %p94 = scmp.ne.s32.totalorder %s89, %s91
    %p95 = scmp.eq.s32.totalorder %s13, 0
    %p96 = por %p94, %p95
    %p97 = scmp.ne.s32.totalorder %s89, %s91
    %p98 = scmp.eq.s32.totalorder %s18, 1
    %p99 = por %p97, %p98
    %p100 = scmp.ne.s32.totalorder %s91, %s92
    %p101 = scmp.eq.s32.totalorder %s18, 0
    %p102 = por %p100, %p101
    %p103 = scmp.ne.s32.totalorder %s91, %s92
    %p104 = scmp.eq.s32.totalorder %s19, 1
    %p105 = por %p103, %p104
    %p107 = scmp.ne.s32.totalorder %s92, %s106
    %p108 = scmp.eq.s32.totalorder %s19, 0
    %p109 = por %p107, %p108
    %s111 = sadd.s32 %s110, 1
    %p114 = scmp.eq.s32.totalorder %s13, 1
    %p115 = scmp.ne.s32.totalorder %s110, %s112
    %p116 = scmp.eq.s32.totalorder %s13, 0
    %p117 = por %p115, %p116
    %p118 = scmp.ne.s32.totalorder %s110, %s112
    %p119 = scmp.eq.s32.totalorder %s18, 1
    %p120 = por %p118, %p119
    %p121 = scmp.ne.s32.totalorder %s112, %s113
    %p122 = scmp.eq.s32.totalorder %s18, 0
    %p123 = por %p121, %p122
    %p124 = scmp.ne.s32.totalorder %s112, %s113
    %p125 = scmp.eq.s32.totalorder %s19, 1
    %p126 = por %p124, %p125
    %p128 = scmp.ne.s32.totalorder %s113, %s127
    %p129 = scmp.eq.s32.totalorder %s19, 0
    %p130 = por %p128, %p129
    %s132 = sadd.s32 %s131, 1
    %p135 = scmp.eq.s32.totalorder %s13, 1
    %p136 = scmp.ne.s32.totalorder %s131, %s133
    %p137 = scmp.eq.s32.totalorder %s13, 0
    %p138 = por %p136, %p137
    %p139 = scmp.ne.s32.totalorder %s131, %s133
    %p140 = scmp.eq.s32.totalorder %s18, 1
    %p141 = por %p139, %p140
    %p142 = scmp.ne.s32.totalorder %s133, %s134
    %p143 = scmp.eq.s32.totalorder %s18, 0
    %p144 = por %p142, %p143
    %p145 = scmp.ne.s32.totalorder %s133, %s134
    %p146 = scmp.eq.s32.totalorder %s19, 1
    %p147 = por %p145, %p146
    %p149 = scmp.ne.s32.totalorder %s134, %s148
    %p150 = scmp.eq.s32.totalorder %s19, 0
    %p151 = por %p149, %p150
    %s153 = sadd.s32 %s152, 1
    %p156 = scmp.eq.s32.totalorder %s13, 1
    %p157 = scmp.ne.s32.totalorder %s152, %s154
    %p158 = scmp.eq.s32.totalorder %s13, 0
    %p159 = por %p157, %p158
    %p160 = scmp.ne.s32.totalorder %s152, %s154
    %p161 = scmp.eq.s32.totalorder %s18, 1
    %p162 = por %p160, %p161
    %p163 = scmp.ne.s32.totalorder %s154, %s155
    %p164 = scmp.eq.s32.totalorder %s18, 0
    %p165 = por %p163, %p164
    %p166 = scmp.ne.s32.totalorder %s154, %s155
    %p167 = scmp.eq.s32.totalorder %s19, 1
    %p168 = por %p166, %p167
    %p170 = scmp.ne.s32.totalorder %s155, %s169
    %p171 = scmp.eq.s32.totalorder %s19, 0
    %p172 = por %p170, %p171
    %s173 = ssub.s32 %s13, %s20
    %p174 = scmp.eq.s32.totalorder %s173, 0
    %s176 = sadd.s32 %s175, 1
    %s177 = scalar_select %p174, %s175, %s176
    %p180 = pneg %p174
    %p181 = scmp.eq.s32.totalorder %s13, 1
    %p182 = por %p180, %p181
    %p183 = scmp.ne.s32.totalorder %s175, %s178
    %p184 = scmp.eq.s32.totalorder %s13, 0
    %p185 = por %p183, %p184
    %p186 = scmp.ne.s32.totalorder %s175, %s178
    %p187 = scmp.eq.s32.totalorder %s18, 1
    %p188 = por %p186, %p187
    %p189 = scmp.ne.s32.totalorder %s178, %s179
    %p190 = scmp.eq.s32.totalorder %s18, 0
    %p191 = por %p189, %p190
    %p192 = scmp.ne.s32.totalorder %s178, %s179
    %p193 = scmp.eq.s32.totalorder %s19, 1
    %p194 = por %p192, %p193
    %p196 = scmp.ne.s32.totalorder %s179, %s195
    %p197 = scmp.eq.s32.totalorder %s19, 0
    %p198 = por %p196, %p197
    %p199 = scmp.le.s32.totalorder 1, %s13
    %p200 = scmp.lt.s32.totalorder %s13, 3
    %p201 = pnand %p199, %p200
    %p202 = pneg %p201
    // Predicated region
    $region9: #{resnet_block_forward.1} parent=5 // pred_check
      _
    $region10: #{resnet_block_forward.1} parent=5 // pred_check_branch
      %204 = sbr.rel (%p201) target = $region12
    $region11: #{resnet_block_forward.1} parent=5 // pred_region
      %s205 = ssub.s32 %s13, 1
      // Predicated region
      $region13: #{resnet_block_forward.1} parent=11 // pred_check
        %p206 = pneg %p60
      $region14: #{resnet_block_forward.1} parent=11 // pred_check_branch
        %208 = sbr.rel (%p206) target = $region16
      $region15: #{resnet_block_forward.1} parent=11 // pred_region
        _
      $region16: #{resnet_block_forward.1} parent=11 // pred_fallthru
        _
      // Predicated region
      $region17: #{resnet_block_forward.1} parent=11 // pred_check
        %p209 = pneg %p81
      $region18: #{resnet_block_forward.1} parent=11 // pred_check_branch
        %211 = sbr.rel (%p209) target = $region20
      $region19: #{resnet_block_forward.1} parent=11 // pred_region
        _
      $region20: #{resnet_block_forward.1} parent=11 // pred_fallthru
        _
      // Predicated region
      $region21: #{resnet_block_forward.1} parent=11 // pred_check
        %p212 = pneg %p102
      $region22: #{resnet_block_forward.1} parent=11 // pred_check_branch
        %214 = sbr.rel (%p212) target = $region24
      $region23: #{resnet_block_forward.1} parent=11 // pred_region
        _
      $region24: #{resnet_block_forward.1} parent=11 // pred_fallthru
        _
      // Predicated region
      $region25: #{resnet_block_forward.1} parent=11 // pred_check
        %p215 = pneg %p123
      $region26: #{resnet_block_forward.1} parent=11 // pred_check_branch
        %217 = sbr.rel (%p215) target = $region28
      $region27: #{resnet_block_forward.1} parent=11 // pred_region
        _
      $region28: #{resnet_block_forward.1} parent=11 // pred_fallthru
        _
      // Predicated region
      $region29: #{resnet_block_forward.1} parent=11 // pred_check
        %p218 = pneg %p144
      $region30: #{resnet_block_forward.1} parent=11 // pred_check_branch
        %220 = sbr.rel (%p218) target = $region32
      $region31: #{resnet_block_forward.1} parent=11 // pred_region
        _
      $region32: #{resnet_block_forward.1} parent=11 // pred_fallthru
        _
      // Predicated region
      $region33: #{resnet_block_forward.1} parent=11 // pred_check
        %p221 = pneg %p165
      $region34: #{resnet_block_forward.1} parent=11 // pred_check_branch
        %223 = sbr.rel (%p221) target = $region36
      $region35: #{resnet_block_forward.1} parent=11 // pred_region
        _
      $region36: #{resnet_block_forward.1} parent=11 // pred_fallthru
        _
    $region12: #{resnet_block_forward.1} parent=5 // pred_fallthru
      _
    %p224 = scmp.lt.s32.totalorder %s13, 2
    // Predicated region
    $region37: #{resnet_block_forward.1} parent=5 // pred_check
      %p225 = pneg %p224
    $region38: #{resnet_block_forward.1} parent=5 // pred_check_branch
      %227 = sbr.rel (%p225) target = $region40
    $region39: #{resnet_block_forward.1} parent=5 // pred_region
      // Predicated region
      $region41: #{resnet_block_forward.1} parent=39 // pred_check
        %p228 = pneg %p33
      $region42: #{resnet_block_forward.1} parent=39 // pred_check_branch
        %230 = sbr.rel (%p228) target = $region44
      $region43: #{resnet_block_forward.1} parent=39 // pred_region
        %p231 = scmp.lt.s32.totalorder %s13, 1
        %s232 = scalar_select %p231, %s13, 1
        %s233 = smul.addr %s232, 72
        %s234 = smul.addr %s233, 4
        %s235 = scalar_lea.vmem %s0, %s234
      $region44: #{resnet_block_forward.1} parent=39 // pred_fallthru
        _
    $region40: #{resnet_block_forward.1} parent=5 // pred_fallthru
      _
    %p236 = scmp.le.s32.totalorder 1, %s13
    %p237 = scmp.lt.s32.totalorder %s13, 3
    %p238 = pnand %p236, %p237
    %p239 = pneg %p238
    // Predicated region
    $region45: #{resnet_block_forward.1} parent=5 // pred_check
      _
    $region46: #{resnet_block_forward.1} parent=5 // pred_check_branch
      %241 = sbr.rel (%p238) target = $region48
    $region47: #{resnet_block_forward.1} parent=5 // pred_region
      %s242 = ssub.s32 %s13, 1
      %p243 = scmp.lt.s32.totalorder %s18, 1
      %s244 = scalar_select %p243, %s18, 1
      %s245 = smul.addr %s244, 72
      %s246 = smul.addr %s245, 4
      %s247 = scalar_lea.vmem %s0, %s246
      %p248 = pneg %p39
      %p249 = pneg %p36
      %p250 = pneg %p60
      %p251 = pneg %p57
      %p252 = pneg %p81
      %p253 = pneg %p78
      %p254 = pneg %p102
      %p255 = pneg %p99
      %p256 = pneg %p123
      %p257 = pneg %p120
      %p258 = pneg %p144
      %p259 = pneg %p141
      %p260 = pneg %p165
      %p261 = pneg %p162
      %p262 = pneg %p191
      %p263 = pneg %p188
      %p264 = scmp.lt.s32.totalorder %s18, 1
      %s265 = scalar_select %p264, %s18, 1
      %s266 = smul.addr %s265, 8
      %s267 = smul.addr %s266, 4
      %s268 = scalar_lea.vmem %s7, %s267
      %p269 = scmp.lt.s32.totalorder %s18, 1
      %s270 = scalar_select %p269, %s18, 1
      %s271 = smul.addr %s270, 72
      %s272 = smul.addr %s271, 4
      %s273 = scalar_lea.vmem %s0, %s272
      %p274 = scmp.lt.s32.totalorder %s18, 1
      %s275 = scalar_select %p274, %s18, 1
      %s276 = smul.addr %s275, 8
      %s277 = smul.addr %s276, 4
      %s278 = scalar_lea.vmem %s7, %s277
      %280 = vst [vmem:[#allocation2] sm:$0xf] 0
      %281 = vst [vmem:[#allocation2 + $0x4] sm:$0x1] 0
      %282 = vst [vmem:[#allocation2 + $0x8] sm:$0xf] 0
      %283 = vst [vmem:[#allocation2 + $0xc] sm:$0x1] 0
      %284 = vst [vmem:[#allocation2 + $0x10] sm:$0xf] 0
      %285 = vst [vmem:[#allocation2 + $0x14] sm:$0x1] 0
      %286 = vst [vmem:[#allocation2 + $0x18] sm:$0xf] 0
      %287 = vst [vmem:[#allocation2 + $0x1c] sm:$0x1] 0
      %288 = vst [vmem:[#allocation2 + $0x20] sm:$0xf] 0
      %289 = vst [vmem:[#allocation2 + $0x24] sm:$0x1] 0
      %290 = vst [vmem:[#allocation2 + $0x28] sm:$0xf] 0
      %291 = vst [vmem:[#allocation2 + $0x2c] sm:$0x1] 0
      %292 = vst [vmem:[#allocation2 + $0x30] sm:$0xf] 0
      %293 = vst [vmem:[#allocation2 + $0x34] sm:$0x1] 0
      %294 = vst [vmem:[#allocation2 + $0x38] sm:$0xf] 0
      %295 = vst [vmem:[#allocation2 + $0x3c] sm:$0x1] 0
      %296 = vst [vmem:[#allocation2 + $0x40] sm:$0xf] 0
      %297 = vst [vmem:[#allocation2 + $0x44] sm:$0x1] 0
      %298 = vst [vmem:[#allocation2 + $0x48] sm:$0xf] 0
      %299 = vst [vmem:[#allocation2 + $0x4c] sm:$0x1] 0
      %v300 = vld [vmem:[%s273] sm:$0xf]
      %v301 = vld [vmem:[%s273 + $0x8] sm:$0xf]
      %v302 = vld [vmem:[%s273 + $0x10] sm:$0xf]
      %v303 = vld [vmem:[%s273 + $0x18] sm:$0xf]
      %v304 = vld [vmem:[%s273 + $0x20] sm:$0xf]
      %v305 = vld [vmem:[%s273 + $0x28] sm:$0xf]
      %v306 = vld [vmem:[%s273 + $0x30] sm:$0xf]
      %v307 = vld [vmem:[%s273 + $0x38] sm:$0xf]
      %v308 = vld [vmem:[%s1] sm:$0x3]
      %s309 = scalar_lea.vmem %s273, 72
      %v310 = vld [vmem:[%s309] sm:$0xf]
      %v311 = vld [vmem:[%s309 + $0x8] sm:$0xf]
      %v312 = vld [vmem:[%s309 + $0x10] sm:$0xf]
      %v313 = vld [vmem:[%s309 + $0x18] sm:$0xf]
      %v314 = vld [vmem:[%s309 + $0x20] sm:$0xf]
      %v315 = vld [vmem:[%s309 + $0x28] sm:$0xf]
      %v316 = vld [vmem:[%s309 + $0x30] sm:$0xf]
      %v317 = vld [vmem:[%s309 + $0x38] sm:$0xf]
      %s318 = scalar_lea.vmem %s1, 2
      %v319 = vld [vmem:[%s318] sm:$0x3]
      %v328 = vunpack.c.l.b16 %v310
      %v329 = vunpack.c.l.b16 %v311
      %v330 = vunpack.c.l.b16 %v312
      %v331 = vunpack.c.l.b16 %v313
      %v332 = vunpack.c.l.b16 %v314
      %v333 = vunpack.c.l.b16 %v315
      %v334 = vunpack.c.l.b16 %v316
      %v335 = vunpack.c.l.b16 %v317
      %v336 = vpack.c.b16 %v329, %v328
      %v337 = vpack.c.b16 %v331, %v330
      %v338 = vpack.c.b16 %v333, %v332
      %v339 = vpack.c.b16 %v335, %v334
      %vm340 = vcmask 31744
      %v342 = vsel %vm340, %v336, 0
      %v345 = vsel %vm340, %v337, 0
      %v348 = vsel %vm340, %v338, 0
      %v351 = vsel %vm340, %v339, 0
      %vm353 = vcmask 1041408
      %v355 = vsel %vm353, %v319, 0
      %357 = vmatpush.bf16.msra.mxu0 0
      %358 = vmatpush.bf16.msra.mxu0 0
      %359 = vmatpush.bf16.msra.mxu0 0
      %360 = vmatpush.bf16.msra.mxu0 0
      %361 = vmatpush.bf16.msra.mxu0 0
      %362 = vmatpush.bf16.msra.mxu0 0
      %363 = vmatpush.bf16.msra.mxu0 0
      %364 = vmatpush.bf16.msra.mxu0 %v355
      %365 = vmatmul.bf16.gmra.mxu0 %v342
      %v366 = vpop.f32.mrf.mxu0
      %v367 = vadd.f32 0.0, %v366
      %v368 = vpop.f32.mrf.mxu0
      %v369 = vadd.f32 0.0, %v368
      %370 = vmatmul.bf16.gmra.mxu0 %v345
      %v371 = vpop.f32.mrf.mxu0
      %v372 = vadd.f32 0.0, %v371
      %v373 = vpop.f32.mrf.mxu0
      %v374 = vadd.f32 0.0, %v373
      %375 = vmatmul.bf16.gmra.mxu0 %v348
      %v376 = vpop.f32.mrf.mxu0
      %v377 = vadd.f32 0.0, %v376
      %v378 = vpop.f32.mrf.mxu0
      %v379 = vadd.f32 0.0, %v378
      %380 = vmatmul.bf16.gmra.mxu0 %v351
      %v381 = vpop.f32.mrf.mxu0
      %v382 = vadd.f32 0.0, %v381
      %v383 = vpop.f32.mrf.mxu0
      %v384 = vadd.f32 0.0, %v383
      %385 = vdwg.mxu0
      %v394 = vunpack.c.l.b16 %v300
      %v395 = vunpack.c.l.b16 %v301
      %v396 = vunpack.c.l.b16 %v302
      %v397 = vunpack.c.l.b16 %v303
      %v398 = vunpack.c.l.b16 %v304
      %v399 = vunpack.c.l.b16 %v305
      %v400 = vunpack.c.l.b16 %v306
      %v401 = vunpack.c.l.b16 %v307
      %v402 = vpack.c.b16 %v395, %v394
      %v403 = vpack.c.b16 %v397, %v396
      %v404 = vpack.c.b16 %v399, %v398
      %v405 = vpack.c.b16 %v401, %v400
      %v407 = vsel %vm340, %v402, 0
      %v410 = vsel %vm340, %v403, 0
      %v413 = vsel %vm340, %v404, 0
      %v416 = vsel %vm340, %v405, 0
      %v419 = vsel %vm353, %v308, 0
      %421 = vmatpush.bf16.msra.mxu0 0
      %422 = vmatpush.bf16.msra.mxu0 0
      %423 = vmatpush.bf16.msra.mxu0 0
      %424 = vmatpush.bf16.msra.mxu0 0
      %425 = vmatpush.bf16.msra.mxu0 0
      %426 = vmatpush.bf16.msra.mxu0 0
      %427 = vmatpush.bf16.msra.mxu0 0
      %428 = vmatpush.bf16.msra.mxu0 %v419
      %429 = vmatmul.bf16.gmra.mxu0 %v407
      %v430 = vpop.f32.mrf.mxu0
      %v431 = vadd.f32 %v367, %v430
      %v432 = vpop.f32.mrf.mxu0
      %v433 = vadd.f32 %v369, %v432
      %434 = vmatmul.bf16.gmra.mxu0 %v410
      %v435 = vpop.f32.mrf.mxu0
      %v436 = vadd.f32 %v372, %v435
      %v437 = vpop.f32.mrf.mxu0
      %v438 = vadd.f32 %v374, %v437
      %439 = vmatmul.bf16.gmra.mxu0 %v413
      %v440 = vpop.f32.mrf.mxu0
      %v441 = vadd.f32 %v377, %v440
      %v442 = vpop.f32.mrf.mxu0
      %v443 = vadd.f32 %v379, %v442
      %444 = vmatmul.bf16.gmra.mxu0 %v416
      %v445 = vpop.f32.mrf.mxu0
      %v446 = vadd.f32 %v382, %v445
      %v447 = vpop.f32.mrf.mxu0
      %v448 = vadd.f32 %v384, %v447
      %449 = vdwg.mxu0
      %v450 = vld [vmem:[%s273] sm:$0xf]
      %v451 = vld [vmem:[%s273 + $0x4] sm:$0x1]
      %v452 = vld [vmem:[%s273 + $0x8] sm:$0xf]
      %v453 = vld [vmem:[%s273 + $0xc] sm:$0x1]
      %v454 = vld [vmem:[%s273 + $0x10] sm:$0xf]
      %v455 = vld [vmem:[%s273 + $0x14] sm:$0x1]
      %v456 = vld [vmem:[%s273 + $0x18] sm:$0xf]
      %v457 = vld [vmem:[%s273 + $0x1c] sm:$0x1]
      %v458 = vld [vmem:[%s273 + $0x20] sm:$0xf]
      %v459 = vld [vmem:[%s273 + $0x24] sm:$0x1]
      %v460 = vld [vmem:[%s273 + $0x28] sm:$0xf]
      %v461 = vld [vmem:[%s273 + $0x2c] sm:$0x1]
      %v462 = vld [vmem:[%s273 + $0x30] sm:$0xf]
      %v463 = vld [vmem:[%s273 + $0x34] sm:$0x1]
      %v464 = vld [vmem:[%s273 + $0x38] sm:$0xf]
      %v465 = vld [vmem:[%s273 + $0x3c] sm:$0x1]
      %vm466 = vsmask.f32 3328
      %vm467 = vsmask.f32 7440
      %vm468 = vmor %vm466, %vm467
      %v470 = vshrl.u32 %v450, 16
      %v472 = vrot.slane %v470, 4
      %v473 = vshll.u32 %v450, 16
      %v475 = vrot.slane %v473, 5
      %v476 = vor.u32 %v472, %v475
      %v477 = vrot.slane %v476, 4
      %v479 = vshll.u32 %v451, 16
      %v481 = vrot.slane %v479, 5
      %v482 = vsel %vm468, %v477, %v481
      %v484 = vshrl.u32 %v452, 16
      %v486 = vrot.slane %v484, 4
      %v487 = vshll.u32 %v452, 16
      %v489 = vrot.slane %v487, 5
      %v490 = vor.u32 %v486, %v489
      %v491 = vrot.slane %v490, 4
      %v493 = vshll.u32 %v453, 16
      %v495 = vrot.slane %v493, 5
      %v496 = vsel %vm468, %v491, %v495
      %v498 = vshrl.u32 %v454, 16
      %v500 = vrot.slane %v498, 4
      %v501 = vshll.u32 %v454, 16
      %v503 = vrot.slane %v501, 5
      %v504 = vor.u32 %v500, %v503
      %v505 = vrot.slane %v504, 4
      %v507 = vshll.u32 %v455, 16
      %v509 = vrot.slane %v507, 5
      %v510 = vsel %vm468, %v505, %v509
      %v512 = vshrl.u32 %v456, 16
      %v514 = vrot.slane %v512, 4
      %v515 = vshll.u32 %v456, 16
      %v517 = vrot.slane %v515, 5
      %v518 = vor.u32 %v514, %v517
      %v519 = vrot.slane %v518, 4
      %v521 = vshll.u32 %v457, 16
      %v523 = vrot.slane %v521, 5
      %v524 = vsel %vm468, %v519, %v523
      %v526 = vshrl.u32 %v458, 16
      %v528 = vrot.slane %v526, 4
      %v529 = vshll.u32 %v458, 16
      %v531 = vrot.slane %v529, 5
      %v532 = vor.u32 %v528, %v531
      %v533 = vrot.slane %v532, 4
      %v535 = vshll.u32 %v459, 16
      %v537 = vrot.slane %v535, 5
      %v538 = vsel %vm468, %v533, %v537
      %v540 = vshrl.u32 %v460, 16
      %v542 = vrot.slane %v540, 4
      %v543 = vshll.u32 %v460, 16
      %v545 = vrot.slane %v543, 5
      %v546 = vor.u32 %v542, %v545
      %v547 = vrot.slane %v546, 4
      %v549 = vshll.u32 %v461, 16
      %v551 = vrot.slane %v549, 5
      %v552 = vsel %vm468, %v547, %v551
      %v554 = vshrl.u32 %v462, 16
      %v556 = vrot.slane %v554, 4
      %v557 = vshll.u32 %v462, 16
      %v559 = vrot.slane %v557, 5
      %v560 = vor.u32 %v556, %v559
      %v561 = vrot.slane %v560, 4
      %v563 = vshll.u32 %v463, 16
      %v565 = vrot.slane %v563, 5
      %v566 = vsel %vm468, %v561, %v565
      %v568 = vshrl.u32 %v464, 16
      %v570 = vrot.slane %v568, 4
      %v571 = vshll.u32 %v464, 16
      %v573 = vrot.slane %v571, 5
      %v574 = vor.u32 %v570, %v573
      %v575 = vrot.slane %v574, 4
      %v577 = vshll.u32 %v465, 16
      %v579 = vrot.slane %v577, 5
      %v580 = vsel %vm468, %v575, %v579
      %s581 = scalar_lea.vmem %s1, 4
      %v582 = vld [vmem:[%s581] sm:$0x3]
      %v583 = vunpack.c.l.b16 %v482
      %v584 = vunpack.c.l.b16 %v496
      %v585 = vunpack.c.l.b16 %v510
      %v586 = vunpack.c.l.b16 %v524
      %v587 = vunpack.c.l.b16 %v538
      %v588 = vunpack.c.l.b16 %v552
      %v589 = vunpack.c.l.b16 %v566
      %v590 = vunpack.c.l.b16 %v580
      %v591 = vpack.c.b16 %v584, %v583
      %v592 = vpack.c.b16 %v586, %v585
      %v593 = vpack.c.b16 %v588, %v587
      %v594 = vpack.c.b16 %v590, %v589
      %v596 = vsel %vm340, %v591, 0
      %v599 = vsel %vm340, %v592, 0
      %v602 = vsel %vm340, %v593, 0
      %v605 = vsel %vm340, %v594, 0
      %v608 = vsel %vm353, %v582, 0
      %610 = vmatpush.bf16.msra.mxu0 0
      %611 = vmatpush.bf16.msra.mxu0 0
      %612 = vmatpush.bf16.msra.mxu0 0
      %613 = vmatpush.bf16.msra.mxu0 0
      %614 = vmatpush.bf16.msra.mxu0 0
      %615 = vmatpush.bf16.msra.mxu0 0
      %616 = vmatpush.bf16.msra.mxu0 0
      %617 = vmatpush.bf16.msra.mxu0 %v608
      %618 = vmatmul.bf16.gmra.mxu0 %v596
      %v619 = vpop.f32.mrf.mxu0
      %v620 = vadd.f32 0.0, %v619
      %v621 = vpop.f32.mrf.mxu0
      %v622 = vadd.f32 0.0, %v621
      %623 = vmatmul.bf16.gmra.mxu0 %v599
      %v624 = vpop.f32.mrf.mxu0
      %v625 = vadd.f32 0.0, %v624
      %v626 = vpop.f32.mrf.mxu0
      %v627 = vadd.f32 0.0, %v626
      %628 = vmatmul.bf16.gmra.mxu0 %v602
      %v629 = vpop.f32.mrf.mxu0
      %v630 = vadd.f32 0.0, %v629
      %v631 = vpop.f32.mrf.mxu0
      %v632 = vadd.f32 0.0, %v631
      %633 = vmatmul.bf16.gmra.mxu0 %v605
      %v634 = vpop.f32.mrf.mxu0
      %v635 = vadd.f32 0.0, %v634
      %v636 = vpop.f32.mrf.mxu0
      %v637 = vadd.f32 0.0, %v636
      %638 = vdwg.mxu0
      %v639 = vadd.f32 %v431, %v620
      %v640 = vadd.f32 %v433, %v622
      %v641 = vadd.f32 %v436, %v625
      %v642 = vadd.f32 %v438, %v627
      %v643 = vadd.f32 %v441, %v630
      %v644 = vadd.f32 %v443, %v632
      %v645 = vadd.f32 %v446, %v635
      %v646 = vadd.f32 %v448, %v637
      %s647 = scalar_lea.vmem %s273, 144
      %v648 = vld [vmem:[%s647] sm:$0xf]
      %v649 = vld [vmem:[%s647 + $0x8] sm:$0xf]
      %v650 = vld [vmem:[%s647 + $0x10] sm:$0xf]
      %v651 = vld [vmem:[%s647 + $0x18] sm:$0xf]
      %v652 = vld [vmem:[%s647 + $0x20] sm:$0xf]
      %v653 = vld [vmem:[%s647 + $0x28] sm:$0xf]
      %v654 = vld [vmem:[%s647 + $0x30] sm:$0xf]
      %v655 = vld [vmem:[%s647 + $0x38] sm:$0xf]
      %s656 = scalar_lea.vmem %s1, 6
      %v657 = vld [vmem:[%s656] sm:$0x3]
      %v666 = vunpack.c.l.b16 %v648
      %v667 = vunpack.c.l.b16 %v649
      %v668 = vunpack.c.l.b16 %v650
      %v669 = vunpack.c.l.b16 %v651
      %v670 = vunpack.c.l.b16 %v652
      %v671 = vunpack.c.l.b16 %v653
      %v672 = vunpack.c.l.b16 %v654
      %v673 = vunpack.c.l.b16 %v655
      %v674 = vpack.c.b16 %v667, %v666
      %v675 = vpack.c.b16 %v669, %v668
      %v676 = vpack.c.b16 %v671, %v670
      %v677 = vpack.c.b16 %v673, %v672
      %v679 = vsel %vm340, %v674, 0
      %v682 = vsel %vm340, %v675, 0
      %v685 = vsel %vm340, %v676, 0
      %v688 = vsel %vm340, %v677, 0
      %v691 = vsel %vm353, %v657, 0
      %693 = vmatpush.bf16.msra.mxu0 0
      %694 = vmatpush.bf16.msra.mxu0 0
      %695 = vmatpush.bf16.msra.mxu0 0
      %696 = vmatpush.bf16.msra.mxu0 0
      %697 = vmatpush.bf16.msra.mxu0 0
      %698 = vmatpush.bf16.msra.mxu0 0
      %699 = vmatpush.bf16.msra.mxu0 0
      %700 = vmatpush.bf16.msra.mxu0 %v691
      %701 = vmatmul.bf16.gmra.mxu0 %v679
      %v702 = vpop.f32.mrf.mxu0
      %v703 = vadd.f32 0.0, %v702
      %v704 = vpop.f32.mrf.mxu0
      %v705 = vadd.f32 0.0, %v704
      %706 = vmatmul.bf16.gmra.mxu0 %v682
      %v707 = vpop.f32.mrf.mxu0
      %v708 = vadd.f32 0.0, %v707
      %v709 = vpop.f32.mrf.mxu0
      %v710 = vadd.f32 0.0, %v709
      %711 = vmatmul.bf16.gmra.mxu0 %v685
      %v712 = vpop.f32.mrf.mxu0
      %v713 = vadd.f32 0.0, %v712
      %v714 = vpop.f32.mrf.mxu0
      %v715 = vadd.f32 0.0, %v714
      %716 = vmatmul.bf16.gmra.mxu0 %v688
      %v717 = vpop.f32.mrf.mxu0
      %v718 = vadd.f32 0.0, %v717
      %v719 = vpop.f32.mrf.mxu0
      %v720 = vadd.f32 0.0, %v719
      %721 = vdwg.mxu0
      %v722 = vadd.f32 %v639, %v703
      %v723 = vadd.f32 %v640, %v705
      %v724 = vadd.f32 %v641, %v708
      %v725 = vadd.f32 %v642, %v710
      %v726 = vadd.f32 %v643, %v713
      %v727 = vadd.f32 %v644, %v715
      %v728 = vadd.f32 %v645, %v718
      %v729 = vadd.f32 %v646, %v720
      %s730 = scalar_lea.vmem %s273, 216
      %v731 = vld [vmem:[%s730] sm:$0xf]
      %v732 = vld [vmem:[%s730 + $0x8] sm:$0xf]
      %v733 = vld [vmem:[%s730 + $0x10] sm:$0xf]
      %v734 = vld [vmem:[%s730 + $0x18] sm:$0xf]
      %v735 = vld [vmem:[%s730 + $0x20] sm:$0xf]
      %v736 = vld [vmem:[%s730 + $0x28] sm:$0xf]
      %v737 = vld [vmem:[%s730 + $0x30] sm:$0xf]
      %v738 = vld [vmem:[%s730 + $0x38] sm:$0xf]
      %s739 = scalar_lea.vmem %s1, 8
      %v740 = vld [vmem:[%s739] sm:$0x3]
      %v749 = vunpack.c.l.b16 %v731
      %v750 = vunpack.c.l.b16 %v732
      %v751 = vunpack.c.l.b16 %v733
      %v752 = vunpack.c.l.b16 %v734
      %v753 = vunpack.c.l.b16 %v735
      %v754 = vunpack.c.l.b16 %v736
      %v755 = vunpack.c.l.b16 %v737
      %v756 = vunpack.c.l.b16 %v738
      %v757 = vpack.c.b16 %v750, %v749
      %v758 = vpack.c.b16 %v752, %v751
      %v759 = vpack.c.b16 %v754, %v753
      %v760 = vpack.c.b16 %v756, %v755
      %v762 = vsel %vm340, %v757, 0
      %v765 = vsel %vm340, %v758, 0
      %v768 = vsel %vm340, %v759, 0
      %v771 = vsel %vm340, %v760, 0
      %v774 = vsel %vm353, %v740, 0
      %776 = vmatpush.bf16.msra.mxu0 0
      %777 = vmatpush.bf16.msra.mxu0 0
      %778 = vmatpush.bf16.msra.mxu0 0
      %779 = vmatpush.bf16.msra.mxu0 0
      %780 = vmatpush.bf16.msra.mxu0 0
      %781 = vmatpush.bf16.msra.mxu0 0
      %782 = vmatpush.bf16.msra.mxu0 0
      %783 = vmatpush.bf16.msra.mxu0 %v774
      %784 = vmatmul.bf16.gmra.mxu0 %v762
      %v785 = vpop.f32.mrf.mxu0
      %v786 = vadd.f32 0.0, %v785
      %v787 = vpop.f32.mrf.mxu0
      %v788 = vadd.f32 0.0, %v787
      %789 = vmatmul.bf16.gmra.mxu0 %v765
      %v790 = vpop.f32.mrf.mxu0
      %v791 = vadd.f32 0.0, %v790
      %v792 = vpop.f32.mrf.mxu0
      %v793 = vadd.f32 0.0, %v792
      %794 = vmatmul.bf16.gmra.mxu0 %v768
      %v795 = vpop.f32.mrf.mxu0
      %v796 = vadd.f32 0.0, %v795
      %v797 = vpop.f32.mrf.mxu0
      %v798 = vadd.f32 0.0, %v797
      %799 = vmatmul.bf16.gmra.mxu0 %v771
      %v800 = vpop.f32.mrf.mxu0
      %v801 = vadd.f32 0.0, %v800
      %v802 = vpop.f32.mrf.mxu0
      %v803 = vadd.f32 0.0, %v802
      %804 = vdwg.mxu0
      %v805 = vadd.f32 %v722, %v786
      %v806 = vadd.f32 %v723, %v788
      %v807 = vadd.f32 %v724, %v791
      %v808 = vadd.f32 %v725, %v793
      %v809 = vadd.f32 %v726, %v796
      %v810 = vadd.f32 %v727, %v798
      %v811 = vadd.f32 %v728, %v801
      %v812 = vadd.f32 %v729, %v803
      %v813 = vld [vmem:[%s647] sm:$0xf]
      %v814 = vld [vmem:[%s647 + $0x4] sm:$0x1]
      %v815 = vld [vmem:[%s647 + $0x8] sm:$0xf]
      %v816 = vld [vmem:[%s647 + $0xc] sm:$0x1]
      %v817 = vld [vmem:[%s647 + $0x10] sm:$0xf]
      %v818 = vld [vmem:[%s647 + $0x14] sm:$0x1]
      %v819 = vld [vmem:[%s647 + $0x18] sm:$0xf]
      %v820 = vld [vmem:[%s647 + $0x1c] sm:$0x1]
      %v821 = vld [vmem:[%s647 + $0x20] sm:$0xf]
      %v822 = vld [vmem:[%s647 + $0x24] sm:$0x1]
      %v823 = vld [vmem:[%s647 + $0x28] sm:$0xf]
      %v824 = vld [vmem:[%s647 + $0x2c] sm:$0x1]
      %v825 = vld [vmem:[%s647 + $0x30] sm:$0xf]
      %v826 = vld [vmem:[%s647 + $0x34] sm:$0x1]
      %v827 = vld [vmem:[%s647 + $0x38] sm:$0xf]
      %v828 = vld [vmem:[%s647 + $0x3c] sm:$0x1]
      %v830 = vshrl.u32 %v813, 16
      %v832 = vrot.slane %v830, 4
      %v833 = vshll.u32 %v813, 16
      %v835 = vrot.slane %v833, 5
      %v836 = vor.u32 %v832, %v835
      %v837 = vrot.slane %v836, 4
      %v839 = vshll.u32 %v814, 16
      %v841 = vrot.slane %v839, 5
      %v842 = vsel %vm468, %v837, %v841
      %v844 = vshrl.u32 %v815, 16
      %v846 = vrot.slane %v844, 4
      %v847 = vshll.u32 %v815, 16
      %v849 = vrot.slane %v847, 5
      %v850 = vor.u32 %v846, %v849
      %v851 = vrot.slane %v850, 4
      %v853 = vshll.u32 %v816, 16
      %v855 = vrot.slane %v853, 5
      %v856 = vsel %vm468, %v851, %v855
      %v858 = vshrl.u32 %v817, 16
      %v860 = vrot.slane %v858, 4
      %v861 = vshll.u32 %v817, 16
      %v863 = vrot.slane %v861, 5
      %v864 = vor.u32 %v860, %v863
      %v865 = vrot.slane %v864, 4
      %v867 = vshll.u32 %v818, 16
      %v869 = vrot.slane %v867, 5
      %v870 = vsel %vm468, %v865, %v869
      %v872 = vshrl.u32 %v819, 16
      %v874 = vrot.slane %v872, 4
      %v875 = vshll.u32 %v819, 16
      %v877 = vrot.slane %v875, 5
      %v878 = vor.u32 %v874, %v877
      %v879 = vrot.slane %v878, 4
      %v881 = vshll.u32 %v820, 16
      %v883 = vrot.slane %v881, 5
      %v884 = vsel %vm468, %v879, %v883
      %v886 = vshrl.u32 %v821, 16
      %v888 = vrot.slane %v886, 4
      %v889 = vshll.u32 %v821, 16
      %v891 = vrot.slane %v889, 5
      %v892 = vor.u32 %v888, %v891
      %v893 = vrot.slane %v892, 4
      %v895 = vshll.u32 %v822, 16
      %v897 = vrot.slane %v895, 5
      %v898 = vsel %vm468, %v893, %v897
      %v900 = vshrl.u32 %v823, 16
      %v902 = vrot.slane %v900, 4
      %v903 = vshll.u32 %v823, 16
      %v905 = vrot.slane %v903, 5
      %v906 = vor.u32 %v902, %v905
      %v907 = vrot.slane %v906, 4
      %v909 = vshll.u32 %v824, 16
      %v911 = vrot.slane %v909, 5
      %v912 = vsel %vm468, %v907, %v911
      %v914 = vshrl.u32 %v825, 16
      %v916 = vrot.slane %v914, 4
      %v917 = vshll.u32 %v825, 16
      %v919 = vrot.slane %v917, 5
      %v920 = vor.u32 %v916, %v919
      %v921 = vrot.slane %v920, 4
      %v923 = vshll.u32 %v826, 16
      %v925 = vrot.slane %v923, 5
      %v926 = vsel %vm468, %v921, %v925
      %v928 = vshrl.u32 %v827, 16
      %v930 = vrot.slane %v928, 4
      %v931 = vshll.u32 %v827, 16
      %v933 = vrot.slane %v931, 5
      %v934 = vor.u32 %v930, %v933
      %v935 = vrot.slane %v934, 4
      %v937 = vshll.u32 %v828, 16
      %v939 = vrot.slane %v937, 5
      %v940 = vsel %vm468, %v935, %v939
      %s941 = scalar_lea.vmem %s1, 10
      %v942 = vld [vmem:[%s941] sm:$0x3]
      %v943 = vunpack.c.l.b16 %v842
      %v944 = vunpack.c.l.b16 %v856
      %v945 = vunpack.c.l.b16 %v870
      %v946 = vunpack.c.l.b16 %v884
      %v947 = vunpack.c.l.b16 %v898
      %v948 = vunpack.c.l.b16 %v912
      %v949 = vunpack.c.l.b16 %v926
      %v950 = vunpack.c.l.b16 %v940
      %v951 = vpack.c.b16 %v944, %v943
      %v952 = vpack.c.b16 %v946, %v945
      %v953 = vpack.c.b16 %v948, %v947
      %v954 = vpack.c.b16 %v950, %v949
      %v956 = vsel %vm340, %v951, 0
      %v959 = vsel %vm340, %v952, 0
      %v962 = vsel %vm340, %v953, 0
      %v965 = vsel %vm340, %v954, 0
      %v968 = vsel %vm353, %v942, 0
      %970 = vmatpush.bf16.msra.mxu0 0
      %971 = vmatpush.bf16.msra.mxu0 0
      %972 = vmatpush.bf16.msra.mxu0 0
      %973 = vmatpush.bf16.msra.mxu0 0
      %974 = vmatpush.bf16.msra.mxu0 0
      %975 = vmatpush.bf16.msra.mxu0 0
      %976 = vmatpush.bf16.msra.mxu0 0
      %977 = vmatpush.bf16.msra.mxu0 %v968
      %978 = vmatmul.bf16.gmra.mxu0 %v956
      %v979 = vpop.f32.mrf.mxu0
      %v980 = vadd.f32 0.0, %v979
      %v981 = vpop.f32.mrf.mxu0
      %v982 = vadd.f32 0.0, %v981
      %983 = vmatmul.bf16.gmra.mxu0 %v959
      %v984 = vpop.f32.mrf.mxu0
      %v985 = vadd.f32 0.0, %v984
      %v986 = vpop.f32.mrf.mxu0
      %v987 = vadd.f32 0.0, %v986
      %988 = vmatmul.bf16.gmra.mxu0 %v962
      %v989 = vpop.f32.mrf.mxu0
      %v990 = vadd.f32 0.0, %v989
      %v991 = vpop.f32.mrf.mxu0
      %v992 = vadd.f32 0.0, %v991
      %993 = vmatmul.bf16.gmra.mxu0 %v965
      %v994 = vpop.f32.mrf.mxu0
      %v995 = vadd.f32 0.0, %v994
      %v996 = vpop.f32.mrf.mxu0
      %v997 = vadd.f32 0.0, %v996
      %998 = vdwg.mxu0
      %v999 = vadd.f32 %v805, %v980
      %v1000 = vadd.f32 %v806, %v982
      %v1001 = vadd.f32 %v807, %v985
      %v1002 = vadd.f32 %v808, %v987
      %v1003 = vadd.f32 %v809, %v990
      %v1004 = vadd.f32 %v810, %v992
      %v1005 = vadd.f32 %v811, %v995
      %v1006 = vadd.f32 %v812, %v997
      %s1007 = scalar_lea.vmem %s273, 8
      %v1008 = vld [vmem:[%s1007] sm:$0xf]
      %v1009 = vld [vmem:[%s1007 + $0x8] sm:$0xf]
      %v1010 = vld [vmem:[%s1007 + $0x10] sm:$0xf]
      %v1011 = vld [vmem:[%s1007 + $0x18] sm:$0xf]
      %v1012 = vld [vmem:[%s1007 + $0x20] sm:$0xf]
      %v1013 = vld [vmem:[%s1007 + $0x28] sm:$0xf]
      %v1014 = vld [vmem:[%s1007 + $0x30] sm:$0xf]
      %v1015 = vld [vmem:[%s1007 + $0x38] sm:$0xf]
      %s1016 = scalar_lea.vmem %s1, 12
      %v1017 = vld [vmem:[%s1016] sm:$0x3]
      %v1026 = vunpack.c.l.b16 %v1008
      %v1027 = vunpack.c.l.b16 %v1009
      %v1028 = vunpack.c.l.b16 %v1010
      %v1029 = vunpack.c.l.b16 %v1011
      %v1030 = vunpack.c.l.b16 %v1012
      %v1031 = vunpack.c.l.b16 %v1013
      %v1032 = vunpack.c.l.b16 %v1014
      %v1033 = vunpack.c.l.b16 %v1015
      %v1034 = vpack.c.b16 %v1027, %v1026
      %v1035 = vpack.c.b16 %v1029, %v1028
      %v1036 = vpack.c.b16 %v1031, %v1030
      %v1037 = vpack.c.b16 %v1033, %v1032
      %v1039 = vsel %vm340, %v1034, 0
      %v1042 = vsel %vm340, %v1035, 0
      %v1045 = vsel %vm340, %v1036, 0
      %v1048 = vsel %vm340, %v1037, 0
      %v1051 = vsel %vm353, %v1017, 0
      %1053 = vmatpush.bf16.msra.mxu0 0
      %1054 = vmatpush.bf16.msra.mxu0 0
      %1055 = vmatpush.bf16.msra.mxu0 0
      %1056 = vmatpush.bf16.msra.mxu0 0
      %1057 = vmatpush.bf16.msra.mxu0 0
      %1058 = vmatpush.bf16.msra.mxu0 0
      %1059 = vmatpush.bf16.msra.mxu0 0
      %1060 = vmatpush.bf16.msra.mxu0 %v1051
      %1061 = vmatmul.bf16.gmra.mxu0 %v1039
      %v1062 = vpop.f32.mrf.mxu0
      %v1063 = vadd.f32 0.0, %v1062
      %v1064 = vpop.f32.mrf.mxu0
      %v1065 = vadd.f32 0.0, %v1064
      %1066 = vmatmul.bf16.gmra.mxu0 %v1042
      %v1067 = vpop.f32.mrf.mxu0
      %v1068 = vadd.f32 0.0, %v1067
      %v1069 = vpop.f32.mrf.mxu0
      %v1070 = vadd.f32 0.0, %v1069
      %1071 = vmatmul.bf16.gmra.mxu0 %v1045
      %v1072 = vpop.f32.mrf.mxu0
      %v1073 = vadd.f32 0.0, %v1072
      %v1074 = vpop.f32.mrf.mxu0
      %v1075 = vadd.f32 0.0, %v1074
      %1076 = vmatmul.bf16.gmra.mxu0 %v1048
      %v1077 = vpop.f32.mrf.mxu0
      %v1078 = vadd.f32 0.0, %v1077
      %v1079 = vpop.f32.mrf.mxu0
      %v1080 = vadd.f32 0.0, %v1079
      %1081 = vdwg.mxu0
      %v1082 = vadd.f32 %v999, %v1063
      %v1083 = vadd.f32 %v1000, %v1065
      %v1084 = vadd.f32 %v1001, %v1068
      %v1085 = vadd.f32 %v1002, %v1070
      %v1086 = vadd.f32 %v1003, %v1073
      %v1087 = vadd.f32 %v1004, %v1075
      %v1088 = vadd.f32 %v1005, %v1078
      %v1089 = vadd.f32 %v1006, %v1080
      %s1090 = scalar_lea.vmem %s273, 80
      %v1091 = vld [vmem:[%s1090] sm:$0xf]
      %v1092 = vld [vmem:[%s1090 + $0x8] sm:$0xf]
      %v1093 = vld [vmem:[%s1090 + $0x10] sm:$0xf]
      %v1094 = vld [vmem:[%s1090 + $0x18] sm:$0xf]
      %v1095 = vld [vmem:[%s1090 + $0x20] sm:$0xf]
      %v1096 = vld [vmem:[%s1090 + $0x28] sm:$0xf]
      %v1097 = vld [vmem:[%s1090 + $0x30] sm:$0xf]
      %v1098 = vld [vmem:[%s1090 + $0x38] sm:$0xf]
      %s1099 = scalar_lea.vmem %s1, 14
      %v1100 = vld [vmem:[%s1099] sm:$0x3]
      %v1109 = vunpack.c.l.b16 %v1091
      %v1110 = vunpack.c.l.b16 %v1092
      %v1111 = vunpack.c.l.b16 %v1093
      %v1112 = vunpack.c.l.b16 %v1094
      %v1113 = vunpack.c.l.b16 %v1095
      %v1114 = vunpack.c.l.b16 %v1096
      %v1115 = vunpack.c.l.b16 %v1097
      %v1116 = vunpack.c.l.b16 %v1098
      %v1117 = vpack.c.b16 %v1110, %v1109
      %v1118 = vpack.c.b16 %v1112, %v1111
      %v1119 = vpack.c.b16 %v1114, %v1113
      %v1120 = vpack.c.b16 %v1116, %v1115
      %v1122 = vsel %vm340, %v1117, 0
      %v1125 = vsel %vm340, %v1118, 0
      %v1128 = vsel %vm340, %v1119, 0
      %v1131 = vsel %vm340, %v1120, 0
      %v1134 = vsel %vm353, %v1100, 0
      %1136 = vmatpush.bf16.msra.mxu0 0
      %1137 = vmatpush.bf16.msra.mxu0 0
      %1138 = vmatpush.bf16.msra.mxu0 0
      %1139 = vmatpush.bf16.msra.mxu0 0
      %1140 = vmatpush.bf16.msra.mxu0 0
      %1141 = vmatpush.bf16.msra.mxu0 0
      %1142 = vmatpush.bf16.msra.mxu0 0
      %1143 = vmatpush.bf16.msra.mxu0 %v1134
      %1144 = vmatmul.bf16.gmra.mxu0 %v1122
      %v1145 = vpop.f32.mrf.mxu0
      %v1146 = vadd.f32 0.0, %v1145
      %v1147 = vpop.f32.mrf.mxu0
      %v1148 = vadd.f32 0.0, %v1147
      %1149 = vmatmul.bf16.gmra.mxu0 %v1125
      %v1150 = vpop.f32.mrf.mxu0
      %v1151 = vadd.f32 0.0, %v1150
      %v1152 = vpop.f32.mrf.mxu0
      %v1153 = vadd.f32 0.0, %v1152
      %1154 = vmatmul.bf16.gmra.mxu0 %v1128
      %v1155 = vpop.f32.mrf.mxu0
      %v1156 = vadd.f32 0.0, %v1155
      %v1157 = vpop.f32.mrf.mxu0
      %v1158 = vadd.f32 0.0, %v1157
      %1159 = vmatmul.bf16.gmra.mxu0 %v1131
      %v1160 = vpop.f32.mrf.mxu0
      %v1161 = vadd.f32 0.0, %v1160
      %v1162 = vpop.f32.mrf.mxu0
      %v1163 = vadd.f32 0.0, %v1162
      %1164 = vdwg.mxu0
      %v1165 = vadd.f32 %v1082, %v1146
      %v1166 = vadd.f32 %v1083, %v1148
      %v1167 = vadd.f32 %v1084, %v1151
      %v1168 = vadd.f32 %v1085, %v1153
      %v1169 = vadd.f32 %v1086, %v1156
      %v1170 = vadd.f32 %v1087, %v1158
      %v1171 = vadd.f32 %v1088, %v1161
      %v1172 = vadd.f32 %v1089, %v1163
      %v1173 = vld [vmem:[%s1007] sm:$0xf]
      %v1174 = vld [vmem:[%s1007 + $0x4] sm:$0x1]
      %v1175 = vld [vmem:[%s1007 + $0x8] sm:$0xf]
      %v1176 = vld [vmem:[%s1007 + $0xc] sm:$0x1]
      %v1177 = vld [vmem:[%s1007 + $0x10] sm:$0xf]
      %v1178 = vld [vmem:[%s1007 + $0x14] sm:$0x1]
      %v1179 = vld [vmem:[%s1007 + $0x18] sm:$0xf]
      %v1180 = vld [vmem:[%s1007 + $0x1c] sm:$0x1]
      %v1181 = vld [vmem:[%s1007 + $0x20] sm:$0xf]
      %v1182 = vld [vmem:[%s1007 + $0x24] sm:$0x1]
      %v1183 = vld [vmem:[%s1007 + $0x28] sm:$0xf]
      %v1184 = vld [vmem:[%s1007 + $0x2c] sm:$0x1]
      %v1185 = vld [vmem:[%s1007 + $0x30] sm:$0xf]
      %v1186 = vld [vmem:[%s1007 + $0x34] sm:$0x1]
      %v1187 = vld [vmem:[%s1007 + $0x38] sm:$0xf]
      %v1188 = vld [vmem:[%s1007 + $0x3c] sm:$0x1]
      %v1190 = vshrl.u32 %v1173, 16
      %v1192 = vrot.slane %v1190, 4
      %v1193 = vshll.u32 %v1173, 16
      %v1195 = vrot.slane %v1193, 5
      %v1196 = vor.u32 %v1192, %v1195
      %v1197 = vrot.slane %v1196, 4
      %v1199 = vshll.u32 %v1174, 16
      %v1201 = vrot.slane %v1199, 5
      %v1202 = vsel %vm468, %v1197, %v1201
      %v1204 = vshrl.u32 %v1175, 16
      %v1206 = vrot.slane %v1204, 4
      %v1207 = vshll.u32 %v1175, 16
      %v1209 = vrot.slane %v1207, 5
      %v1210 = vor.u32 %v1206, %v1209
      %v1211 = vrot.slane %v1210, 4
      %v1213 = vshll.u32 %v1176, 16
      %v1215 = vrot.slane %v1213, 5
      %v1216 = vsel %vm468, %v1211, %v1215
      %v1218 = vshrl.u32 %v1177, 16
      %v1220 = vrot.slane %v1218, 4
      %v1221 = vshll.u32 %v1177, 16
      %v1223 = vrot.slane %v1221, 5
      %v1224 = vor.u32 %v1220, %v1223
      %v1225 = vrot.slane %v1224, 4
      %v1227 = vshll.u32 %v1178, 16
      %v1229 = vrot.slane %v1227, 5
      %v1230 = vsel %vm468, %v1225, %v1229
      %v1232 = vshrl.u32 %v1179, 16
      %v1234 = vrot.slane %v1232, 4
      %v1235 = vshll.u32 %v1179, 16
      %v1237 = vrot.slane %v1235, 5
      %v1238 = vor.u32 %v1234, %v1237
      %v1239 = vrot.slane %v1238, 4
      %v1241 = vshll.u32 %v1180, 16
      %v1243 = vrot.slane %v1241, 5
      %v1244 = vsel %vm468, %v1239, %v1243
      %v1246 = vshrl.u32 %v1181, 16
      %v1248 = vrot.slane %v1246, 4
      %v1249 = vshll.u32 %v1181, 16
      %v1251 = vrot.slane %v1249, 5
      %v1252 = vor.u32 %v1248, %v1251
      %v1253 = vrot.slane %v1252, 4
      %v1255 = vshll.u32 %v1182, 16
      %v1257 = vrot.slane %v1255, 5
      %v1258 = vsel %vm468, %v1253, %v1257
      %v1260 = vshrl.u32 %v1183, 16
      %v1262 = vrot.slane %v1260, 4
      %v1263 = vshll.u32 %v1183, 16
      %v1265 = vrot.slane %v1263, 5
      %v1266 = vor.u32 %v1262, %v1265
      %v1267 = vrot.slane %v1266, 4
      %v1269 = vshll.u32 %v1184, 16
      %v1271 = vrot.slane %v1269, 5
      %v1272 = vsel %vm468, %v1267, %v1271
      %v1274 = vshrl.u32 %v1185, 16
      %v1276 = vrot.slane %v1274, 4
      %v1277 = vshll.u32 %v1185, 16
      %v1279 = vrot.slane %v1277, 5
      %v1280 = vor.u32 %v1276, %v1279
      %v1281 = vrot.slane %v1280, 4
      %v1283 = vshll.u32 %v1186, 16
      %v1285 = vrot.slane %v1283, 5
      %v1286 = vsel %vm468, %v1281, %v1285
      %v1288 = vshrl.u32 %v1187, 16
      %v1290 = vrot.slane %v1288, 4
      %v1291 = vshll.u32 %v1187, 16
      %v1293 = vrot.slane %v1291, 5
      %v1294 = vor.u32 %v1290, %v1293
      %v1295 = vrot.slane %v1294, 4
      %v1297 = vshll.u32 %v1188, 16
      %v1299 = vrot.slane %v1297, 5
      %v1300 = vsel %vm468, %v1295, %v1299
      %s1301 = scalar_lea.vmem %s1, 16
      %v1302 = vld [vmem:[%s1301] sm:$0x3]
      %v1303 = vunpack.c.l.b16 %v1202
      %v1304 = vunpack.c.l.b16 %v1216
      %v1305 = vunpack.c.l.b16 %v1230
      %v1306 = vunpack.c.l.b16 %v1244
      %v1307 = vunpack.c.l.b16 %v1258
      %v1308 = vunpack.c.l.b16 %v1272
      %v1309 = vunpack.c.l.b16 %v1286
      %v1310 = vunpack.c.l.b16 %v1300
      %v1311 = vpack.c.b16 %v1304, %v1303
      %v1312 = vpack.c.b16 %v1306, %v1305
      %v1313 = vpack.c.b16 %v1308, %v1307
      %v1314 = vpack.c.b16 %v1310, %v1309
      %v1316 = vsel %vm340, %v1311, 0
      %v1319 = vsel %vm340, %v1312, 0
      %v1322 = vsel %vm340, %v1313, 0
      %v1325 = vsel %vm340, %v1314, 0
      %v1328 = vsel %vm353, %v1302, 0
      %1330 = vmatpush.bf16.msra.mxu0 0
      %1331 = vmatpush.bf16.msra.mxu0 0
      %1332 = vmatpush.bf16.msra.mxu0 0
      %1333 = vmatpush.bf16.msra.mxu0 0
      %1334 = vmatpush.bf16.msra.mxu0 0
      %1335 = vmatpush.bf16.msra.mxu0 0
      %1336 = vmatpush.bf16.msra.mxu0 0
      %1337 = vmatpush.bf16.msra.mxu0 %v1328
      %1338 = vmatmul.bf16.gmra.mxu0 %v1316
      %v1339 = vpop.f32.mrf.mxu0
      %v1340 = vadd.f32 0.0, %v1339
      %v1341 = vpop.f32.mrf.mxu0
      %v1342 = vadd.f32 0.0, %v1341
      %1343 = vmatmul.bf16.gmra.mxu0 %v1319
      %v1344 = vpop.f32.mrf.mxu0
      %v1345 = vadd.f32 0.0, %v1344
      %v1346 = vpop.f32.mrf.mxu0
      %v1347 = vadd.f32 0.0, %v1346
      %1348 = vmatmul.bf16.gmra.mxu0 %v1322
      %v1349 = vpop.f32.mrf.mxu0
      %v1350 = vadd.f32 0.0, %v1349
      %v1351 = vpop.f32.mrf.mxu0
      %v1352 = vadd.f32 0.0, %v1351
      %1353 = vmatmul.bf16.gmra.mxu0 %v1325
      %v1354 = vpop.f32.mrf.mxu0
      %v1355 = vadd.f32 0.0, %v1354
      %v1356 = vpop.f32.mrf.mxu0
      %v1357 = vadd.f32 0.0, %v1356
      %1358 = vdwg.mxu0
      %v1359 = vadd.f32 %v1165, %v1340
      %v1360 = vadd.f32 %v1166, %v1342
      %v1361 = vadd.f32 %v1167, %v1345
      %v1362 = vadd.f32 %v1168, %v1347
      %v1363 = vadd.f32 %v1169, %v1350
      %v1364 = vadd.f32 %v1170, %v1352
      %v1365 = vadd.f32 %v1171, %v1355
      %v1366 = vadd.f32 %v1172, %v1357
      %v1367 = vld [vmem:[%s2] sm:$0x1]
      %v1369 = vperm.slane %v1367, 0
      %v1371 = vadd.f32 %v1359, %v1369
      %v1372 = vadd.f32 %v1360, %v1369
      %v1373 = vadd.f32 %v1361, %v1369
      %v1374 = vadd.f32 %v1362, %v1369
      %v1375 = vadd.f32 %v1363, %v1369
      %v1376 = vadd.f32 %v1364, %v1369
      %v1377 = vadd.f32 %v1365, %v1369
      %v1378 = vadd.f32 %v1366, %v1369
      %v1379 = vmax.f32 %v1371, 0.0
      %v1380 = vmax.f32 %v1372, 0.0
      %v1381 = vmax.f32 %v1373, 0.0
      %v1382 = vmax.f32 %v1374, 0.0
      %v1383 = vmax.f32 %v1375, 0.0
      %v1384 = vmax.f32 %v1376, 0.0
      %v1385 = vmax.f32 %v1377, 0.0
      %v1386 = vmax.f32 %v1378, 0.0
      %v1387 = vpack.c.bf16 %v1379, %v1379
      %v1388 = vpack.c.bf16 %v1380, %v1380
      %v1389 = vpack.c.bf16 %v1381, %v1381
      %v1390 = vpack.c.bf16 %v1382, %v1382
      %v1391 = vpack.c.bf16 %v1383, %v1383
      %v1392 = vpack.c.bf16 %v1384, %v1384
      %v1393 = vpack.c.bf16 %v1385, %v1385
      %v1394 = vpack.c.bf16 %v1386, %v1386
      %v1396 = vshrl.u32 %v1387, 16
      %v1398 = vrot.slane %v1396, 7
      %v1399 = vshll.u32 %v1387, 16
      %v1401 = vor.u32 %v1398, %v1399
      %v1402 = vrot.slane %v1398, 4
      %v1404 = vshrl.u32 %v1388, 16
      %v1406 = vrot.slane %v1404, 7
      %v1407 = vshll.u32 %v1388, 16
      %v1409 = vor.u32 %v1406, %v1407
      %v1410 = vrot.slane %v1406, 4
      %v1412 = vshrl.u32 %v1389, 16
      %v1414 = vrot.slane %v1412, 7
      %v1415 = vshll.u32 %v1389, 16
      %v1417 = vor.u32 %v1414, %v1415
      %v1418 = vrot.slane %v1414, 4
      %v1420 = vshrl.u32 %v1390, 16
      %v1422 = vrot.slane %v1420, 7
      %v1423 = vshll.u32 %v1390, 16
      %v1425 = vor.u32 %v1422, %v1423
      %v1426 = vrot.slane %v1422, 4
      %v1428 = vshrl.u32 %v1391, 16
      %v1430 = vrot.slane %v1428, 7
      %v1431 = vshll.u32 %v1391, 16
      %v1433 = vor.u32 %v1430, %v1431
      %v1434 = vrot.slane %v1430, 4
      %v1436 = vshrl.u32 %v1392, 16
      %v1438 = vrot.slane %v1436, 7
      %v1439 = vshll.u32 %v1392, 16
      %v1441 = vor.u32 %v1438, %v1439
      %v1442 = vrot.slane %v1438, 4
      %v1444 = vshrl.u32 %v1393, 16
      %v1446 = vrot.slane %v1444, 7
      %v1447 = vshll.u32 %v1393, 16
      %v1449 = vor.u32 %v1446, %v1447
      %v1450 = vrot.slane %v1446, 4
      %v1452 = vshrl.u32 %v1394, 16
      %v1454 = vrot.slane %v1452, 7
      %v1455 = vshll.u32 %v1394, 16
      %v1457 = vor.u32 %v1454, %v1455
      %v1458 = vrot.slane %v1454, 4
      %s1475 = scalar_lea.vmem [#allocation2], 8
      %vm1476 = vcmask 1043456
      %vm1477 = vsmask.f32 7938
      %vm1478 = vmand %vm1476, %vm1477
      %v1479 = vld [vmem:[%s1475] sm:$0xf]
      %v1480 = vsel %vm1478, %v1401, %v1479
      %1481 = vst [vmem:[%s1475] sm:$0xf] %v1480
      %vm1482 = vcmask 1040384
      %vm1483 = vsmask.f32 256
      %vm1484 = vmand %vm1482, %vm1483
      %v1485 = vld [vmem:[%s1475 + $0x4] sm:$0x1]
      %v1486 = vsel %vm1484, %v1402, %v1485
      %1487 = vst [vmem:[%s1475 + $0x4] sm:$0x1] %v1486
      %v1488 = vld [vmem:[%s1475 + $0x8] sm:$0xf]
      %v1489 = vsel %vm1478, %v1409, %v1488
      %1490 = vst [vmem:[%s1475 + $0x8] sm:$0xf] %v1489
      %v1491 = vld [vmem:[%s1475 + $0xc] sm:$0x1]
      %v1492 = vsel %vm1484, %v1410, %v1491
      %1493 = vst [vmem:[%s1475 + $0xc] sm:$0x1] %v1492
      %v1494 = vld [vmem:[%s1475 + $0x10] sm:$0xf]
      %v1495 = vsel %vm1478, %v1417, %v1494
      %1496 = vst [vmem:[%s1475 + $0x10] sm:$0xf] %v1495
      %v1497 = vld [vmem:[%s1475 + $0x14] sm:$0x1]
      %v1498 = vsel %vm1484, %v1418, %v1497
      %1499 = vst [vmem:[%s1475 + $0x14] sm:$0x1] %v1498
      %v1500 = vld [vmem:[%s1475 + $0x18] sm:$0xf]
      %v1501 = vsel %vm1478, %v1425, %v1500
      %1502 = vst [vmem:[%s1475 + $0x18] sm:$0xf] %v1501
      %v1503 = vld [vmem:[%s1475 + $0x1c] sm:$0x1]
      %v1504 = vsel %vm1484, %v1426, %v1503
      %1505 = vst [vmem:[%s1475 + $0x1c] sm:$0x1] %v1504
      %v1506 = vld [vmem:[%s1475 + $0x20] sm:$0xf]
      %v1507 = vsel %vm1478, %v1433, %v1506
      %1508 = vst [vmem:[%s1475 + $0x20] sm:$0xf] %v1507
      %v1509 = vld [vmem:[%s1475 + $0x24] sm:$0x1]
      %v1510 = vsel %vm1484, %v1434, %v1509
      %1511 = vst [vmem:[%s1475 + $0x24] sm:$0x1] %v1510
      %v1512 = vld [vmem:[%s1475 + $0x28] sm:$0xf]
      %v1513 = vsel %vm1478, %v1441, %v1512
      %1514 = vst [vmem:[%s1475 + $0x28] sm:$0xf] %v1513
      %v1515 = vld [vmem:[%s1475 + $0x2c] sm:$0x1]
      %v1516 = vsel %vm1484, %v1442, %v1515
      %1517 = vst [vmem:[%s1475 + $0x2c] sm:$0x1] %v1516
      %v1518 = vld [vmem:[%s1475 + $0x30] sm:$0xf]
      %v1519 = vsel %vm1478, %v1449, %v1518
      %1520 = vst [vmem:[%s1475 + $0x30] sm:$0xf] %v1519
      %v1521 = vld [vmem:[%s1475 + $0x34] sm:$0x1]
      %v1522 = vsel %vm1484, %v1450, %v1521
      %1523 = vst [vmem:[%s1475 + $0x34] sm:$0x1] %v1522
      %v1524 = vld [vmem:[%s1475 + $0x38] sm:$0xf]
      %v1525 = vsel %vm1478, %v1457, %v1524
      %1526 = vst [vmem:[%s1475 + $0x38] sm:$0xf] %v1525
      %v1527 = vld [vmem:[%s1475 + $0x3c] sm:$0x1]
      %v1528 = vsel %vm1484, %v1458, %v1527
      %1529 = vst [vmem:[%s1475 + $0x3c] sm:$0x1] %v1528
      %v1530 = vld [vmem:[%s730] sm:$0xf]
      %v1531 = vld [vmem:[%s730 + $0x8] sm:$0xf]
      %v1532 = vld [vmem:[%s730 + $0x10] sm:$0xf]
      %v1533 = vld [vmem:[%s730 + $0x18] sm:$0xf]
      %v1534 = vld [vmem:[%s730 + $0x20] sm:$0xf]
      %v1535 = vld [vmem:[%s730 + $0x28] sm:$0xf]
      %v1536 = vld [vmem:[%s730 + $0x30] sm:$0xf]
      %v1537 = vld [vmem:[%s730 + $0x38] sm:$0xf]
      %v1538 = vld [vmem:[%s5] sm:$0x3]
      %v1539 = vld [vmem:[%s6] sm:$0x1]
      %v1541 = vperm.slane %v1539, 0
      %v1551 = vunpack.c.l.b16 %v1530
      %v1552 = vunpack.c.l.b16 %v1531
      %v1553 = vunpack.c.l.b16 %v1532
      %v1554 = vunpack.c.l.b16 %v1533
      %v1555 = vunpack.c.l.b16 %v1534
      %v1556 = vunpack.c.l.b16 %v1535
      %v1557 = vunpack.c.l.b16 %v1536
      %v1558 = vunpack.c.l.b16 %v1537
      %v1559 = vpack.c.b16 %v1552, %v1551
      %v1560 = vpack.c.b16 %v1554, %v1553
      %v1561 = vpack.c.b16 %v1556, %v1555
      %v1562 = vpack.c.b16 %v1558, %v1557
      %v1564 = vsel %vm340, %v1559, 0
      %v1567 = vsel %vm340, %v1560, 0
      %v1570 = vsel %vm340, %v1561, 0
      %v1573 = vsel %vm340, %v1562, 0
      %v1576 = vsel %vm353, %v1538, 0
      %1578 = vmatpush.bf16.msra.mxu0 0
      %1579 = vmatpush.bf16.msra.mxu0 0
      %1580 = vmatpush.bf16.msra.mxu0 0
      %1581 = vmatpush.bf16.msra.mxu0 0
      %1582 = vmatpush.bf16.msra.mxu0 0
      %1583 = vmatpush.bf16.msra.mxu0 0
      %1584 = vmatpush.bf16.msra.mxu0 0
      %1585 = vmatpush.bf16.msra.mxu0 %v1576
      %1586 = vmatmul.bf16.gmra.mxu0 %v1564
      %v1587 = vpop.f32.mrf.mxu0
      %v1588 = vadd.f32 %v1541, %v1587
      %v1589 = vpop.f32.mrf.mxu0
      %v1590 = vadd.f32 %v1541, %v1589
      %1591 = vmatmul.bf16.gmra.mxu0 %v1567
      %v1592 = vpop.f32.mrf.mxu0
      %v1593 = vadd.f32 %v1541, %v1592
      %v1594 = vpop.f32.mrf.mxu0
      %v1595 = vadd.f32 %v1541, %v1594
      %1596 = vmatmul.bf16.gmra.mxu0 %v1570
      %v1597 = vpop.f32.mrf.mxu0
      %v1598 = vadd.f32 %v1541, %v1597
      %v1599 = vpop.f32.mrf.mxu0
      %v1600 = vadd.f32 %v1541, %v1599
      %1601 = vmatmul.bf16.gmra.mxu0 %v1573
      %v1602 = vpop.f32.mrf.mxu0
      %v1603 = vadd.f32 %v1541, %v1602
      %v1604 = vpop.f32.mrf.mxu0
      %v1605 = vadd.f32 %v1541, %v1604
      %1606 = vdwg.mxu0
      %v1607 = vld [vmem:[#allocation2] sm:$0xf]
      %v1608 = vld [vmem:[#allocation2 + $0x8] sm:$0xf]
      %v1609 = vld [vmem:[#allocation2 + $0x10] sm:$0xf]
      %v1610 = vld [vmem:[#allocation2 + $0x18] sm:$0xf]
      %v1611 = vld [vmem:[#allocation2 + $0x20] sm:$0xf]
      %v1612 = vld [vmem:[#allocation2 + $0x28] sm:$0xf]
      %v1613 = vld [vmem:[#allocation2 + $0x30] sm:$0xf]
      %v1614 = vld [vmem:[#allocation2 + $0x38] sm:$0xf]
      %v1615 = vld [vmem:[%s3] sm:$0xf]
      %v1616 = vld [vmem:[%s3 + $0x4] sm:$0xf]
      %v1617 = vld [vmem:[%s3 + $0x8] sm:$0xf]
      %v1618 = vld [vmem:[%s3 + $0xc] sm:$0xf]
      %v1619 = vld [vmem:[%s3 + $0x10] sm:$0xf]
      %v1620 = vld [vmem:[%s3 + $0x14] sm:$0xf]
      %v1621 = vld [vmem:[%s3 + $0x18] sm:$0xf]
      %v1622 = vld [vmem:[%s3 + $0x1c] sm:$0xf]
      %v1623 = vld [vmem:[%s3 + $0x20] sm:$0xf]
      %v1624 = vld [vmem:[%s3 + $0x24] sm:$0xf]
      %v1625 = vld [vmem:[%s3 + $0x28] sm:$0xf]
      %v1626 = vld [vmem:[%s3 + $0x2c] sm:$0xf]
      %v1627 = vld [vmem:[%s3 + $0x30] sm:$0xf]
      %v1628 = vld [vmem:[%s3 + $0x34] sm:$0xf]
      %v1629 = vld [vmem:[%s3 + $0x38] sm:$0xf]
      %v1630 = vld [vmem:[%s3 + $0x3c] sm:$0xf]
      %v1639 = vunpack.c.l.b16 %v1607
      %v1640 = vunpack.c.l.b16 %v1608
      %v1641 = vunpack.c.l.b16 %v1609
      %v1642 = vunpack.c.l.b16 %v1610
      %v1643 = vunpack.c.l.b16 %v1611
      %v1644 = vunpack.c.l.b16 %v1612
      %v1645 = vunpack.c.l.b16 %v1613
      %v1646 = vunpack.c.l.b16 %v1614
      %v1647 = vpack.c.b16 %v1640, %v1639
      %v1648 = vpack.c.b16 %v1642, %v1641
      %v1649 = vpack.c.b16 %v1644, %v1643
      %v1650 = vpack.c.b16 %v1646, %v1645
      %v1671 = vunpack.c.l.b16 %v1615
      %v1672 = vunpack.c.l.b16 %v1616
      %v1673 = vunpack.c.l.b16 %v1617
      %v1674 = vunpack.c.l.b16 %v1618
      %v1675 = vunpack.c.l.b16 %v1619
      %v1676 = vunpack.c.l.b16 %v1620
      %v1677 = vunpack.c.l.b16 %v1621
      %v1678 = vunpack.c.l.b16 %v1622
      %v1679 = vunpack.c.l.b16 %v1623
      %v1680 = vunpack.c.l.b16 %v1624
      %v1681 = vunpack.c.l.b16 %v1625
      %v1682 = vunpack.c.l.b16 %v1626
      %v1683 = vunpack.c.l.b16 %v1627
      %v1684 = vunpack.c.l.b16 %v1628
      %v1685 = vunpack.c.l.b16 %v1629
      %v1686 = vunpack.c.l.b16 %v1630
      %v1687 = vpack.c.b16 %v1672, %v1671
      %v1688 = vpack.c.b16 %v1674, %v1673
      %v1689 = vpack.c.b16 %v1676, %v1675
      %v1690 = vpack.c.b16 %v1678, %v1677
      %v1691 = vpack.c.b16 %v1680, %v1679
      %v1692 = vpack.c.b16 %v1682, %v1681
      %v1693 = vpack.c.b16 %v1684, %v1683
      %v1694 = vpack.c.b16 %v1686, %v1685
      %1703 = vmatpush.bf16.msra.mxu0 %v1694
      %1704 = vmatpush.bf16.msra.mxu0 %v1693
      %1705 = vmatpush.bf16.msra.mxu0 %v1692
      %1706 = vmatpush.bf16.msra.mxu0 %v1691
      %1707 = vmatpush.bf16.msra.mxu0 %v1690
      %1708 = vmatpush.bf16.msra.mxu0 %v1689
      %1709 = vmatpush.bf16.msra.mxu0 %v1688
      %1710 = vmatpush.bf16.msra.mxu0 %v1687
      %1711 = vmatmul.bf16.gmra.mxu0 %v1647
      %v1712 = vpop.f32.mrf.mxu0
      %v1713 = vadd.f32 0.0, %v1712
      %v1714 = vpop.f32.mrf.mxu0
      %v1715 = vadd.f32 0.0, %v1714
      %1716 = vmatmul.bf16.gmra.mxu0 %v1648
      %v1717 = vpop.f32.mrf.mxu0
      %v1718 = vadd.f32 0.0, %v1717
      %v1719 = vpop.f32.mrf.mxu0
      %v1720 = vadd.f32 0.0, %v1719
      %1721 = vmatmul.bf16.gmra.mxu0 %v1649
      %v1722 = vpop.f32.mrf.mxu0
      %v1723 = vadd.f32 0.0, %v1722
      %v1724 = vpop.f32.mrf.mxu0
      %v1725 = vadd.f32 0.0, %v1724
      %1726 = vmatmul.bf16.gmra.mxu0 %v1650
      %v1727 = vpop.f32.mrf.mxu0
      %v1728 = vadd.f32 0.0, %v1727
      %v1729 = vpop.f32.mrf.mxu0
      %v1730 = vadd.f32 0.0, %v1729
      %1731 = vdwg.mxu0
      %v1732 = vadd.f32 %v1588, %v1713
      %v1733 = vadd.f32 %v1590, %v1715
      %v1734 = vadd.f32 %v1593, %v1718
      %v1735 = vadd.f32 %v1595, %v1720
      %v1736 = vadd.f32 %v1598, %v1723
      %v1737 = vadd.f32 %v1600, %v1725
      %v1738 = vadd.f32 %v1603, %v1728
      %v1739 = vadd.f32 %v1605, %v1730
      %v1740 = vld [vmem:[#allocation2] sm:$0xf]
      %v1741 = vld [vmem:[#allocation2 + $0x4] sm:$0x1]
      %v1742 = vld [vmem:[#allocation2 + $0x8] sm:$0xf]
      %v1743 = vld [vmem:[#allocation2 + $0xc] sm:$0x1]
      %v1744 = vld [vmem:[#allocation2 + $0x10] sm:$0xf]
      %v1745 = vld [vmem:[#allocation2 + $0x14] sm:$0x1]
      %v1746 = vld [vmem:[#allocation2 + $0x18] sm:$0xf]
      %v1747 = vld [vmem:[#allocation2 + $0x1c] sm:$0x1]
      %v1748 = vld [vmem:[#allocation2 + $0x20] sm:$0xf]
      %v1749 = vld [vmem:[#allocation2 + $0x24] sm:$0x1]
      %v1750 = vld [vmem:[#allocation2 + $0x28] sm:$0xf]
      %v1751 = vld [vmem:[#allocation2 + $0x2c] sm:$0x1]
      %v1752 = vld [vmem:[#allocation2 + $0x30] sm:$0xf]
      %v1753 = vld [vmem:[#allocation2 + $0x34] sm:$0x1]
      %v1754 = vld [vmem:[#allocation2 + $0x38] sm:$0xf]
      %v1755 = vld [vmem:[#allocation2 + $0x3c] sm:$0x1]
      %v1757 = vshrl.u32 %v1740, 16
      %v1759 = vrot.slane %v1757, 4
      %v1760 = vshll.u32 %v1740, 16
      %v1762 = vrot.slane %v1760, 5
      %v1763 = vor.u32 %v1759, %v1762
      %v1764 = vrot.slane %v1763, 4
      %v1766 = vshll.u32 %v1741, 16
      %v1768 = vrot.slane %v1766, 5
      %v1769 = vsel %vm468, %v1764, %v1768
      %v1771 = vshrl.u32 %v1742, 16
      %v1773 = vrot.slane %v1771, 4
      %v1774 = vshll.u32 %v1742, 16
      %v1776 = vrot.slane %v1774, 5
      %v1777 = vor.u32 %v1773, %v1776
      %v1778 = vrot.slane %v1777, 4
      %v1780 = vshll.u32 %v1743, 16
      %v1782 = vrot.slane %v1780, 5
      %v1783 = vsel %vm468, %v1778, %v1782
      %v1785 = vshrl.u32 %v1744, 16
      %v1787 = vrot.slane %v1785, 4
      %v1788 = vshll.u32 %v1744, 16
      %v1790 = vrot.slane %v1788, 5
      %v1791 = vor.u32 %v1787, %v1790
      %v1792 = vrot.slane %v1791, 4
      %v1794 = vshll.u32 %v1745, 16
      %v1796 = vrot.slane %v1794, 5
      %v1797 = vsel %vm468, %v1792, %v1796
      %v1799 = vshrl.u32 %v1746, 16
      %v1801 = vrot.slane %v1799, 4
      %v1802 = vshll.u32 %v1746, 16
      %v1804 = vrot.slane %v1802, 5
      %v1805 = vor.u32 %v1801, %v1804
      %v1806 = vrot.slane %v1805, 4
      %v1808 = vshll.u32 %v1747, 16
      %v1810 = vrot.slane %v1808, 5
      %v1811 = vsel %vm468, %v1806, %v1810
      %v1813 = vshrl.u32 %v1748, 16
      %v1815 = vrot.slane %v1813, 4
      %v1816 = vshll.u32 %v1748, 16
      %v1818 = vrot.slane %v1816, 5
      %v1819 = vor.u32 %v1815, %v1818
      %v1820 = vrot.slane %v1819, 4
      %v1822 = vshll.u32 %v1749, 16
      %v1824 = vrot.slane %v1822, 5
      %v1825 = vsel %vm468, %v1820, %v1824
      %v1827 = vshrl.u32 %v1750, 16
      %v1829 = vrot.slane %v1827, 4
      %v1830 = vshll.u32 %v1750, 16
      %v1832 = vrot.slane %v1830, 5
      %v1833 = vor.u32 %v1829, %v1832
      %v1834 = vrot.slane %v1833, 4
      %v1836 = vshll.u32 %v1751, 16
      %v1838 = vrot.slane %v1836, 5
      %v1839 = vsel %vm468, %v1834, %v1838
      %v1841 = vshrl.u32 %v1752, 16
      %v1843 = vrot.slane %v1841, 4
      %v1844 = vshll.u32 %v1752, 16
      %v1846 = vrot.slane %v1844, 5
      %v1847 = vor.u32 %v1843, %v1846
      %v1848 = vrot.slane %v1847, 4
      %v1850 = vshll.u32 %v1753, 16
      %v1852 = vrot.slane %v1850, 5
      %v1853 = vsel %vm468, %v1848, %v1852
      %v1855 = vshrl.u32 %v1754, 16
      %v1857 = vrot.slane %v1855, 4
      %v1858 = vshll.u32 %v1754, 16
      %v1860 = vrot.slane %v1858, 5
      %v1861 = vor.u32 %v1857, %v1860
      %v1862 = vrot.slane %v1861, 4
      %v1864 = vshll.u32 %v1755, 16
      %v1866 = vrot.slane %v1864, 5
      %v1867 = vsel %vm468, %v1862, %v1866
      %s1868 = scalar_lea.vmem %s3, 64
      %v1869 = vld [vmem:[%s1868] sm:$0xf]
      %v1870 = vld [vmem:[%s1868 + $0x4] sm:$0xf]
      %v1871 = vld [vmem:[%s1868 + $0x8] sm:$0xf]
      %v1872 = vld [vmem:[%s1868 + $0xc] sm:$0xf]
      %v1873 = vld [vmem:[%s1868 + $0x10] sm:$0xf]
      %v1874 = vld [vmem:[%s1868 + $0x14] sm:$0xf]
      %v1875 = vld [vmem:[%s1868 + $0x18] sm:$0xf]
      %v1876 = vld [vmem:[%s1868 + $0x1c] sm:$0xf]
      %v1877 = vld [vmem:[%s1868 + $0x20] sm:$0xf]
      %v1878 = vld [vmem:[%s1868 + $0x24] sm:$0xf]
      %v1879 = vld [vmem:[%s1868 + $0x28] sm:$0xf]
      %v1880 = vld [vmem:[%s1868 + $0x2c] sm:$0xf]
      %v1881 = vld [vmem:[%s1868 + $0x30] sm:$0xf]
      %v1882 = vld [vmem:[%s1868 + $0x34] sm:$0xf]
      %v1883 = vld [vmem:[%s1868 + $0x38] sm:$0xf]
      %v1884 = vld [vmem:[%s1868 + $0x3c] sm:$0xf]
      %v1885 = vunpack.c.l.b16 %v1769
      %v1886 = vunpack.c.l.b16 %v1783
      %v1887 = vunpack.c.l.b16 %v1797
      %v1888 = vunpack.c.l.b16 %v1811
      %v1889 = vunpack.c.l.b16 %v1825
      %v1890 = vunpack.c.l.b16 %v1839
      %v1891 = vunpack.c.l.b16 %v1853
      %v1892 = vunpack.c.l.b16 %v1867
      %v1893 = vpack.c.b16 %v1886, %v1885
      %v1894 = vpack.c.b16 %v1888, %v1887
      %v1895 = vpack.c.b16 %v1890, %v1889
      %v1896 = vpack.c.b16 %v1892, %v1891
      %v1917 = vunpack.c.l.b16 %v1869
      %v1918 = vunpack.c.l.b16 %v1870
      %v1919 = vunpack.c.l.b16 %v1871
      %v1920 = vunpack.c.l.b16 %v1872
      %v1921 = vunpack.c.l.b16 %v1873
      %v1922 = vunpack.c.l.b16 %v1874
      %v1923 = vunpack.c.l.b16 %v1875
      %v1924 = vunpack.c.l.b16 %v1876
      %v1925 = vunpack.c.l.b16 %v1877
      %v1926 = vunpack.c.l.b16 %v1878
      %v1927 = vunpack.c.l.b16 %v1879
      %v1928 = vunpack.c.l.b16 %v1880
      %v1929 = vunpack.c.l.b16 %v1881
      %v1930 = vunpack.c.l.b16 %v1882
      %v1931 = vunpack.c.l.b16 %v1883
      %v1932 = vunpack.c.l.b16 %v1884
      %v1933 = vpack.c.b16 %v1918, %v1917
      %v1934 = vpack.c.b16 %v1920, %v1919
      %v1935 = vpack.c.b16 %v1922, %v1921
      %v1936 = vpack.c.b16 %v1924, %v1923
      %v1937 = vpack.c.b16 %v1926, %v1925
      %v1938 = vpack.c.b16 %v1928, %v1927
      %v1939 = vpack.c.b16 %v1930, %v1929
      %v1940 = vpack.c.b16 %v1932, %v1931
      %1949 = vmatpush.bf16.msra.mxu0 %v1940
      %1950 = vmatpush.bf16.msra.mxu0 %v1939
      %1951 = vmatpush.bf16.msra.mxu0 %v1938
      %1952 = vmatpush.bf16.msra.mxu0 %v1937
      %1953 = vmatpush.bf16.msra.mxu0 %v1936
      %1954 = vmatpush.bf16.msra.mxu0 %v1935
      %1955 = vmatpush.bf16.msra.mxu0 %v1934
      %1956 = vmatpush.bf16.msra.mxu0 %v1933
      %1957 = vmatmul.bf16.gmra.mxu0 %v1893
      %v1958 = vpop.f32.mrf.mxu0
      %v1959 = vadd.f32 0.0, %v1958
      %v1960 = vpop.f32.mrf.mxu0
      %v1961 = vadd.f32 0.0, %v1960
      %1962 = vmatmul.bf16.gmra.mxu0 %v1894
      %v1963 = vpop.f32.mrf.mxu0
      %v1964 = vadd.f32 0.0, %v1963
      %v1965 = vpop.f32.mrf.mxu0
      %v1966 = vadd.f32 0.0, %v1965
      %1967 = vmatmul.bf16.gmra.mxu0 %v1895
      %v1968 = vpop.f32.mrf.mxu0
      %v1969 = vadd.f32 0.0, %v1968
      %v1970 = vpop.f32.mrf.mxu0
      %v1971 = vadd.f32 0.0, %v1970
      %1972 = vmatmul.bf16.gmra.mxu0 %v1896
      %v1973 = vpop.f32.mrf.mxu0
      %v1974 = vadd.f32 0.0, %v1973
      %v1975 = vpop.f32.mrf.mxu0
      %v1976 = vadd.f32 0.0, %v1975
      %1977 = vdwg.mxu0
      %v1978 = vadd.f32 %v1732, %v1959
      %v1979 = vadd.f32 %v1733, %v1961
      %v1980 = vadd.f32 %v1734, %v1964
      %v1981 = vadd.f32 %v1735, %v1966
      %v1982 = vadd.f32 %v1736, %v1969
      %v1983 = vadd.f32 %v1737, %v1971
      %v1984 = vadd.f32 %v1738, %v1974
      %v1985 = vadd.f32 %v1739, %v1976
      %v1986 = vld [vmem:[#allocation2] sm:$0xe]
      %v1987 = vld [vmem:[#allocation2 + $0x8] sm:$0xe]
      %v1988 = vld [vmem:[#allocation2 + $0x10] sm:$0xe]
      %v1989 = vld [vmem:[#allocation2 + $0x18] sm:$0xe]
      %v1990 = vld [vmem:[#allocation2 + $0x20] sm:$0xe]
      %v1991 = vld [vmem:[#allocation2 + $0x28] sm:$0xe]
      %v1992 = vld [vmem:[#allocation2 + $0x30] sm:$0xe]
      %v1993 = vld [vmem:[#allocation2 + $0x38] sm:$0xe]
      %vm2010 = vcmask 1042432
      %vm2011 = vcmask 1046532
      %vm2012 = vmor %vm2010, %vm2011
      %v2013 = vrot.slane %v1986, 5
      %v2014 = vrot.slane %v2013, 4
      %v2015 = vrot.slane %v1741, 5
      %v2016 = vsel %vm2012, %v2014, %v2015
      %v2017 = vrot.slane %v1987, 5
      %v2018 = vrot.slane %v2017, 4
      %v2019 = vrot.slane %v1743, 5
      %v2020 = vsel %vm2012, %v2018, %v2019
      %v2021 = vrot.slane %v1988, 5
      %v2022 = vrot.slane %v2021, 4
      %v2023 = vrot.slane %v1745, 5
      %v2024 = vsel %vm2012, %v2022, %v2023
      %v2025 = vrot.slane %v1989, 5
      %v2026 = vrot.slane %v2025, 4
      %v2027 = vrot.slane %v1747, 5
      %v2028 = vsel %vm2012, %v2026, %v2027
      %v2029 = vrot.slane %v1990, 5
      %v2030 = vrot.slane %v2029, 4
      %v2031 = vrot.slane %v1749, 5
      %v2032 = vsel %vm2012, %v2030, %v2031
      %v2033 = vrot.slane %v1991, 5
      %v2034 = vrot.slane %v2033, 4
      %v2035 = vrot.slane %v1751, 5
      %v2036 = vsel %vm2012, %v2034, %v2035
      %v2037 = vrot.slane %v1992, 5
      %v2038 = vrot.slane %v2037, 4
      %v2039 = vrot.slane %v1753, 5
      %v2040 = vsel %vm2012, %v2038, %v2039
      %v2041 = vrot.slane %v1993, 5
      %v2042 = vrot.slane %v2041, 4
      %v2043 = vrot.slane %v1755, 5
      %v2044 = vsel %vm2012, %v2042, %v2043
      %s2045 = scalar_lea.vmem %s3, 128
      %v2046 = vld [vmem:[%s2045] sm:$0xf]
      %v2047 = vld [vmem:[%s2045 + $0x4] sm:$0xf]
      %v2048 = vld [vmem:[%s2045 + $0x8] sm:$0xf]
      %v2049 = vld [vmem:[%s2045 + $0xc] sm:$0xf]
      %v2050 = vld [vmem:[%s2045 + $0x10] sm:$0xf]
      %v2051 = vld [vmem:[%s2045 + $0x14] sm:$0xf]
      %v2052 = vld [vmem:[%s2045 + $0x18] sm:$0xf]
      %v2053 = vld [vmem:[%s2045 + $0x1c] sm:$0xf]
      %v2054 = vld [vmem:[%s2045 + $0x20] sm:$0xf]
      %v2055 = vld [vmem:[%s2045 + $0x24] sm:$0xf]
      %v2056 = vld [vmem:[%s2045 + $0x28] sm:$0xf]
      %v2057 = vld [vmem:[%s2045 + $0x2c] sm:$0xf]
      %v2058 = vld [vmem:[%s2045 + $0x30] sm:$0xf]
      %v2059 = vld [vmem:[%s2045 + $0x34] sm:$0xf]
      %v2060 = vld [vmem:[%s2045 + $0x38] sm:$0xf]
      %v2061 = vld [vmem:[%s2045 + $0x3c] sm:$0xf]
      %v2062 = vunpack.c.l.b16 %v2016
      %v2063 = vunpack.c.l.b16 %v2020
      %v2064 = vunpack.c.l.b16 %v2024
      %v2065 = vunpack.c.l.b16 %v2028
      %v2066 = vunpack.c.l.b16 %v2032
      %v2067 = vunpack.c.l.b16 %v2036
      %v2068 = vunpack.c.l.b16 %v2040
      %v2069 = vunpack.c.l.b16 %v2044
      %v2070 = vpack.c.b16 %v2063, %v2062
      %v2071 = vpack.c.b16 %v2065, %v2064
      %v2072 = vpack.c.b16 %v2067, %v2066
      %v2073 = vpack.c.b16 %v2069, %v2068
      %v2094 = vunpack.c.l.b16 %v2046
      %v2095 = vunpack.c.l.b16 %v2047
      %v2096 = vunpack.c.l.b16 %v2048
      %v2097 = vunpack.c.l.b16 %v2049
      %v2098 = vunpack.c.l.b16 %v2050
      %v2099 = vunpack.c.l.b16 %v2051
      %v2100 = vunpack.c.l.b16 %v2052
      %v2101 = vunpack.c.l.b16 %v2053
      %v2102 = vunpack.c.l.b16 %v2054
      %v2103 = vunpack.c.l.b16 %v2055
      %v2104 = vunpack.c.l.b16 %v2056
      %v2105 = vunpack.c.l.b16 %v2057
      %v2106 = vunpack.c.l.b16 %v2058
      %v2107 = vunpack.c.l.b16 %v2059
      %v2108 = vunpack.c.l.b16 %v2060
      %v2109 = vunpack.c.l.b16 %v2061
      %v2110 = vpack.c.b16 %v2095, %v2094
      %v2111 = vpack.c.b16 %v2097, %v2096
      %v2112 = vpack.c.b16 %v2099, %v2098
      %v2113 = vpack.c.b16 %v2101, %v2100
      %v2114 = vpack.c.b16 %v2103, %v2102
      %v2115 = vpack.c.b16 %v2105, %v2104
      %v2116 = vpack.c.b16 %v2107, %v2106
      %v2117 = vpack.c.b16 %v2109, %v2108
      %2126 = vmatpush.bf16.msra.mxu0 %v2117
      %2127 = vmatpush.bf16.msra.mxu0 %v2116
      %2128 = vmatpush.bf16.msra.mxu0 %v2115
      %2129 = vmatpush.bf16.msra.mxu0 %v2114
      %2130 = vmatpush.bf16.msra.mxu0 %v2113
      %2131 = vmatpush.bf16.msra.mxu0 %v2112
      %2132 = vmatpush.bf16.msra.mxu0 %v2111
      %2133 = vmatpush.bf16.msra.mxu0 %v2110
      %2134 = vmatmul.bf16.gmra.mxu0 %v2070
      %v2135 = vpop.f32.mrf.mxu0
      %v2136 = vadd.f32 0.0, %v2135
      %v2137 = vpop.f32.mrf.mxu0
      %v2138 = vadd.f32 0.0, %v2137
      %2139 = vmatmul.bf16.gmra.mxu0 %v2071
      %v2140 = vpop.f32.mrf.mxu0
      %v2141 = vadd.f32 0.0, %v2140
      %v2142 = vpop.f32.mrf.mxu0
      %v2143 = vadd.f32 0.0, %v2142
      %2144 = vmatmul.bf16.gmra.mxu0 %v2072
      %v2145 = vpop.f32.mrf.mxu0
      %v2146 = vadd.f32 0.0, %v2145
      %v2147 = vpop.f32.mrf.mxu0
      %v2148 = vadd.f32 0.0, %v2147
      %2149 = vmatmul.bf16.gmra.mxu0 %v2073
      %v2150 = vpop.f32.mrf.mxu0
      %v2151 = vadd.f32 0.0, %v2150
      %v2152 = vpop.f32.mrf.mxu0
      %v2153 = vadd.f32 0.0, %v2152
      %2154 = vdwg.mxu0
      %v2155 = vadd.f32 %v1978, %v2136
      %v2156 = vadd.f32 %v1979, %v2138
      %v2157 = vadd.f32 %v1980, %v2141
      %v2158 = vadd.f32 %v1981, %v2143
      %v2159 = vadd.f32 %v1982, %v2146
      %v2160 = vadd.f32 %v1983, %v2148
      %v2161 = vadd.f32 %v1984, %v2151
      %v2162 = vadd.f32 %v1985, %v2153
      %v2163 = vld [vmem:[%s1475] sm:$0xf]
      %v2164 = vld [vmem:[%s1475 + $0x8] sm:$0xf]
      %v2165 = vld [vmem:[%s1475 + $0x10] sm:$0xf]
      %v2166 = vld [vmem:[%s1475 + $0x18] sm:$0xf]
      %v2167 = vld [vmem:[%s1475 + $0x20] sm:$0xf]
      %v2168 = vld [vmem:[%s1475 + $0x28] sm:$0xf]
      %v2169 = vld [vmem:[%s1475 + $0x30] sm:$0xf]
      %v2170 = vld [vmem:[%s1475 + $0x38] sm:$0xf]
      %s2171 = scalar_lea.vmem %s3, 192
      %v2172 = vld [vmem:[%s2171] sm:$0xf]
      %v2173 = vld [vmem:[%s2171 + $0x4] sm:$0xf]
      %v2174 = vld [vmem:[%s2171 + $0x8] sm:$0xf]
      %v2175 = vld [vmem:[%s2171 + $0xc] sm:$0xf]
      %v2176 = vld [vmem:[%s2171 + $0x10] sm:$0xf]
      %v2177 = vld [vmem:[%s2171 + $0x14] sm:$0xf]
      %v2178 = vld [vmem:[%s2171 + $0x18] sm:$0xf]
      %v2179 = vld [vmem:[%s2171 + $0x1c] sm:$0xf]
      %v2180 = vld [vmem:[%s2171 + $0x20] sm:$0xf]
      %v2181 = vld [vmem:[%s2171 + $0x24] sm:$0xf]
      %v2182 = vld [vmem:[%s2171 + $0x28] sm:$0xf]
      %v2183 = vld [vmem:[%s2171 + $0x2c] sm:$0xf]
      %v2184 = vld [vmem:[%s2171 + $0x30] sm:$0xf]
      %v2185 = vld [vmem:[%s2171 + $0x34] sm:$0xf]
      %v2186 = vld [vmem:[%s2171 + $0x38] sm:$0xf]
      %v2187 = vld [vmem:[%s2171 + $0x3c] sm:$0xf]
      %v2196 = vunpack.c.l.b16 %v2163
      %v2197 = vunpack.c.l.b16 %v2164
      %v2198 = vunpack.c.l.b16 %v2165
      %v2199 = vunpack.c.l.b16 %v2166
      %v2200 = vunpack.c.l.b16 %v2167
      %v2201 = vunpack.c.l.b16 %v2168
      %v2202 = vunpack.c.l.b16 %v2169
      %v2203 = vunpack.c.l.b16 %v2170
      %v2204 = vpack.c.b16 %v2197, %v2196
      %v2205 = vpack.c.b16 %v2199, %v2198
      %v2206 = vpack.c.b16 %v2201, %v2200
      %v2207 = vpack.c.b16 %v2203, %v2202
      %v2228 = vunpack.c.l.b16 %v2172
      %v2229 = vunpack.c.l.b16 %v2173
      %v2230 = vunpack.c.l.b16 %v2174
      %v2231 = vunpack.c.l.b16 %v2175
      %v2232 = vunpack.c.l.b16 %v2176
      %v2233 = vunpack.c.l.b16 %v2177
      %v2234 = vunpack.c.l.b16 %v2178
      %v2235 = vunpack.c.l.b16 %v2179
      %v2236 = vunpack.c.l.b16 %v2180
      %v2237 = vunpack.c.l.b16 %v2181
      %v2238 = vunpack.c.l.b16 %v2182
      %v2239 = vunpack.c.l.b16 %v2183
      %v2240 = vunpack.c.l.b16 %v2184
      %v2241 = vunpack.c.l.b16 %v2185
      %v2242 = vunpack.c.l.b16 %v2186
      %v2243 = vunpack.c.l.b16 %v2187
      %v2244 = vpack.c.b16 %v2229, %v2228
      %v2245 = vpack.c.b16 %v2231, %v2230
      %v2246 = vpack.c.b16 %v2233, %v2232
      %v2247 = vpack.c.b16 %v2235, %v2234
      %v2248 = vpack.c.b16 %v2237, %v2236
      %v2249 = vpack.c.b16 %v2239, %v2238
      %v2250 = vpack.c.b16 %v2241, %v2240
      %v2251 = vpack.c.b16 %v2243, %v2242
      %2260 = vmatpush.bf16.msra.mxu0 %v2251
      %2261 = vmatpush.bf16.msra.mxu0 %v2250
      %2262 = vmatpush.bf16.msra.mxu0 %v2249
      %2263 = vmatpush.bf16.msra.mxu0 %v2248
      %2264 = vmatpush.bf16.msra.mxu0 %v2247
      %2265 = vmatpush.bf16.msra.mxu0 %v2246
      %2266 = vmatpush.bf16.msra.mxu0 %v2245
      %2267 = vmatpush.bf16.msra.mxu0 %v2244
      %2268 = vmatmul.bf16.gmra.mxu0 %v2204
      %v2269 = vpop.f32.mrf.mxu0
      %v2270 = vadd.f32 0.0, %v2269
      %v2271 = vpop.f32.mrf.mxu0
      %v2272 = vadd.f32 0.0, %v2271
      %2273 = vmatmul.bf16.gmra.mxu0 %v2205
      %v2274 = vpop.f32.mrf.mxu0
      %v2275 = vadd.f32 0.0, %v2274
      %v2276 = vpop.f32.mrf.mxu0
      %v2277 = vadd.f32 0.0, %v2276
      %2278 = vmatmul.bf16.gmra.mxu0 %v2206
      %v2279 = vpop.f32.mrf.mxu0
      %v2280 = vadd.f32 0.0, %v2279
      %v2281 = vpop.f32.mrf.mxu0
      %v2282 = vadd.f32 0.0, %v2281
      %2283 = vmatmul.bf16.gmra.mxu0 %v2207
      %v2284 = vpop.f32.mrf.mxu0
      %v2285 = vadd.f32 0.0, %v2284
      %v2286 = vpop.f32.mrf.mxu0
      %v2287 = vadd.f32 0.0, %v2286
      %2288 = vdwg.mxu0
      %v2289 = vadd.f32 %v2155, %v2270
      %v2290 = vadd.f32 %v2156, %v2272
      %v2291 = vadd.f32 %v2157, %v2275
      %v2292 = vadd.f32 %v2158, %v2277
      %v2293 = vadd.f32 %v2159, %v2280
      %v2294 = vadd.f32 %v2160, %v2282
      %v2295 = vadd.f32 %v2161, %v2285
      %v2296 = vadd.f32 %v2162, %v2287
      %v2297 = vld [vmem:[%s1475] sm:$0xf]
      %v2298 = vld [vmem:[%s1475 + $0x4] sm:$0x1]
      %v2299 = vld [vmem:[%s1475 + $0x8] sm:$0xf]
      %v2300 = vld [vmem:[%s1475 + $0xc] sm:$0x1]
      %v2301 = vld [vmem:[%s1475 + $0x10] sm:$0xf]
      %v2302 = vld [vmem:[%s1475 + $0x14] sm:$0x1]
      %v2303 = vld [vmem:[%s1475 + $0x18] sm:$0xf]
      %v2304 = vld [vmem:[%s1475 + $0x1c] sm:$0x1]
      %v2305 = vld [vmem:[%s1475 + $0x20] sm:$0xf]
      %v2306 = vld [vmem:[%s1475 + $0x24] sm:$0x1]
      %v2307 = vld [vmem:[%s1475 + $0x28] sm:$0xf]
      %v2308 = vld [vmem:[%s1475 + $0x2c] sm:$0x1]
      %v2309 = vld [vmem:[%s1475 + $0x30] sm:$0xf]
      %v2310 = vld [vmem:[%s1475 + $0x34] sm:$0x1]
      %v2311 = vld [vmem:[%s1475 + $0x38] sm:$0xf]
      %v2312 = vld [vmem:[%s1475 + $0x3c] sm:$0x1]
      %v2314 = vshrl.u32 %v2297, 16
      %v2316 = vrot.slane %v2314, 4
      %v2317 = vshll.u32 %v2297, 16
      %v2319 = vrot.slane %v2317, 5
      %v2320 = vor.u32 %v2316, %v2319
      %v2321 = vrot.slane %v2320, 4
      %v2323 = vshll.u32 %v2298, 16
      %v2325 = vrot.slane %v2323, 5
      %v2326 = vsel %vm468, %v2321, %v2325
      %v2328 = vshrl.u32 %v2299, 16
      %v2330 = vrot.slane %v2328, 4
      %v2331 = vshll.u32 %v2299, 16
      %v2333 = vrot.slane %v2331, 5
      %v2334 = vor.u32 %v2330, %v2333
      %v2335 = vrot.slane %v2334, 4
      %v2337 = vshll.u32 %v2300, 16
      %v2339 = vrot.slane %v2337, 5
      %v2340 = vsel %vm468, %v2335, %v2339
      %v2342 = vshrl.u32 %v2301, 16
      %v2344 = vrot.slane %v2342, 4
      %v2345 = vshll.u32 %v2301, 16
      %v2347 = vrot.slane %v2345, 5
      %v2348 = vor.u32 %v2344, %v2347
      %v2349 = vrot.slane %v2348, 4
      %v2351 = vshll.u32 %v2302, 16
      %v2353 = vrot.slane %v2351, 5
      %v2354 = vsel %vm468, %v2349, %v2353
      %v2356 = vshrl.u32 %v2303, 16
      %v2358 = vrot.slane %v2356, 4
      %v2359 = vshll.u32 %v2303, 16
      %v2361 = vrot.slane %v2359, 5
      %v2362 = vor.u32 %v2358, %v2361
      %v2363 = vrot.slane %v2362, 4
      %v2365 = vshll.u32 %v2304, 16
      %v2367 = vrot.slane %v2365, 5
      %v2368 = vsel %vm468, %v2363, %v2367
      %v2370 = vshrl.u32 %v2305, 16
      %v2372 = vrot.slane %v2370, 4
      %v2373 = vshll.u32 %v2305, 16
      %v2375 = vrot.slane %v2373, 5
      %v2376 = vor.u32 %v2372, %v2375
      %v2377 = vrot.slane %v2376, 4
      %v2379 = vshll.u32 %v2306, 16
      %v2381 = vrot.slane %v2379, 5
      %v2382 = vsel %vm468, %v2377, %v2381
      %v2384 = vshrl.u32 %v2307, 16
      %v2386 = vrot.slane %v2384, 4
      %v2387 = vshll.u32 %v2307, 16
      %v2389 = vrot.slane %v2387, 5
      %v2390 = vor.u32 %v2386, %v2389
      %v2391 = vrot.slane %v2390, 4
      %v2393 = vshll.u32 %v2308, 16
      %v2395 = vrot.slane %v2393, 5
      %v2396 = vsel %vm468, %v2391, %v2395
      %v2398 = vshrl.u32 %v2309, 16
      %v2400 = vrot.slane %v2398, 4
      %v2401 = vshll.u32 %v2309, 16
      %v2403 = vrot.slane %v2401, 5
      %v2404 = vor.u32 %v2400, %v2403
      %v2405 = vrot.slane %v2404, 4
      %v2407 = vshll.u32 %v2310, 16
      %v2409 = vrot.slane %v2407, 5
      %v2410 = vsel %vm468, %v2405, %v2409
      %v2412 = vshrl.u32 %v2311, 16
      %v2414 = vrot.slane %v2412, 4
      %v2415 = vshll.u32 %v2311, 16
      %v2417 = vrot.slane %v2415, 5
      %v2418 = vor.u32 %v2414, %v2417
      %v2419 = vrot.slane %v2418, 4
      %v2421 = vshll.u32 %v2312, 16
      %v2423 = vrot.slane %v2421, 5
      %v2424 = vsel %vm468, %v2419, %v2423
      %s2425 = scalar_lea.vmem %s3, 256
      %v2426 = vld [vmem:[%s2425] sm:$0xf]
      %v2427 = vld [vmem:[%s2425 + $0x4] sm:$0xf]
      %v2428 = vld [vmem:[%s2425 + $0x8] sm:$0xf]
      %v2429 = vld [vmem:[%s2425 + $0xc] sm:$0xf]
      %v2430 = vld [vmem:[%s2425 + $0x10] sm:$0xf]
      %v2431 = vld [vmem:[%s2425 + $0x14] sm:$0xf]
      %v2432 = vld [vmem:[%s2425 + $0x18] sm:$0xf]
      %v2433 = vld [vmem:[%s2425 + $0x1c] sm:$0xf]
      %v2434 = vld [vmem:[%s2425 + $0x20] sm:$0xf]
      %v2435 = vld [vmem:[%s2425 + $0x24] sm:$0xf]
      %v2436 = vld [vmem:[%s2425 + $0x28] sm:$0xf]
      %v2437 = vld [vmem:[%s2425 + $0x2c] sm:$0xf]
      %v2438 = vld [vmem:[%s2425 + $0x30] sm:$0xf]
      %v2439 = vld [vmem:[%s2425 + $0x34] sm:$0xf]
      %v2440 = vld [vmem:[%s2425 + $0x38] sm:$0xf]
      %v2441 = vld [vmem:[%s2425 + $0x3c] sm:$0xf]
      %v2442 = vunpack.c.l.b16 %v2326
      %v2443 = vunpack.c.l.b16 %v2340
      %v2444 = vunpack.c.l.b16 %v2354
      %v2445 = vunpack.c.l.b16 %v2368
      %v2446 = vunpack.c.l.b16 %v2382
      %v2447 = vunpack.c.l.b16 %v2396
      %v2448 = vunpack.c.l.b16 %v2410
      %v2449 = vunpack.c.l.b16 %v2424
      %v2450 = vpack.c.b16 %v2443, %v2442
      %v2451 = vpack.c.b16 %v2445, %v2444
      %v2452 = vpack.c.b16 %v2447, %v2446
      %v2453 = vpack.c.b16 %v2449, %v2448
      %v2474 = vunpack.c.l.b16 %v2426
      %v2475 = vunpack.c.l.b16 %v2427
      %v2476 = vunpack.c.l.b16 %v2428
      %v2477 = vunpack.c.l.b16 %v2429
      %v2478 = vunpack.c.l.b16 %v2430
      %v2479 = vunpack.c.l.b16 %v2431
      %v2480 = vunpack.c.l.b16 %v2432
      %v2481 = vunpack.c.l.b16 %v2433
      %v2482 = vunpack.c.l.b16 %v2434
      %v2483 = vunpack.c.l.b16 %v2435
      %v2484 = vunpack.c.l.b16 %v2436
      %v2485 = vunpack.c.l.b16 %v2437
      %v2486 = vunpack.c.l.b16 %v2438
      %v2487 = vunpack.c.l.b16 %v2439
      %v2488 = vunpack.c.l.b16 %v2440
      %v2489 = vunpack.c.l.b16 %v2441
      %v2490 = vpack.c.b16 %v2475, %v2474
      %v2491 = vpack.c.b16 %v2477, %v2476
      %v2492 = vpack.c.b16 %v2479, %v2478
      %v2493 = vpack.c.b16 %v2481, %v2480
      %v2494 = vpack.c.b16 %v2483, %v2482
      %v2495 = vpack.c.b16 %v2485, %v2484
      %v2496 = vpack.c.b16 %v2487, %v2486
      %v2497 = vpack.c.b16 %v2489, %v2488
      %2506 = vmatpush.bf16.msra.mxu0 %v2497
      %2507 = vmatpush.bf16.msra.mxu0 %v2496
      %2508 = vmatpush.bf16.msra.mxu0 %v2495
      %2509 = vmatpush.bf16.msra.mxu0 %v2494
      %2510 = vmatpush.bf16.msra.mxu0 %v2493
      %2511 = vmatpush.bf16.msra.mxu0 %v2492
      %2512 = vmatpush.bf16.msra.mxu0 %v2491
      %2513 = vmatpush.bf16.msra.mxu0 %v2490
      %2514 = vmatmul.bf16.gmra.mxu0 %v2450
      %v2515 = vpop.f32.mrf.mxu0
      %v2516 = vadd.f32 0.0, %v2515
      %v2517 = vpop.f32.mrf.mxu0
      %v2518 = vadd.f32 0.0, %v2517
      %2519 = vmatmul.bf16.gmra.mxu0 %v2451
      %v2520 = vpop.f32.mrf.mxu0
      %v2521 = vadd.f32 0.0, %v2520
      %v2522 = vpop.f32.mrf.mxu0
      %v2523 = vadd.f32 0.0, %v2522
      %2524 = vmatmul.bf16.gmra.mxu0 %v2452
      %v2525 = vpop.f32.mrf.mxu0
      %v2526 = vadd.f32 0.0, %v2525
      %v2527 = vpop.f32.mrf.mxu0
      %v2528 = vadd.f32 0.0, %v2527
      %2529 = vmatmul.bf16.gmra.mxu0 %v2453
      %v2530 = vpop.f32.mrf.mxu0
      %v2531 = vadd.f32 0.0, %v2530
      %v2532 = vpop.f32.mrf.mxu0
      %v2533 = vadd.f32 0.0, %v2532
      %2534 = vdwg.mxu0
      %v2535 = vadd.f32 %v2289, %v2516
      %v2536 = vadd.f32 %v2290, %v2518
      %v2537 = vadd.f32 %v2291, %v2521
      %v2538 = vadd.f32 %v2292, %v2523
      %v2539 = vadd.f32 %v2293, %v2526
      %v2540 = vadd.f32 %v2294, %v2528
      %v2541 = vadd.f32 %v2295, %v2531
      %v2542 = vadd.f32 %v2296, %v2533
      %v2543 = vld [vmem:[%s1475] sm:$0xe]
      %v2544 = vld [vmem:[%s1475 + $0x8] sm:$0xe]
      %v2545 = vld [vmem:[%s1475 + $0x10] sm:$0xe]
      %v2546 = vld [vmem:[%s1475 + $0x18] sm:$0xe]
      %v2547 = vld [vmem:[%s1475 + $0x20] sm:$0xe]
      %v2548 = vld [vmem:[%s1475 + $0x28] sm:$0xe]
      %v2549 = vld [vmem:[%s1475 + $0x30] sm:$0xe]
      %v2550 = vld [vmem:[%s1475 + $0x38] sm:$0xe]
      %v2567 = vrot.slane %v2543, 5
      %v2568 = vrot.slane %v2567, 4
      %v2569 = vrot.slane %v2298, 5
      %v2570 = vsel %vm2012, %v2568, %v2569
      %v2571 = vrot.slane %v2544, 5
      %v2572 = vrot.slane %v2571, 4
      %v2573 = vrot.slane %v2300, 5
      %v2574 = vsel %vm2012, %v2572, %v2573
      %v2575 = vrot.slane %v2545, 5
      %v2576 = vrot.slane %v2575, 4
      %v2577 = vrot.slane %v2302, 5
      %v2578 = vsel %vm2012, %v2576, %v2577
      %v2579 = vrot.slane %v2546, 5
      %v2580 = vrot.slane %v2579, 4
      %v2581 = vrot.slane %v2304, 5
      %v2582 = vsel %vm2012, %v2580, %v2581
      %v2583 = vrot.slane %v2547, 5
      %v2584 = vrot.slane %v2583, 4
      %v2585 = vrot.slane %v2306, 5
      %v2586 = vsel %vm2012, %v2584, %v2585
      %v2587 = vrot.slane %v2548, 5
      %v2588 = vrot.slane %v2587, 4
      %v2589 = vrot.slane %v2308, 5
      %v2590 = vsel %vm2012, %v2588, %v2589
      %v2591 = vrot.slane %v2549, 5
      %v2592 = vrot.slane %v2591, 4
      %v2593 = vrot.slane %v2310, 5
      %v2594 = vsel %vm2012, %v2592, %v2593
      %v2595 = vrot.slane %v2550, 5
      %v2596 = vrot.slane %v2595, 4
      %v2597 = vrot.slane %v2312, 5
      %v2598 = vsel %vm2012, %v2596, %v2597
      %s2599 = scalar_lea.vmem %s3, 320
      %v2600 = vld [vmem:[%s2599] sm:$0xf]
      %v2601 = vld [vmem:[%s2599 + $0x4] sm:$0xf]
      %v2602 = vld [vmem:[%s2599 + $0x8] sm:$0xf]
      %v2603 = vld [vmem:[%s2599 + $0xc] sm:$0xf]
      %v2604 = vld [vmem:[%s2599 + $0x10] sm:$0xf]
      %v2605 = vld [vmem:[%s2599 + $0x14] sm:$0xf]
      %v2606 = vld [vmem:[%s2599 + $0x18] sm:$0xf]
      %v2607 = vld [vmem:[%s2599 + $0x1c] sm:$0xf]
      %v2608 = vld [vmem:[%s2599 + $0x20] sm:$0xf]
      %v2609 = vld [vmem:[%s2599 + $0x24] sm:$0xf]
      %v2610 = vld [vmem:[%s2599 + $0x28] sm:$0xf]
      %v2611 = vld [vmem:[%s2599 + $0x2c] sm:$0xf]
      %v2612 = vld [vmem:[%s2599 + $0x30] sm:$0xf]
      %v2613 = vld [vmem:[%s2599 + $0x34] sm:$0xf]
      %v2614 = vld [vmem:[%s2599 + $0x38] sm:$0xf]
      %v2615 = vld [vmem:[%s2599 + $0x3c] sm:$0xf]
      %v2616 = vunpack.c.l.b16 %v2570
      %v2617 = vunpack.c.l.b16 %v2574
      %v2618 = vunpack.c.l.b16 %v2578
      %v2619 = vunpack.c.l.b16 %v2582
      %v2620 = vunpack.c.l.b16 %v2586
      %v2621 = vunpack.c.l.b16 %v2590
      %v2622 = vunpack.c.l.b16 %v2594
      %v2623 = vunpack.c.l.b16 %v2598
      %v2624 = vpack.c.b16 %v2617, %v2616
      %v2625 = vpack.c.b16 %v2619, %v2618
      %v2626 = vpack.c.b16 %v2621, %v2620
      %v2627 = vpack.c.b16 %v2623, %v2622
      %v2648 = vunpack.c.l.b16 %v2600
      %v2649 = vunpack.c.l.b16 %v2601
      %v2650 = vunpack.c.l.b16 %v2602
      %v2651 = vunpack.c.l.b16 %v2603
      %v2652 = vunpack.c.l.b16 %v2604
      %v2653 = vunpack.c.l.b16 %v2605
      %v2654 = vunpack.c.l.b16 %v2606
      %v2655 = vunpack.c.l.b16 %v2607
      %v2656 = vunpack.c.l.b16 %v2608
      %v2657 = vunpack.c.l.b16 %v2609
      %v2658 = vunpack.c.l.b16 %v2610
      %v2659 = vunpack.c.l.b16 %v2611
      %v2660 = vunpack.c.l.b16 %v2612
      %v2661 = vunpack.c.l.b16 %v2613
      %v2662 = vunpack.c.l.b16 %v2614
      %v2663 = vunpack.c.l.b16 %v2615
      %v2664 = vpack.c.b16 %v2649, %v2648
      %v2665 = vpack.c.b16 %v2651, %v2650
      %v2666 = vpack.c.b16 %v2653, %v2652
      %v2667 = vpack.c.b16 %v2655, %v2654
      %v2668 = vpack.c.b16 %v2657, %v2656
      %v2669 = vpack.c.b16 %v2659, %v2658
      %v2670 = vpack.c.b16 %v2661, %v2660
      %v2671 = vpack.c.b16 %v2663, %v2662
      %2680 = vmatpush.bf16.msra.mxu0 %v2671
      %2681 = vmatpush.bf16.msra.mxu0 %v2670
      %2682 = vmatpush.bf16.msra.mxu0 %v2669
      %2683 = vmatpush.bf16.msra.mxu0 %v2668
      %2684 = vmatpush.bf16.msra.mxu0 %v2667
      %2685 = vmatpush.bf16.msra.mxu0 %v2666
      %2686 = vmatpush.bf16.msra.mxu0 %v2665
      %2687 = vmatpush.bf16.msra.mxu0 %v2664
      %2688 = vmatmul.bf16.gmra.mxu0 %v2624
      %v2689 = vpop.f32.mrf.mxu0
      %v2690 = vadd.f32 0.0, %v2689
      %v2691 = vpop.f32.mrf.mxu0
      %v2692 = vadd.f32 0.0, %v2691
      %2693 = vmatmul.bf16.gmra.mxu0 %v2625
      %v2694 = vpop.f32.mrf.mxu0
      %v2695 = vadd.f32 0.0, %v2694
      %v2696 = vpop.f32.mrf.mxu0
      %v2697 = vadd.f32 0.0, %v2696
      %2698 = vmatmul.bf16.gmra.mxu0 %v2626
      %v2699 = vpop.f32.mrf.mxu0
      %v2700 = vadd.f32 0.0, %v2699
      %v2701 = vpop.f32.mrf.mxu0
      %v2702 = vadd.f32 0.0, %v2701
      %2703 = vmatmul.bf16.gmra.mxu0 %v2627
      %v2704 = vpop.f32.mrf.mxu0
      %v2705 = vadd.f32 0.0, %v2704
      %v2706 = vpop.f32.mrf.mxu0
      %v2707 = vadd.f32 0.0, %v2706
      %2708 = vdwg.mxu0
      %v2709 = vadd.f32 %v2535, %v2690
      %v2710 = vadd.f32 %v2536, %v2692
      %v2711 = vadd.f32 %v2537, %v2695
      %v2712 = vadd.f32 %v2538, %v2697
      %v2713 = vadd.f32 %v2539, %v2700
      %v2714 = vadd.f32 %v2540, %v2702
      %v2715 = vadd.f32 %v2541, %v2705
      %v2716 = vadd.f32 %v2542, %v2707
      %s2717 = scalar_lea.vmem [#allocation2], 16
      %v2718 = vld [vmem:[%s2717] sm:$0xf]
      %v2719 = vld [vmem:[%s2717 + $0x8] sm:$0xf]
      %v2720 = vld [vmem:[%s2717 + $0x10] sm:$0xf]
      %v2721 = vld [vmem:[%s2717 + $0x18] sm:$0xf]
      %v2722 = vld [vmem:[%s2717 + $0x20] sm:$0xf]
      %v2723 = vld [vmem:[%s2717 + $0x28] sm:$0xf]
      %v2724 = vld [vmem:[%s2717 + $0x30] sm:$0xf]
      %v2725 = vld [vmem:[%s2717 + $0x38] sm:$0xf]
      %s2726 = scalar_lea.vmem %s3, 384
      %v2727 = vld [vmem:[%s2726] sm:$0xf]
      %v2728 = vld [vmem:[%s2726 + $0x4] sm:$0xf]
      %v2729 = vld [vmem:[%s2726 + $0x8] sm:$0xf]
      %v2730 = vld [vmem:[%s2726 + $0xc] sm:$0xf]
      %v2731 = vld [vmem:[%s2726 + $0x10] sm:$0xf]
      %v2732 = vld [vmem:[%s2726 + $0x14] sm:$0xf]
      %v2733 = vld [vmem:[%s2726 + $0x18] sm:$0xf]
      %v2734 = vld [vmem:[%s2726 + $0x1c] sm:$0xf]
      %v2735 = vld [vmem:[%s2726 + $0x20] sm:$0xf]
      %v2736 = vld [vmem:[%s2726 + $0x24] sm:$0xf]
      %v2737 = vld [vmem:[%s2726 + $0x28] sm:$0xf]
      %v2738 = vld [vmem:[%s2726 + $0x2c] sm:$0xf]
      %v2739 = vld [vmem:[%s2726 + $0x30] sm:$0xf]
      %v2740 = vld [vmem:[%s2726 + $0x34] sm:$0xf]
      %v2741 = vld [vmem:[%s2726 + $0x38] sm:$0xf]
      %v2742 = vld [vmem:[%s2726 + $0x3c] sm:$0xf]
      %v2751 = vunpack.c.l.b16 %v2718
      %v2752 = vunpack.c.l.b16 %v2719
      %v2753 = vunpack.c.l.b16 %v2720
      %v2754 = vunpack.c.l.b16 %v2721
      %v2755 = vunpack.c.l.b16 %v2722
      %v2756 = vunpack.c.l.b16 %v2723
      %v2757 = vunpack.c.l.b16 %v2724
      %v2758 = vunpack.c.l.b16 %v2725
      %v2759 = vpack.c.b16 %v2752, %v2751
      %v2760 = vpack.c.b16 %v2754, %v2753
      %v2761 = vpack.c.b16 %v2756, %v2755
      %v2762 = vpack.c.b16 %v2758, %v2757
      %v2783 = vunpack.c.l.b16 %v2727
      %v2784 = vunpack.c.l.b16 %v2728
      %v2785 = vunpack.c.l.b16 %v2729
      %v2786 = vunpack.c.l.b16 %v2730
      %v2787 = vunpack.c.l.b16 %v2731
      %v2788 = vunpack.c.l.b16 %v2732
      %v2789 = vunpack.c.l.b16 %v2733
      %v2790 = vunpack.c.l.b16 %v2734
      %v2791 = vunpack.c.l.b16 %v2735
      %v2792 = vunpack.c.l.b16 %v2736
      %v2793 = vunpack.c.l.b16 %v2737
      %v2794 = vunpack.c.l.b16 %v2738
      %v2795 = vunpack.c.l.b16 %v2739
      %v2796 = vunpack.c.l.b16 %v2740
      %v2797 = vunpack.c.l.b16 %v2741
      %v2798 = vunpack.c.l.b16 %v2742
      %v2799 = vpack.c.b16 %v2784, %v2783
      %v2800 = vpack.c.b16 %v2786, %v2785
      %v2801 = vpack.c.b16 %v2788, %v2787
      %v2802 = vpack.c.b16 %v2790, %v2789
      %v2803 = vpack.c.b16 %v2792, %v2791
      %v2804 = vpack.c.b16 %v2794, %v2793
      %v2805 = vpack.c.b16 %v2796, %v2795
      %v2806 = vpack.c.b16 %v2798, %v2797
      %2815 = vmatpush.bf16.msra.mxu0 %v2806
      %2816 = vmatpush.bf16.msra.mxu0 %v2805
      %2817 = vmatpush.bf16.msra.mxu0 %v2804
      %2818 = vmatpush.bf16.msra.mxu0 %v2803
      %2819 = vmatpush.bf16.msra.mxu0 %v2802
      %2820 = vmatpush.bf16.msra.mxu0 %v2801
      %2821 = vmatpush.bf16.msra.mxu0 %v2800
      %2822 = vmatpush.bf16.msra.mxu0 %v2799
      %2823 = vmatmul.bf16.gmra.mxu0 %v2759
      %v2824 = vpop.f32.mrf.mxu0
      %v2825 = vadd.f32 0.0, %v2824
      %v2826 = vpop.f32.mrf.mxu0
      %v2827 = vadd.f32 0.0, %v2826
      %2828 = vmatmul.bf16.gmra.mxu0 %v2760
      %v2829 = vpop.f32.mrf.mxu0
      %v2830 = vadd.f32 0.0, %v2829
      %v2831 = vpop.f32.mrf.mxu0
      %v2832 = vadd.f32 0.0, %v2831
      %2833 = vmatmul.bf16.gmra.mxu0 %v2761
      %v2834 = vpop.f32.mrf.mxu0
      %v2835 = vadd.f32 0.0, %v2834
      %v2836 = vpop.f32.mrf.mxu0
      %v2837 = vadd.f32 0.0, %v2836
      %2838 = vmatmul.bf16.gmra.mxu0 %v2762
      %v2839 = vpop.f32.mrf.mxu0
      %v2840 = vadd.f32 0.0, %v2839
      %v2841 = vpop.f32.mrf.mxu0
      %v2842 = vadd.f32 0.0, %v2841
      %2843 = vdwg.mxu0
      %v2844 = vadd.f32 %v2709, %v2825
      %v2845 = vadd.f32 %v2710, %v2827
      %v2846 = vadd.f32 %v2711, %v2830
      %v2847 = vadd.f32 %v2712, %v2832
      %v2848 = vadd.f32 %v2713, %v2835
      %v2849 = vadd.f32 %v2714, %v2837
      %v2850 = vadd.f32 %v2715, %v2840
      %v2851 = vadd.f32 %v2716, %v2842
      %v2852 = vld [vmem:[%s2717] sm:$0xf]
      %v2853 = vld [vmem:[%s2717 + $0x4] sm:$0x1]
      %v2854 = vld [vmem:[%s2717 + $0x8] sm:$0xf]
      %v2855 = vld [vmem:[%s2717 + $0xc] sm:$0x1]
      %v2856 = vld [vmem:[%s2717 + $0x10] sm:$0xf]
      %v2857 = vld [vmem:[%s2717 + $0x14] sm:$0x1]
      %v2858 = vld [vmem:[%s2717 + $0x18] sm:$0xf]
      %v2859 = vld [vmem:[%s2717 + $0x1c] sm:$0x1]
      %v2860 = vld [vmem:[%s2717 + $0x20] sm:$0xf]
      %v2861 = vld [vmem:[%s2717 + $0x24] sm:$0x1]
      %v2862 = vld [vmem:[%s2717 + $0x28] sm:$0xf]
      %v2863 = vld [vmem:[%s2717 + $0x2c] sm:$0x1]
      %v2864 = vld [vmem:[%s2717 + $0x30] sm:$0xf]
      %v2865 = vld [vmem:[%s2717 + $0x34] sm:$0x1]
      %v2866 = vld [vmem:[%s2717 + $0x38] sm:$0xf]
      %v2867 = vld [vmem:[%s2717 + $0x3c] sm:$0x1]
      %v2869 = vshrl.u32 %v2852, 16
      %v2871 = vrot.slane %v2869, 4
      %v2872 = vshll.u32 %v2852, 16
      %v2874 = vrot.slane %v2872, 5
      %v2875 = vor.u32 %v2871, %v2874
      %v2876 = vrot.slane %v2875, 4
      %v2878 = vshll.u32 %v2853, 16
      %v2880 = vrot.slane %v2878, 5
      %v2881 = vsel %vm468, %v2876, %v2880
      %v2883 = vshrl.u32 %v2854, 16
      %v2885 = vrot.slane %v2883, 4
      %v2886 = vshll.u32 %v2854, 16
      %v2888 = vrot.slane %v2886, 5
      %v2889 = vor.u32 %v2885, %v2888
      %v2890 = vrot.slane %v2889, 4
      %v2892 = vshll.u32 %v2855, 16
      %v2894 = vrot.slane %v2892, 5
      %v2895 = vsel %vm468, %v2890, %v2894
      %v2897 = vshrl.u32 %v2856, 16
      %v2899 = vrot.slane %v2897, 4
      %v2900 = vshll.u32 %v2856, 16
      %v2902 = vrot.slane %v2900, 5
      %v2903 = vor.u32 %v2899, %v2902
      %v2904 = vrot.slane %v2903, 4
      %v2906 = vshll.u32 %v2857, 16
      %v2908 = vrot.slane %v2906, 5
      %v2909 = vsel %vm468, %v2904, %v2908
      %v2911 = vshrl.u32 %v2858, 16
      %v2913 = vrot.slane %v2911, 4
      %v2914 = vshll.u32 %v2858, 16
      %v2916 = vrot.slane %v2914, 5
      %v2917 = vor.u32 %v2913, %v2916
      %v2918 = vrot.slane %v2917, 4
      %v2920 = vshll.u32 %v2859, 16
      %v2922 = vrot.slane %v2920, 5
      %v2923 = vsel %vm468, %v2918, %v2922
      %v2925 = vshrl.u32 %v2860, 16
      %v2927 = vrot.slane %v2925, 4
      %v2928 = vshll.u32 %v2860, 16
      %v2930 = vrot.slane %v2928, 5
      %v2931 = vor.u32 %v2927, %v2930
      %v2932 = vrot.slane %v2931, 4
      %v2934 = vshll.u32 %v2861, 16
      %v2936 = vrot.slane %v2934, 5
      %v2937 = vsel %vm468, %v2932, %v2936
      %v2939 = vshrl.u32 %v2862, 16
      %v2941 = vrot.slane %v2939, 4
      %v2942 = vshll.u32 %v2862, 16
      %v2944 = vrot.slane %v2942, 5
      %v2945 = vor.u32 %v2941, %v2944
      %v2946 = vrot.slane %v2945, 4
      %v2948 = vshll.u32 %v2863, 16
      %v2950 = vrot.slane %v2948, 5
      %v2951 = vsel %vm468, %v2946, %v2950
      %v2953 = vshrl.u32 %v2864, 16
      %v2955 = vrot.slane %v2953, 4
      %v2956 = vshll.u32 %v2864, 16
      %v2958 = vrot.slane %v2956, 5
      %v2959 = vor.u32 %v2955, %v2958
      %v2960 = vrot.slane %v2959, 4
      %v2962 = vshll.u32 %v2865, 16
      %v2964 = vrot.slane %v2962, 5
      %v2965 = vsel %vm468, %v2960, %v2964
      %v2967 = vshrl.u32 %v2866, 16
      %v2969 = vrot.slane %v2967, 4
      %v2970 = vshll.u32 %v2866, 16
      %v2972 = vrot.slane %v2970, 5
      %v2973 = vor.u32 %v2969, %v2972
      %v2974 = vrot.slane %v2973, 4
      %v2976 = vshll.u32 %v2867, 16
      %v2978 = vrot.slane %v2976, 5
      %v2979 = vsel %vm468, %v2974, %v2978
      %s2980 = scalar_lea.vmem %s3, 448
      %v2981 = vld [vmem:[%s2980] sm:$0xf]
      %v2982 = vld [vmem:[%s2980 + $0x4] sm:$0xf]
      %v2983 = vld [vmem:[%s2980 + $0x8] sm:$0xf]
      %v2984 = vld [vmem:[%s2980 + $0xc] sm:$0xf]
      %v2985 = vld [vmem:[%s2980 + $0x10] sm:$0xf]
      %v2986 = vld [vmem:[%s2980 + $0x14] sm:$0xf]
      %v2987 = vld [vmem:[%s2980 + $0x18] sm:$0xf]
      %v2988 = vld [vmem:[%s2980 + $0x1c] sm:$0xf]
      %v2989 = vld [vmem:[%s2980 + $0x20] sm:$0xf]
      %v2990 = vld [vmem:[%s2980 + $0x24] sm:$0xf]
      %v2991 = vld [vmem:[%s2980 + $0x28] sm:$0xf]
      %v2992 = vld [vmem:[%s2980 + $0x2c] sm:$0xf]
      %v2993 = vld [vmem:[%s2980 + $0x30] sm:$0xf]
      %v2994 = vld [vmem:[%s2980 + $0x34] sm:$0xf]
      %v2995 = vld [vmem:[%s2980 + $0x38] sm:$0xf]
      %v2996 = vld [vmem:[%s2980 + $0x3c] sm:$0xf]
      %v2997 = vunpack.c.l.b16 %v2881
      %v2998 = vunpack.c.l.b16 %v2895
      %v2999 = vunpack.c.l.b16 %v2909
      %v3000 = vunpack.c.l.b16 %v2923
      %v3001 = vunpack.c.l.b16 %v2937
      %v3002 = vunpack.c.l.b16 %v2951
      %v3003 = vunpack.c.l.b16 %v2965
      %v3004 = vunpack.c.l.b16 %v2979
      %v3005 = vpack.c.b16 %v2998, %v2997
      %v3006 = vpack.c.b16 %v3000, %v2999
      %v3007 = vpack.c.b16 %v3002, %v3001
      %v3008 = vpack.c.b16 %v3004, %v3003
      %v3029 = vunpack.c.l.b16 %v2981
      %v3030 = vunpack.c.l.b16 %v2982
      %v3031 = vunpack.c.l.b16 %v2983
      %v3032 = vunpack.c.l.b16 %v2984
      %v3033 = vunpack.c.l.b16 %v2985
      %v3034 = vunpack.c.l.b16 %v2986
      %v3035 = vunpack.c.l.b16 %v2987
      %v3036 = vunpack.c.l.b16 %v2988
      %v3037 = vunpack.c.l.b16 %v2989
      %v3038 = vunpack.c.l.b16 %v2990
      %v3039 = vunpack.c.l.b16 %v2991
      %v3040 = vunpack.c.l.b16 %v2992
      %v3041 = vunpack.c.l.b16 %v2993
      %v3042 = vunpack.c.l.b16 %v2994
      %v3043 = vunpack.c.l.b16 %v2995
      %v3044 = vunpack.c.l.b16 %v2996
      %v3045 = vpack.c.b16 %v3030, %v3029
      %v3046 = vpack.c.b16 %v3032, %v3031
      %v3047 = vpack.c.b16 %v3034, %v3033
      %v3048 = vpack.c.b16 %v3036, %v3035
      %v3049 = vpack.c.b16 %v3038, %v3037
      %v3050 = vpack.c.b16 %v3040, %v3039
      %v3051 = vpack.c.b16 %v3042, %v3041
      %v3052 = vpack.c.b16 %v3044, %v3043
      %3061 = vmatpush.bf16.msra.mxu0 %v3052
      %3062 = vmatpush.bf16.msra.mxu0 %v3051
      %3063 = vmatpush.bf16.msra.mxu0 %v3050
      %3064 = vmatpush.bf16.msra.mxu0 %v3049
      %3065 = vmatpush.bf16.msra.mxu0 %v3048
      %3066 = vmatpush.bf16.msra.mxu0 %v3047
      %3067 = vmatpush.bf16.msra.mxu0 %v3046
      %3068 = vmatpush.bf16.msra.mxu0 %v3045
      %3069 = vmatmul.bf16.gmra.mxu0 %v3005
      %v3070 = vpop.f32.mrf.mxu0
      %v3071 = vadd.f32 0.0, %v3070
      %v3072 = vpop.f32.mrf.mxu0
      %v3073 = vadd.f32 0.0, %v3072
      %3074 = vmatmul.bf16.gmra.mxu0 %v3006
      %v3075 = vpop.f32.mrf.mxu0
      %v3076 = vadd.f32 0.0, %v3075
      %v3077 = vpop.f32.mrf.mxu0
      %v3078 = vadd.f32 0.0, %v3077
      %3079 = vmatmul.bf16.gmra.mxu0 %v3007
      %v3080 = vpop.f32.mrf.mxu0
      %v3081 = vadd.f32 0.0, %v3080
      %v3082 = vpop.f32.mrf.mxu0
      %v3083 = vadd.f32 0.0, %v3082
      %3084 = vmatmul.bf16.gmra.mxu0 %v3008
      %v3085 = vpop.f32.mrf.mxu0
      %v3086 = vadd.f32 0.0, %v3085
      %v3087 = vpop.f32.mrf.mxu0
      %v3088 = vadd.f32 0.0, %v3087
      %3089 = vdwg.mxu0
      %v3090 = vadd.f32 %v2844, %v3071
      %v3091 = vadd.f32 %v2845, %v3073
      %v3092 = vadd.f32 %v2846, %v3076
      %v3093 = vadd.f32 %v2847, %v3078
      %v3094 = vadd.f32 %v2848, %v3081
      %v3095 = vadd.f32 %v2849, %v3083
      %v3096 = vadd.f32 %v2850, %v3086
      %v3097 = vadd.f32 %v2851, %v3088
      %v3098 = vld [vmem:[%s2717] sm:$0xe]
      %v3099 = vld [vmem:[%s2717 + $0x8] sm:$0xe]
      %v3100 = vld [vmem:[%s2717 + $0x10] sm:$0xe]
      %v3101 = vld [vmem:[%s2717 + $0x18] sm:$0xe]
      %v3102 = vld [vmem:[%s2717 + $0x20] sm:$0xe]
      %v3103 = vld [vmem:[%s2717 + $0x28] sm:$0xe]
      %v3104 = vld [vmem:[%s2717 + $0x30] sm:$0xe]
      %v3105 = vld [vmem:[%s2717 + $0x38] sm:$0xe]
      %v3122 = vrot.slane %v3098, 5
      %v3123 = vrot.slane %v3122, 4
      %v3124 = vrot.slane %v2853, 5
      %v3125 = vsel %vm2012, %v3123, %v3124
      %v3126 = vrot.slane %v3099, 5
      %v3127 = vrot.slane %v3126, 4
      %v3128 = vrot.slane %v2855, 5
      %v3129 = vsel %vm2012, %v3127, %v3128
      %v3130 = vrot.slane %v3100, 5
      %v3131 = vrot.slane %v3130, 4
      %v3132 = vrot.slane %v2857, 5
      %v3133 = vsel %vm2012, %v3131, %v3132
      %v3134 = vrot.slane %v3101, 5
      %v3135 = vrot.slane %v3134, 4
      %v3136 = vrot.slane %v2859, 5
      %v3137 = vsel %vm2012, %v3135, %v3136
      %v3138 = vrot.slane %v3102, 5
      %v3139 = vrot.slane %v3138, 4
      %v3140 = vrot.slane %v2861, 5
      %v3141 = vsel %vm2012, %v3139, %v3140
      %v3142 = vrot.slane %v3103, 5
      %v3143 = vrot.slane %v3142, 4
      %v3144 = vrot.slane %v2863, 5
      %v3145 = vsel %vm2012, %v3143, %v3144
      %v3146 = vrot.slane %v3104, 5
      %v3147 = vrot.slane %v3146, 4
      %v3148 = vrot.slane %v2865, 5
      %v3149 = vsel %vm2012, %v3147, %v3148
      %v3150 = vrot.slane %v3105, 5
      %v3151 = vrot.slane %v3150, 4
      %v3152 = vrot.slane %v2867, 5
      %v3153 = vsel %vm2012, %v3151, %v3152
      %s3154 = scalar_lea.vmem %s3, 512
      %v3155 = vld [vmem:[%s3154] sm:$0xf]
      %v3156 = vld [vmem:[%s3154 + $0x4] sm:$0xf]
      %v3157 = vld [vmem:[%s3154 + $0x8] sm:$0xf]
      %v3158 = vld [vmem:[%s3154 + $0xc] sm:$0xf]
      %v3159 = vld [vmem:[%s3154 + $0x10] sm:$0xf]
      %v3160 = vld [vmem:[%s3154 + $0x14] sm:$0xf]
      %v3161 = vld [vmem:[%s3154 + $0x18] sm:$0xf]
      %v3162 = vld [vmem:[%s3154 + $0x1c] sm:$0xf]
      %v3163 = vld [vmem:[%s3154 + $0x20] sm:$0xf]
      %v3164 = vld [vmem:[%s3154 + $0x24] sm:$0xf]
      %v3165 = vld [vmem:[%s3154 + $0x28] sm:$0xf]
      %v3166 = vld [vmem:[%s3154 + $0x2c] sm:$0xf]
      %v3167 = vld [vmem:[%s3154 + $0x30] sm:$0xf]
      %v3168 = vld [vmem:[%s3154 + $0x34] sm:$0xf]
      %v3169 = vld [vmem:[%s3154 + $0x38] sm:$0xf]
      %v3170 = vld [vmem:[%s3154 + $0x3c] sm:$0xf]
      %v3171 = vunpack.c.l.b16 %v3125
      %v3172 = vunpack.c.l.b16 %v3129
      %v3173 = vunpack.c.l.b16 %v3133
      %v3174 = vunpack.c.l.b16 %v3137
      %v3175 = vunpack.c.l.b16 %v3141
      %v3176 = vunpack.c.l.b16 %v3145
      %v3177 = vunpack.c.l.b16 %v3149
      %v3178 = vunpack.c.l.b16 %v3153
      %v3179 = vpack.c.b16 %v3172, %v3171
      %v3180 = vpack.c.b16 %v3174, %v3173
      %v3181 = vpack.c.b16 %v3176, %v3175
      %v3182 = vpack.c.b16 %v3178, %v3177
      %v3203 = vunpack.c.l.b16 %v3155
      %v3204 = vunpack.c.l.b16 %v3156
      %v3205 = vunpack.c.l.b16 %v3157
      %v3206 = vunpack.c.l.b16 %v3158
      %v3207 = vunpack.c.l.b16 %v3159
      %v3208 = vunpack.c.l.b16 %v3160
      %v3209 = vunpack.c.l.b16 %v3161
      %v3210 = vunpack.c.l.b16 %v3162
      %v3211 = vunpack.c.l.b16 %v3163
      %v3212 = vunpack.c.l.b16 %v3164
      %v3213 = vunpack.c.l.b16 %v3165
      %v3214 = vunpack.c.l.b16 %v3166
      %v3215 = vunpack.c.l.b16 %v3167
      %v3216 = vunpack.c.l.b16 %v3168
      %v3217 = vunpack.c.l.b16 %v3169
      %v3218 = vunpack.c.l.b16 %v3170
      %v3219 = vpack.c.b16 %v3204, %v3203
      %v3220 = vpack.c.b16 %v3206, %v3205
      %v3221 = vpack.c.b16 %v3208, %v3207
      %v3222 = vpack.c.b16 %v3210, %v3209
      %v3223 = vpack.c.b16 %v3212, %v3211
      %v3224 = vpack.c.b16 %v3214, %v3213
      %v3225 = vpack.c.b16 %v3216, %v3215
      %v3226 = vpack.c.b16 %v3218, %v3217
      %3235 = vmatpush.bf16.msra.mxu0 %v3226
      %3236 = vmatpush.bf16.msra.mxu0 %v3225
      %3237 = vmatpush.bf16.msra.mxu0 %v3224
      %3238 = vmatpush.bf16.msra.mxu0 %v3223
      %3239 = vmatpush.bf16.msra.mxu0 %v3222
      %3240 = vmatpush.bf16.msra.mxu0 %v3221
      %3241 = vmatpush.bf16.msra.mxu0 %v3220
      %3242 = vmatpush.bf16.msra.mxu0 %v3219
      %3243 = vmatmul.bf16.gmra.mxu0 %v3179
      %v3244 = vpop.f32.mrf.mxu0
      %v3245 = vadd.f32 0.0, %v3244
      %v3246 = vpop.f32.mrf.mxu0
      %v3247 = vadd.f32 0.0, %v3246
      %3248 = vmatmul.bf16.gmra.mxu0 %v3180
      %v3249 = vpop.f32.mrf.mxu0
      %v3250 = vadd.f32 0.0, %v3249
      %v3251 = vpop.f32.mrf.mxu0
      %v3252 = vadd.f32 0.0, %v3251
      %3253 = vmatmul.bf16.gmra.mxu0 %v3181
      %v3254 = vpop.f32.mrf.mxu0
      %v3255 = vadd.f32 0.0, %v3254
      %v3256 = vpop.f32.mrf.mxu0
      %v3257 = vadd.f32 0.0, %v3256
      %3258 = vmatmul.bf16.gmra.mxu0 %v3182
      %v3259 = vpop.f32.mrf.mxu0
      %v3260 = vadd.f32 0.0, %v3259
      %v3261 = vpop.f32.mrf.mxu0
      %v3262 = vadd.f32 0.0, %v3261
      %3263 = vdwg.mxu0
      %v3264 = vadd.f32 %v3090, %v3245
      %v3265 = vadd.f32 %v3091, %v3247
      %v3266 = vadd.f32 %v3092, %v3250
      %v3267 = vadd.f32 %v3093, %v3252
      %v3268 = vadd.f32 %v3094, %v3255
      %v3269 = vadd.f32 %v3095, %v3257
      %v3270 = vadd.f32 %v3096, %v3260
      %v3271 = vadd.f32 %v3097, %v3262
      %v3272 = vld [vmem:[%s4] sm:$0x1]
      %v3274 = vperm.slane %v3272, 0
      %v3276 = vadd.f32 %v3264, %v3274
      %v3277 = vadd.f32 %v3265, %v3274
      %v3278 = vadd.f32 %v3266, %v3274
      %v3279 = vadd.f32 %v3267, %v3274
      %v3280 = vadd.f32 %v3268, %v3274
      %v3281 = vadd.f32 %v3269, %v3274
      %v3282 = vadd.f32 %v3270, %v3274
      %v3283 = vadd.f32 %v3271, %v3274
      %v3284 = vmax.f32 %v3276, 0.0
      %v3285 = vmax.f32 %v3277, 0.0
      %v3286 = vmax.f32 %v3278, 0.0
      %v3287 = vmax.f32 %v3279, 0.0
      %v3288 = vmax.f32 %v3280, 0.0
      %v3289 = vmax.f32 %v3281, 0.0
      %v3290 = vmax.f32 %v3282, 0.0
      %v3291 = vmax.f32 %v3283, 0.0
      %v3292 = vpack.c.bf16 %v3284, %v3284
      %v3293 = vpack.c.bf16 %v3285, %v3285
      %v3294 = vpack.c.bf16 %v3286, %v3286
      %v3295 = vpack.c.bf16 %v3287, %v3287
      %v3296 = vpack.c.bf16 %v3288, %v3288
      %v3297 = vpack.c.bf16 %v3289, %v3289
      %v3298 = vpack.c.bf16 %v3290, %v3290
      %v3299 = vpack.c.bf16 %v3291, %v3291
      %3300 = vst [vmem:[%s278] sm:$0xf] %v3292
      %3301 = vst [vmem:[%s278 + $0x4] sm:$0xf] %v3293
      %3302 = vst [vmem:[%s278 + $0x8] sm:$0xf] %v3294
      %3303 = vst [vmem:[%s278 + $0xc] sm:$0xf] %v3295
      %3304 = vst [vmem:[%s278 + $0x10] sm:$0xf] %v3296
      %3305 = vst [vmem:[%s278 + $0x14] sm:$0xf] %v3297
      %3306 = vst [vmem:[%s278 + $0x18] sm:$0xf] %v3298
      %3307 = vst [vmem:[%s278 + $0x1c] sm:$0xf] %v3299
      %p3308 = scmp.lt.s32.totalorder %s18, 1
      %s3309 = scalar_select %p3308, %s18, 1
      %s3310 = smul.addr %s3309, 8
      %s3311 = smul.addr %s3310, 4
      %s3312 = scalar_lea.vmem %s7, %s3311
      // Predicated region
      $region49: #{resnet_block_forward.1} parent=47 // pred_check
        %p3313 = pneg %p188
      $region50: #{resnet_block_forward.1} parent=47 // pred_check_branch
        %3315 = sbr.rel (%p3313) target = $region52
      $region51: #{resnet_block_forward.1} parent=47 // pred_region
        _
      $region52: #{resnet_block_forward.1} parent=47 // pred_fallthru
        _
    $region48: #{resnet_block_forward.1} parent=5 // pred_fallthru
      _
    %p3316 = scmp.le.s32.totalorder 2, %s13
    // Predicated region
    $region53: #{resnet_block_forward.1} parent=5 // pred_check
      %p3317 = pneg %p3316
    $region54: #{resnet_block_forward.1} parent=5 // pred_check_branch
      %3319 = sbr.rel (%p3317) target = $region56
    $region55: #{resnet_block_forward.1} parent=5 // pred_region
      %s3320 = ssub.s32 %s13, 2
      // Predicated region
      $region57: #{resnet_block_forward.1} parent=55 // pred_check
        %p3321 = pneg %p194
      $region58: #{resnet_block_forward.1} parent=55 // pred_check_branch
        %3323 = sbr.rel (%p3321) target = $region60
      $region59: #{resnet_block_forward.1} parent=55 // pred_region
        %p3324 = scmp.lt.s32.totalorder %s19, 1
        %s3325 = scalar_select %p3324, %s19, 1
        %s3326 = smul.addr %s3325, 8
        %s3327 = smul.addr %s3326, 4
        %s3328 = scalar_lea.vmem %s7, %s3327
      $region60: #{resnet_block_forward.1} parent=55 // pred_fallthru
        _
    $region56: #{resnet_block_forward.1} parent=5 // pred_fallthru
      _
  $region6: #{resnet_block_forward.1} parent=0 // loop_footer
    %s17 = sadd.s32 1, %s13
  $region7: #{resnet_block_forward.1} parent=0 // loop_footer_branch
    %12 = sbr.rel target = $region3
  $region8: #{resnet_block_forward.1} parent=0 // loop_exit
    _

</llo_original>
